<compile_context>
chip_gen: v7x
topology: tpu7x:2x2x1
jax: 0.10.0
libtpu: 0.0.40
codegen_flags: <defaults>
</compile_context>

<pallas_src>
import jax
import jax.numpy as jnp
import numpy as np
from jax.experimental import pallas as pl
from jax.experimental.pallas import tpu as pltpu


# ------------------------------------------------------------------- kernel --

def lstm_classifier_kernel(x_ref, wih1_ref, whh1_ref, b1_ref,
                           wih2_ref, whh2_ref, b2_ref,
                           fcw_ref, fcb_ref,
                           out_ref,
                           gx_sc, h1_sc):
    """Fused 2-layer LSTM + FC head for one batch block.

    x_ref:    (T, B, IN)  time-major input block (f32, VMEM)
    wih*_ref: (IN|H, 4H)  input->hidden weights, transposed, bf16
    whh*_ref: (H, 4H)     hidden->hidden weights, transposed, bf16
    b*_ref:   (1, 4H)     b_ih + b_hh combined, f32
    fcw_ref:  (H, C)      FC weight, transposed, f32
    fcb_ref:  (1, C)      FC bias, f32
    out_ref:  (B, C)      logits for this batch block
    gx_sc:    (T, B, 4H)  f32 scratch: precomputed input projections (reused)
    h1_sc:    (T, B, H)   f32 scratch: layer-1 hidden sequence
    """
    T, B, IN = x_ref.shape
    H = whh1_ref.shape[0]

    def cell(gx, h, c, whh):
        # gx already contains x_t @ Wih^T + (b_ih + b_hh).
        gates = gx + jnp.dot(h.astype(jnp.bfloat16), whh,
                             preferred_element_type=jnp.float32)     # (B, 4H)
        i_g = jax.nn.sigmoid(gates[:, 0 * H:1 * H])
        f_g = jax.nn.sigmoid(gates[:, 1 * H:2 * H])
        g_g = jnp.tanh(gates[:, 2 * H:3 * H])
        o_g = jax.nn.sigmoid(gates[:, 3 * H:4 * H])
        c_new = f_g * c + i_g * g_g
        h_new = o_g * jnp.tanh(c_new)
        return h_new, c_new

    # ---- layer 1: hoisted input projection (one big MXU matmul) -------------
    x_all = x_ref[...].reshape(T * B, IN).astype(jnp.bfloat16)
    gx1 = jnp.dot(x_all, wih1_ref[...],
                  preferred_element_type=jnp.float32) + b1_ref[...]
    gx_sc[...] = gx1.reshape(T, B, 4 * H)

    whh1 = whh1_ref[...]                       # hoisted weight load
    h = jnp.zeros((B, H), jnp.float32)
    c = jnp.zeros((B, H), jnp.float32)
    for t in range(T):                         # T static -> fully unrolled
        h, c = cell(gx_sc[t], h, c, whh1)
        h1_sc[t] = h                           # feeds layer 2

    # ---- layer 2: hoisted input projection over the layer-1 h sequence ------
    h1_all = h1_sc[...].reshape(T * B, H).astype(jnp.bfloat16)
    gx2 = jnp.dot(h1_all, wih2_ref[...],
                  preferred_element_type=jnp.float32) + b2_ref[...]
    gx_sc[...] = gx2.reshape(T, B, 4 * H)      # scratch reused

    whh2 = whh2_ref[...]
    h = jnp.zeros((B, H), jnp.float32)
    c = jnp.zeros((B, H), jnp.float32)
    for t in range(T):
        h, c = cell(gx_sc[t], h, c, whh2)      # no hseq write for last layer

    # ---- FC head on hn[-1] (final hidden state of last layer) ---------------
    out_ref[...] = (jnp.dot(h, fcw_ref[...], preferred_element_type=jnp.float32)
                    + fcb_ref[...]).astype(out_ref.dtype)


# ------------------------------------------------------------------ wrapper --

def lstm_classifier_forward(x, params, *, batch_block=8):
    """x: (batch, seq, input_size) — batch_first, like the PyTorch module."""
    assert len(params["lstm"]) == 2, "fused kernel implements num_layers=2"
    B, T, IN = x.shape
    l1, l2 = params["lstm"]
    H = l1["whh_t"].shape[0]
    C = params["fc_w_t"].shape[1]

    bb = min(batch_block, B)
    assert B % bb == 0

    # time-major for per-step leading-axis slicing inside the kernel
    x_tm = jnp.transpose(x, (1, 0, 2)).astype(jnp.float32)          # (T, B, IN)

    # bf16 matmul operands (f32 accumulation inside the kernel)
    wih1 = l1["wih_t"].astype(jnp.bfloat16)
    whh1 = l1["whh_t"].astype(jnp.bfloat16)
    wih2 = l2["wih_t"].astype(jnp.bfloat16)
    whh2 = l2["whh_t"].astype(jnp.bfloat16)

    full = lambda i: (0, 0)
    out = pl.pallas_call(
        lstm_classifier_kernel,
        out_shape=jax.ShapeDtypeStruct((B, C), jnp.float32),
        grid_spec=pltpu.PrefetchScalarGridSpec(
            num_scalar_prefetch=0,
            grid=(B // bb,),                                         # batch blocks
            in_specs=[
                pl.BlockSpec((T, bb, IN), lambda i: (0, i, 0)),      # x (time-major)
                pl.BlockSpec((IN, 4 * H), full),                     # wih1^T
                pl.BlockSpec((H, 4 * H), full),                      # whh1^T
                pl.BlockSpec((1, 4 * H), full),                      # b1
                pl.BlockSpec((H, 4 * H), full),                      # wih2^T
                pl.BlockSpec((H, 4 * H), full),                      # whh2^T
                pl.BlockSpec((1, 4 * H), full),                      # b2
                pl.BlockSpec((H, C), full),                          # fc_w^T
                pl.BlockSpec((1, C), full),                          # fc_b
            ],
            out_specs=pl.BlockSpec((bb, C), lambda i: (i, 0)),
            scratch_shapes=[
                pltpu.VMEM((T, bb, 4 * H), jnp.float32),             # gate proj
                pltpu.VMEM((T, bb, H), jnp.float32),                 # layer-1 hseq
            ],
        ),
        compiler_params=pltpu.CompilerParams(
            dimension_semantics=("parallel",),                       # megacore on v7x
        ),
    )(x_tm, wih1, whh1, l1["b"], wih2, whh2, l2["b"],
      params["fc_w_t"], params["fc_b"])

    return jnp.squeeze(out)                                          # matches out.squeeze()


# ------------------------------------------------------------ params / ref ---

def init_params(key, input_size, hidden_size, num_layers, num_classes):
    """Deterministic init mirroring torch's uniform(-1/sqrt(H), 1/sqrt(H))."""
    bound = 1.0 / np.sqrt(hidden_size)
    params = {"lstm": []}
    for layer in range(num_layers):
        in_sz = input_size if layer == 0 else hidden_size
        key, k1, k2, k3, k4 = jax.random.split(key, 5)
        w_ih = jax.random.uniform(k1, (4 * hidden_size, in_sz), jnp.float32, -bound, bound)
        w_hh = jax.random.uniform(k2, (4 * hidden_size, hidden_size), jnp.float32, -bound, bound)
        b_ih = jax.random.uniform(k3, (4 * hidden_size,), jnp.float32, -bound, bound)
        b_hh = jax.random.uniform(k4, (4 * hidden_size,), jnp.float32, -bound, bound)
        params["lstm"].append({
            "wih_t": w_ih.T,                                   # (IN, 4H)
            "whh_t": w_hh.T,                                   # (H, 4H)
            "b": (b_ih + b_hh).reshape(1, 4 * hidden_size),    # (1, 4H)
        })
    key, kf1, kf2 = jax.random.split(key, 3)
    fc_w = jax.random.uniform(kf1, (num_classes, hidden_size), jnp.float32, -bound, bound)
    fc_b = jax.random.uniform(kf2, (num_classes,), jnp.float32, -bound, bound)
    params["fc_w_t"] = fc_w.T                                  # (H, C)
    params["fc_b"] = fc_b.reshape(1, num_classes)              # (1, C)
    return params


def reference_forward(x, params):
    """Plain-JAX reference emulating the kernel's bf16-matmul / f32-state numerics."""
    B, T, _ = x.shape
    seq = x.astype(jnp.float32)
    h = None
    for layer in params["lstm"]:
        wih = layer["wih_t"].astype(jnp.bfloat16)
        whh = layer["whh_t"].astype(jnp.bfloat16)
        b = layer["b"]
        H = whh.shape[0]
        h = jnp.zeros((B, H), jnp.float32)
        c = jnp.zeros((B, H), jnp.float32)
        outs = []
        for t in range(T):
            x_t = seq[:, t, :]
            gates = (jnp.dot(x_t.astype(jnp.bfloat16), wih, preferred_element_type=jnp.float32)
                     + jnp.dot(h.astype(jnp.bfloat16), whh, preferred_element_type=jnp.float32)
                     + b)
            i = jax.nn.sigmoid(gates[:, 0 * H:1 * H])
            f = jax.nn.sigmoid(gates[:, 1 * H:2 * H])
            g = jnp.tanh(gates[:, 2 * H:3 * H])
            o = jax.nn.sigmoid(gates[:, 3 * H:4 * H])
            c = f * c + i * g
            h = o * jnp.tanh(c)
            outs.append(h)
        seq = jnp.stack(outs, axis=1)
    out = jnp.dot(h, params["fc_w_t"]) + params["fc_b"]
    return jnp.squeeze(out)


# --------------------------------------------------------------------- main --

if __name__ == "__main__":
    # Small, TPU-friendly shapes consistent with the module (defaults 2048/512):
    # hidden=128 keeps gate slices lane-aligned; batch=16 -> 2 parallel blocks.
    BATCH, SEQ = 16, 8
    INPUT_SIZE, HIDDEN_SIZE, NUM_LAYERS, NUM_CLASSES = 256, 128, 2, 1

    key = jax.random.PRNGKey(0)
    key, kx = jax.random.split(key)
    x = jax.random.normal(kx, (BATCH, SEQ, INPUT_SIZE), jnp.float32)

    params = init_params(key, INPUT_SIZE, HIDDEN_SIZE, NUM_LAYERS, NUM_CLASSES)

    forward = jax.jit(lstm_classifier_forward)
    out = jax.block_until_ready(forward(x, params))

    assert out.shape == (BATCH,), out.shape
    assert bool(jnp.all(jnp.isfinite(out)))

    ref = jax.block_until_ready(reference_forward(x, params))
    np.testing.assert_allclose(np.asarray(out), np.asarray(ref), atol=1e-2, rtol=1e-2)

    print("KERNEL_OK")
</pallas_src>

<mosaic_0001>
module attributes {stable_mosaic.version = 11 : i64} {
  func.func @lstm_classifier_kernel(%arg0: i32, %arg1: memref<8x8x256xf32, #tpu.memory_space<vmem>>, %arg2: memref<256x512xbf16, #tpu.memory_space<vmem>>, %arg3: memref<128x512xbf16, #tpu.memory_space<vmem>>, %arg4: memref<1x512xf32, #tpu.memory_space<vmem>>, %arg5: memref<128x512xbf16, #tpu.memory_space<vmem>>, %arg6: memref<128x512xbf16, #tpu.memory_space<vmem>>, %arg7: memref<1x512xf32, #tpu.memory_space<vmem>>, %arg8: memref<128x1xf32, #tpu.memory_space<vmem>>, %arg9: memref<1x1xf32, #tpu.memory_space<vmem>>, %arg10: memref<8x1xf32, #tpu.memory_space<vmem>>, %arg11: memref<8x8x512xf32, #tpu.memory_space<vmem>>, %arg12: memref<8x8x128xf32, #tpu.memory_space<vmem>>) attributes {dimension_semantics = [#tpu.dimension_semantics<parallel>], iteration_bounds = array<i64: 2>, scalar_prefetch = 0 : i64, scratch_operands = 2 : i64, tpu.core_type = #tpu.core_type<tc>, window_params = [{transform_indices = @transform_0, window_bounds = array<i64: 8, 8, 256>}, {pipeline_mode = #tpu.pipeline_mode<synchronous>, transform_indices = @transform_1, window_bounds = array<i64: 256, 512>}, {pipeline_mode = #tpu.pipeline_mode<synchronous>, transform_indices = @transform_2, window_bounds = array<i64: 128, 512>}, {pipeline_mode = #tpu.pipeline_mode<synchronous>, transform_indices = @transform_3, window_bounds = array<i64: 1, 512>}, {pipeline_mode = #tpu.pipeline_mode<synchronous>, transform_indices = @transform_4, window_bounds = array<i64: 128, 512>}, {pipeline_mode = #tpu.pipeline_mode<synchronous>, transform_indices = @transform_5, window_bounds = array<i64: 128, 512>}, {pipeline_mode = #tpu.pipeline_mode<synchronous>, transform_indices = @transform_6, window_bounds = array<i64: 1, 512>}, {pipeline_mode = #tpu.pipeline_mode<synchronous>, transform_indices = @transform_7, window_bounds = array<i64: 128, 1>}, {pipeline_mode = #tpu.pipeline_mode<synchronous>, transform_indices = @transform_8, window_bounds = array<i64: 1, 1>}, {transform_indices = @transform_9, window_bounds = array<i64: 8, 1>}]} {
    %c0 = arith.constant 0 : index
    %c0_0 = arith.constant 0 : index
    %c0_1 = arith.constant 0 : index
    %0 = vector.load %arg1[%c0, %c0_0, %c0_1] : memref<8x8x256xf32, #tpu.memory_space<vmem>>, vector<8x8x256xf32>
    %1 = vector.shape_cast %0 : vector<8x8x256xf32> to vector<64x256xf32>
    %2 = arith.truncf %1 : vector<64x256xf32> to vector<64x256xbf16>
    %c0_2 = arith.constant 0 : index
    %c0_3 = arith.constant 0 : index
    %3 = vector.load %arg2[%c0_2, %c0_3] : memref<256x512xbf16, #tpu.memory_space<vmem>>, vector<256x512xbf16>
    %cst = arith.constant dense<0.000000e+00> : vector<64x512xf32>
    %4 = tpu.matmul %2, %3, %cst {dimension_numbers = #tpu.dot_dimension_numbers<[1], [0], [0], [1], [0, 0, 1, 1], [], []>} : vector<64x256xbf16>, vector<256x512xbf16>, vector<64x512xf32> -> vector<64x512xf32>
    %c0_4 = arith.constant 0 : index
    %c0_5 = arith.constant 0 : index
    %5 = vector.load %arg4[%c0_4, %c0_5] : memref<1x512xf32, #tpu.memory_space<vmem>>, vector<1x512xf32>
    %6 = vector.broadcast %5 : vector<1x512xf32> to vector<64x512xf32>
    %7 = arith.addf %4, %6 : vector<64x512xf32>
    %8 = vector.shape_cast %7 : vector<64x512xf32> to vector<8x8x512xf32>
    %c0_6 = arith.constant 0 : index
    %c0_7 = arith.constant 0 : index
    %c0_8 = arith.constant 0 : index
    %9 = vector.load %arg11[%c0_6, %c0_7, %c0_8] : memref<8x8x512xf32, #tpu.memory_space<vmem>>, vector<8x8x512xf32>
    tpu.vector_store %arg11[%c0_6, %c0_7, %c0_8], %8 {strides = array<i32>} : memref<8x8x512xf32, #tpu.memory_space<vmem>>, vector<8x8x512xf32>,
    %c0_9 = arith.constant 0 : index
    %c0_10 = arith.constant 0 : index
    %10 = vector.load %arg3[%c0_9, %c0_10] : memref<128x512xbf16, #tpu.memory_space<vmem>>, vector<128x512xbf16>
    %cst_11 = arith.constant 0.000000e+00 : f32
    %11 = vector.broadcast %cst_11 : f32 to vector<8x128xf32>
    %cst_12 = arith.constant 0.000000e+00 : f32
    %12 = vector.broadcast %cst_12 : f32 to vector<8x128xf32>
    %c0_13 = arith.constant 0 : index
    %c0_14 = arith.constant 0 : index
    %c0_15 = arith.constant 0 : index
    %13 = vector.load %arg11[%c0_13, %c0_14, %c0_15] : memref<8x8x512xf32, #tpu.memory_space<vmem>>, vector<1x8x512xf32>
    %14 = vector.shape_cast %13 : vector<1x8x512xf32> to vector<8x512xf32>
    %15 = arith.truncf %11 : vector<8x128xf32> to vector<8x128xbf16>
    %cst_16 = arith.constant dense<0.000000e+00> : vector<8x512xf32>
    %16 = tpu.matmul %15, %10, %cst_16 {dimension_numbers = #tpu.dot_dimension_numbers<[1], [0], [0], [1], [0, 0, 1, 1], [], []>} : vector<8x128xbf16>, vector<128x512xbf16>, vector<8x512xf32> -> vector<8x512xf32>
    %17 = arith.addf %14, %16 : vector<8x512xf32>
    %18 = vector.extract_strided_slice %17 {offsets = [0, 0], sizes = [8, 128], strides = [1, 1]} : vector<8x512xf32> to vector<8x128xf32>
    %19 = arith.negf %18 : vector<8x128xf32>
    %20 = math.exp %19 : vector<8x128xf32>
    %cst_17 = arith.constant 1.000000e+00 : f32
    %21 = vector.broadcast %cst_17 : f32 to vector<8x128xf32>
    %22 = arith.addf %21, %20 : vector<8x128xf32>
    %23 = arith.divf %21, %22 : vector<8x128xf32>
    %24 = vector.extract_strided_slice %17 {offsets = [0, 128], sizes = [8, 128], strides = [1, 1]} : vector<8x512xf32> to vector<8x128xf32>
    %25 = arith.negf %24 : vector<8x128xf32>
    %26 = math.exp %25 : vector<8x128xf32>
    %cst_18 = arith.constant 1.000000e+00 : f32
    %27 = vector.broadcast %cst_18 : f32 to vector<8x128xf32>
    %28 = arith.addf %27, %26 : vector<8x128xf32>
    %29 = arith.divf %27, %28 : vector<8x128xf32>
    %30 = vector.extract_strided_slice %17 {offsets = [0, 256], sizes = [8, 128], strides = [1, 1]} : vector<8x512xf32> to vector<8x128xf32>
    %31 = math.tanh %30 : vector<8x128xf32>
    %32 = vector.extract_strided_slice %17 {offsets = [0, 384], sizes = [8, 128], strides = [1, 1]} : vector<8x512xf32> to vector<8x128xf32>
    %33 = arith.negf %32 : vector<8x128xf32>
    %34 = math.exp %33 : vector<8x128xf32>
    %cst_19 = arith.constant 1.000000e+00 : f32
    %35 = vector.broadcast %cst_19 : f32 to vector<8x128xf32>
    %36 = arith.addf %35, %34 : vector<8x128xf32>
    %37 = arith.divf %35, %36 : vector<8x128xf32>
    %38 = arith.mulf %29, %12 : vector<8x128xf32>
    %39 = arith.mulf %23, %31 : vector<8x128xf32>
    %40 = arith.addf %38, %39 : vector<8x128xf32>
    %41 = math.tanh %40 : vector<8x128xf32>
    %42 = arith.mulf %37, %41 : vector<8x128xf32>
    %c0_20 = arith.constant 0 : index
    %c0_21 = arith.constant 0 : index
    %c0_22 = arith.constant 0 : index
    %43 = vector.load %arg12[%c0_20, %c0_21, %c0_22] : memref<8x8x128xf32, #tpu.memory_space<vmem>>, vector<1x8x128xf32>
    %44 = vector.shape_cast %43 : vector<1x8x128xf32> to vector<8x128xf32>
    %45 = vector.shape_cast %42 : vector<8x128xf32> to vector<1x8x128xf32>
    tpu.vector_store %arg12[%c0_20, %c0_21, %c0_22], %45 {strides = array<i32>} : memref<8x8x128xf32, #tpu.memory_space<vmem>>, vector<1x8x128xf32>,
    %c1 = arith.constant 1 : index
    %c0_23 = arith.constant 0 : index
    %c0_24 = arith.constant 0 : index
    %46 = vector.load %arg11[%c1, %c0_23, %c0_24] : memref<8x8x512xf32, #tpu.memory_space<vmem>>, vector<1x8x512xf32>
    %47 = vector.shape_cast %46 : vector<1x8x512xf32> to vector<8x512xf32>
    %48 = arith.truncf %42 : vector<8x128xf32> to vector<8x128xbf16>
    %cst_25 = arith.constant dense<0.000000e+00> : vector<8x512xf32>
    %49 = tpu.matmul %48, %10, %cst_25 {dimension_numbers = #tpu.dot_dimension_numbers<[1], [0], [0], [1], [0, 0, 1, 1], [], []>} : vector<8x128xbf16>, vector<128x512xbf16>, vector<8x512xf32> -> vector<8x512xf32>
    %50 = arith.addf %47, %49 : vector<8x512xf32>
    %51 = vector.extract_strided_slice %50 {offsets = [0, 0], sizes = [8, 128], strides = [1, 1]} : vector<8x512xf32> to vector<8x128xf32>
    %52 = arith.negf %51 : vector<8x128xf32>
    %53 = math.exp %52 : vector<8x128xf32>
    %cst_26 = arith.constant 1.000000e+00 : f32
    %54 = vector.broadcast %cst_26 : f32 to vector<8x128xf32>
    %55 = arith.addf %54, %53 : vector<8x128xf32>
    %56 = arith.divf %54, %55 : vector<8x128xf32>
    %57 = vector.extract_strided_slice %50 {offsets = [0, 128], sizes = [8, 128], strides = [1, 1]} : vector<8x512xf32> to vector<8x128xf32>
    %58 = arith.negf %57 : vector<8x128xf32>
    %59 = math.exp %58 : vector<8x128xf32>
    %cst_27 = arith.constant 1.000000e+00 : f32
    %60 = vector.broadcast %cst_27 : f32 to vector<8x128xf32>
    %61 = arith.addf %60, %59 : vector<8x128xf32>
    %62 = arith.divf %60, %61 : vector<8x128xf32>
    %63 = vector.extract_strided_slice %50 {offsets = [0, 256], sizes = [8, 128], strides = [1, 1]} : vector<8x512xf32> to vector<8x128xf32>
    %64 = math.tanh %63 : vector<8x128xf32>
    %65 = vector.extract_strided_slice %50 {offsets = [0, 384], sizes = [8, 128], strides = [1, 1]} : vector<8x512xf32> to vector<8x128xf32>
    %66 = arith.negf %65 : vector<8x128xf32>
    %67 = math.exp %66 : vector<8x128xf32>
    %cst_28 = arith.constant 1.000000e+00 : f32
    %68 = vector.broadcast %cst_28 : f32 to vector<8x128xf32>
    %69 = arith.addf %68, %67 : vector<8x128xf32>
    %70 = arith.divf %68, %69 : vector<8x128xf32>
    %71 = arith.mulf %62, %40 : vector<8x128xf32>
    %72 = arith.mulf %56, %64 : vector<8x128xf32>
    %73 = arith.addf %71, %72 : vector<8x128xf32>
    %74 = math.tanh %73 : vector<8x128xf32>
    %75 = arith.mulf %70, %74 : vector<8x128xf32>
    %c1_29 = arith.constant 1 : index
    %c0_30 = arith.constant 0 : index
    %c0_31 = arith.constant 0 : index
    %76 = vector.load %arg12[%c1_29, %c0_30, %c0_31] : memref<8x8x128xf32, #tpu.memory_space<vmem>>, vector<1x8x128xf32>
    %77 = vector.shape_cast %76 : vector<1x8x128xf32> to vector<8x128xf32>
    %78 = vector.shape_cast %75 : vector<8x128xf32> to vector<1x8x128xf32>
    tpu.vector_store %arg12[%c1_29, %c0_30, %c0_31], %78 {strides = array<i32>} : memref<8x8x128xf32, #tpu.memory_space<vmem>>, vector<1x8x128xf32>,
    %c2 = arith.constant 2 : index
    %c0_32 = arith.constant 0 : index
    %c0_33 = arith.constant 0 : index
    %79 = vector.load %arg11[%c2, %c0_32, %c0_33] : memref<8x8x512xf32, #tpu.memory_space<vmem>>, vector<1x8x512xf32>
    %80 = vector.shape_cast %79 : vector<1x8x512xf32> to vector<8x512xf32>
    %81 = arith.truncf %75 : vector<8x128xf32> to vector<8x128xbf16>
    %cst_34 = arith.constant dense<0.000000e+00> : vector<8x512xf32>
    %82 = tpu.matmul %81, %10, %cst_34 {dimension_numbers = #tpu.dot_dimension_numbers<[1], [0], [0], [1], [0, 0, 1, 1], [], []>} : vector<8x128xbf16>, vector<128x512xbf16>, vector<8x512xf32> -> vector<8x512xf32>
    %83 = arith.addf %80, %82 : vector<8x512xf32>
    %84 = vector.extract_strided_slice %83 {offsets = [0, 0], sizes = [8, 128], strides = [1, 1]} : vector<8x512xf32> to vector<8x128xf32>
    %85 = arith.negf %84 : vector<8x128xf32>
    %86 = math.exp %85 : vector<8x128xf32>
    %cst_35 = arith.constant 1.000000e+00 : f32
    %87 = vector.broadcast %cst_35 : f32 to vector<8x128xf32>
    %88 = arith.addf %87, %86 : vector<8x128xf32>
    %89 = arith.divf %87, %88 : vector<8x128xf32>
    %90 = vector.extract_strided_slice %83 {offsets = [0, 128], sizes = [8, 128], strides = [1, 1]} : vector<8x512xf32> to vector<8x128xf32>
    %91 = arith.negf %90 : vector<8x128xf32>
    %92 = math.exp %91 : vector<8x128xf32>
    %cst_36 = arith.constant 1.000000e+00 : f32
    %93 = vector.broadcast %cst_36 : f32 to vector<8x128xf32>
    %94 = arith.addf %93, %92 : vector<8x128xf32>
    %95 = arith.divf %93, %94 : vector<8x128xf32>
    %96 = vector.extract_strided_slice %83 {offsets = [0, 256], sizes = [8, 128], strides = [1, 1]} : vector<8x512xf32> to vector<8x128xf32>
    %97 = math.tanh %96 : vector<8x128xf32>
    %98 = vector.extract_strided_slice %83 {offsets = [0, 384], sizes = [8, 128], strides = [1, 1]} : vector<8x512xf32> to vector<8x128xf32>
    %99 = arith.negf %98 : vector<8x128xf32>
    %100 = math.exp %99 : vector<8x128xf32>
    %cst_37 = arith.constant 1.000000e+00 : f32
    %101 = vector.broadcast %cst_37 : f32 to vector<8x128xf32>
    %102 = arith.addf %101, %100 : vector<8x128xf32>
    %103 = arith.divf %101, %102 : vector<8x128xf32>
    %104 = arith.mulf %95, %73 : vector<8x128xf32>
    %105 = arith.mulf %89, %97 : vector<8x128xf32>
    %106 = arith.addf %104, %105 : vector<8x128xf32>
    %107 = math.tanh %106 : vector<8x128xf32>
    %108 = arith.mulf %103, %107 : vector<8x128xf32>
    %c2_38 = arith.constant 2 : index
    %c0_39 = arith.constant 0 : index
    %c0_40 = arith.constant 0 : index
    %109 = vector.load %arg12[%c2_38, %c0_39, %c0_40] : memref<8x8x128xf32, #tpu.memory_space<vmem>>, vector<1x8x128xf32>
    %110 = vector.shape_cast %109 : vector<1x8x128xf32> to vector<8x128xf32>
    %111 = vector.shape_cast %108 : vector<8x128xf32> to vector<1x8x128xf32>
    tpu.vector_store %arg12[%c2_38, %c0_39, %c0_40], %111 {strides = array<i32>} : memref<8x8x128xf32, #tpu.memory_space<vmem>>, vector<1x8x128xf32>,
    %c3 = arith.constant 3 : index
    %c0_41 = arith.constant 0 : index
    %c0_42 = arith.constant 0 : index
    %112 = vector.load %arg11[%c3, %c0_41, %c0_42] : memref<8x8x512xf32, #tpu.memory_space<vmem>>, vector<1x8x512xf32>
    %113 = vector.shape_cast %112 : vector<1x8x512xf32> to vector<8x512xf32>
    %114 = arith.truncf %108 : vector<8x128xf32> to vector<8x128xbf16>
    %cst_43 = arith.constant dense<0.000000e+00> : vector<8x512xf32>
    %115 = tpu.matmul %114, %10, %cst_43 {dimension_numbers = #tpu.dot_dimension_numbers<[1], [0], [0], [1], [0, 0, 1, 1], [], []>} : vector<8x128xbf16>, vector<128x512xbf16>, vector<8x512xf32> -> vector<8x512xf32>
    %116 = arith.addf %113, %115 : vector<8x512xf32>
    %117 = vector.extract_strided_slice %116 {offsets = [0, 0], sizes = [8, 128], strides = [1, 1]} : vector<8x512xf32> to vector<8x128xf32>
    %118 = arith.negf %117 : vector<8x128xf32>
    %119 = math.exp %118 : vector<8x128xf32>
    %cst_44 = arith.constant 1.000000e+00 : f32
    %120 = vector.broadcast %cst_44 : f32 to vector<8x128xf32>
    %121 = arith.addf %120, %119 : vector<8x128xf32>
    %122 = arith.divf %120, %121 : vector<8x128xf32>
    %123 = vector.extract_strided_slice %116 {offsets = [0, 128], sizes = [8, 128], strides = [1, 1]} : vector<8x512xf32> to vector<8x128xf32>
    %124 = arith.negf %123 : vector<8x128xf32>
    %125 = math.exp %124 : vector<8x128xf32>
    %cst_45 = arith.constant 1.000000e+00 : f32
    %126 = vector.broadcast %cst_45 : f32 to vector<8x128xf32>
    %127 = arith.addf %126, %125 : vector<8x128xf32>
    %128 = arith.divf %126, %127 : vector<8x128xf32>
    %129 = vector.extract_strided_slice %116 {offsets = [0, 256], sizes = [8, 128], strides = [1, 1]} : vector<8x512xf32> to vector<8x128xf32>
    %130 = math.tanh %129 : vector<8x128xf32>
    %131 = vector.extract_strided_slice %116 {offsets = [0, 384], sizes = [8, 128], strides = [1, 1]} : vector<8x512xf32> to vector<8x128xf32>
    %132 = arith.negf %131 : vector<8x128xf32>
    %133 = math.exp %132 : vector<8x128xf32>
    %cst_46 = arith.constant 1.000000e+00 : f32
    %134 = vector.broadcast %cst_46 : f32 to vector<8x128xf32>
    %135 = arith.addf %134, %133 : vector<8x128xf32>
    %136 = arith.divf %134, %135 : vector<8x128xf32>
    %137 = arith.mulf %128, %106 : vector<8x128xf32>
    %138 = arith.mulf %122, %130 : vector<8x128xf32>
    %139 = arith.addf %137, %138 : vector<8x128xf32>
    %140 = math.tanh %139 : vector<8x128xf32>
    %141 = arith.mulf %136, %140 : vector<8x128xf32>
    %c3_47 = arith.constant 3 : index
    %c0_48 = arith.constant 0 : index
    %c0_49 = arith.constant 0 : index
    %142 = vector.load %arg12[%c3_47, %c0_48, %c0_49] : memref<8x8x128xf32, #tpu.memory_space<vmem>>, vector<1x8x128xf32>
    %143 = vector.shape_cast %142 : vector<1x8x128xf32> to vector<8x128xf32>
    %144 = vector.shape_cast %141 : vector<8x128xf32> to vector<1x8x128xf32>
    tpu.vector_store %arg12[%c3_47, %c0_48, %c0_49], %144 {strides = array<i32>} : memref<8x8x128xf32, #tpu.memory_space<vmem>>, vector<1x8x128xf32>,
    %c4 = arith.constant 4 : index
    %c0_50 = arith.constant 0 : index
    %c0_51 = arith.constant 0 : index
    %145 = vector.load %arg11[%c4, %c0_50, %c0_51] : memref<8x8x512xf32, #tpu.memory_space<vmem>>, vector<1x8x512xf32>
    %146 = vector.shape_cast %145 : vector<1x8x512xf32> to vector<8x512xf32>
    %147 = arith.truncf %141 : vector<8x128xf32> to vector<8x128xbf16>
    %cst_52 = arith.constant dense<0.000000e+00> : vector<8x512xf32>
    %148 = tpu.matmul %147, %10, %cst_52 {dimension_numbers = #tpu.dot_dimension_numbers<[1], [0], [0], [1], [0, 0, 1, 1], [], []>} : vector<8x128xbf16>, vector<128x512xbf16>, vector<8x512xf32> -> vector<8x512xf32>
    %149 = arith.addf %146, %148 : vector<8x512xf32>
    %150 = vector.extract_strided_slice %149 {offsets = [0, 0], sizes = [8, 128], strides = [1, 1]} : vector<8x512xf32> to vector<8x128xf32>
    %151 = arith.negf %150 : vector<8x128xf32>
    %152 = math.exp %151 : vector<8x128xf32>
    %cst_53 = arith.constant 1.000000e+00 : f32
    %153 = vector.broadcast %cst_53 : f32 to vector<8x128xf32>
    %154 = arith.addf %153, %152 : vector<8x128xf32>
    %155 = arith.divf %153, %154 : vector<8x128xf32>
    %156 = vector.extract_strided_slice %149 {offsets = [0, 128], sizes = [8, 128], strides = [1, 1]} : vector<8x512xf32> to vector<8x128xf32>
    %157 = arith.negf %156 : vector<8x128xf32>
    %158 = math.exp %157 : vector<8x128xf32>
    %cst_54 = arith.constant 1.000000e+00 : f32
    %159 = vector.broadcast %cst_54 : f32 to vector<8x128xf32>
    %160 = arith.addf %159, %158 : vector<8x128xf32>
    %161 = arith.divf %159, %160 : vector<8x128xf32>
    %162 = vector.extract_strided_slice %149 {offsets = [0, 256], sizes = [8, 128], strides = [1, 1]} : vector<8x512xf32> to vector<8x128xf32>
    %163 = math.tanh %162 : vector<8x128xf32>
    %164 = vector.extract_strided_slice %149 {offsets = [0, 384], sizes = [8, 128], strides = [1, 1]} : vector<8x512xf32> to vector<8x128xf32>
    %165 = arith.negf %164 : vector<8x128xf32>
    %166 = math.exp %165 : vector<8x128xf32>
    %cst_55 = arith.constant 1.000000e+00 : f32
    %167 = vector.broadcast %cst_55 : f32 to vector<8x128xf32>
    %168 = arith.addf %167, %166 : vector<8x128xf32>
    %169 = arith.divf %167, %168 : vector<8x128xf32>
    %170 = arith.mulf %161, %139 : vector<8x128xf32>
    %171 = arith.mulf %155, %163 : vector<8x128xf32>
    %172 = arith.addf %170, %171 : vector<8x128xf32>
    %173 = math.tanh %172 : vector<8x128xf32>
    %174 = arith.mulf %169, %173 : vector<8x128xf32>
    %c4_56 = arith.constant 4 : index
    %c0_57 = arith.constant 0 : index
    %c0_58 = arith.constant 0 : index
    %175 = vector.load %arg12[%c4_56, %c0_57, %c0_58] : memref<8x8x128xf32, #tpu.memory_space<vmem>>, vector<1x8x128xf32>
    %176 = vector.shape_cast %175 : vector<1x8x128xf32> to vector<8x128xf32>
    %177 = vector.shape_cast %174 : vector<8x128xf32> to vector<1x8x128xf32>
    tpu.vector_store %arg12[%c4_56, %c0_57, %c0_58], %177 {strides = array<i32>} : memref<8x8x128xf32, #tpu.memory_space<vmem>>, vector<1x8x128xf32>,
    %c5 = arith.constant 5 : index
    %c0_59 = arith.constant 0 : index
    %c0_60 = arith.constant 0 : index
    %178 = vector.load %arg11[%c5, %c0_59, %c0_60] : memref<8x8x512xf32, #tpu.memory_space<vmem>>, vector<1x8x512xf32>
    %179 = vector.shape_cast %178 : vector<1x8x512xf32> to vector<8x512xf32>
    %180 = arith.truncf %174 : vector<8x128xf32> to vector<8x128xbf16>
    %cst_61 = arith.constant dense<0.000000e+00> : vector<8x512xf32>
    %181 = tpu.matmul %180, %10, %cst_61 {dimension_numbers = #tpu.dot_dimension_numbers<[1], [0], [0], [1], [0, 0, 1, 1], [], []>} : vector<8x128xbf16>, vector<128x512xbf16>, vector<8x512xf32> -> vector<8x512xf32>
    %182 = arith.addf %179, %181 : vector<8x512xf32>
    %183 = vector.extract_strided_slice %182 {offsets = [0, 0], sizes = [8, 128], strides = [1, 1]} : vector<8x512xf32> to vector<8x128xf32>
    %184 = arith.negf %183 : vector<8x128xf32>
    %185 = math.exp %184 : vector<8x128xf32>
    %cst_62 = arith.constant 1.000000e+00 : f32
    %186 = vector.broadcast %cst_62 : f32 to vector<8x128xf32>
    %187 = arith.addf %186, %185 : vector<8x128xf32>
    %188 = arith.divf %186, %187 : vector<8x128xf32>
    %189 = vector.extract_strided_slice %182 {offsets = [0, 128], sizes = [8, 128], strides = [1, 1]} : vector<8x512xf32> to vector<8x128xf32>
    %190 = arith.negf %189 : vector<8x128xf32>
    %191 = math.exp %190 : vector<8x128xf32>
    %cst_63 = arith.constant 1.000000e+00 : f32
    %192 = vector.broadcast %cst_63 : f32 to vector<8x128xf32>
    %193 = arith.addf %192, %191 : vector<8x128xf32>
    %194 = arith.divf %192, %193 : vector<8x128xf32>
    %195 = vector.extract_strided_slice %182 {offsets = [0, 256], sizes = [8, 128], strides = [1, 1]} : vector<8x512xf32> to vector<8x128xf32>
    %196 = math.tanh %195 : vector<8x128xf32>
    %197 = vector.extract_strided_slice %182 {offsets = [0, 384], sizes = [8, 128], strides = [1, 1]} : vector<8x512xf32> to vector<8x128xf32>
    %198 = arith.negf %197 : vector<8x128xf32>
    %199 = math.exp %198 : vector<8x128xf32>
    %cst_64 = arith.constant 1.000000e+00 : f32
    %200 = vector.broadcast %cst_64 : f32 to vector<8x128xf32>
    %201 = arith.addf %200, %199 : vector<8x128xf32>
    %202 = arith.divf %200, %201 : vector<8x128xf32>
    %203 = arith.mulf %194, %172 : vector<8x128xf32>
    %204 = arith.mulf %188, %196 : vector<8x128xf32>
    %205 = arith.addf %203, %204 : vector<8x128xf32>
    %206 = math.tanh %205 : vector<8x128xf32>
    %207 = arith.mulf %202, %206 : vector<8x128xf32>
    %c5_65 = arith.constant 5 : index
    %c0_66 = arith.constant 0 : index
    %c0_67 = arith.constant 0 : index
    %208 = vector.load %arg12[%c5_65, %c0_66, %c0_67] : memref<8x8x128xf32, #tpu.memory_space<vmem>>, vector<1x8x128xf32>
    %209 = vector.shape_cast %208 : vector<1x8x128xf32> to vector<8x128xf32>
    %210 = vector.shape_cast %207 : vector<8x128xf32> to vector<1x8x128xf32>
    tpu.vector_store %arg12[%c5_65, %c0_66, %c0_67], %210 {strides = array<i32>} : memref<8x8x128xf32, #tpu.memory_space<vmem>>, vector<1x8x128xf32>,
    %c6 = arith.constant 6 : index
    %c0_68 = arith.constant 0 : index
    %c0_69 = arith.constant 0 : index
    %211 = vector.load %arg11[%c6, %c0_68, %c0_69] : memref<8x8x512xf32, #tpu.memory_space<vmem>>, vector<1x8x512xf32>
    %212 = vector.shape_cast %211 : vector<1x8x512xf32> to vector<8x512xf32>
    %213 = arith.truncf %207 : vector<8x128xf32> to vector<8x128xbf16>
    %cst_70 = arith.constant dense<0.000000e+00> : vector<8x512xf32>
    %214 = tpu.matmul %213, %10, %cst_70 {dimension_numbers = #tpu.dot_dimension_numbers<[1], [0], [0], [1], [0, 0, 1, 1], [], []>} : vector<8x128xbf16>, vector<128x512xbf16>, vector<8x512xf32> -> vector<8x512xf32>
    %215 = arith.addf %212, %214 : vector<8x512xf32>
    %216 = vector.extract_strided_slice %215 {offsets = [0, 0], sizes = [8, 128], strides = [1, 1]} : vector<8x512xf32> to vector<8x128xf32>
    %217 = arith.negf %216 : vector<8x128xf32>
    %218 = math.exp %217 : vector<8x128xf32>
    %cst_71 = arith.constant 1.000000e+00 : f32
    %219 = vector.broadcast %cst_71 : f32 to vector<8x128xf32>
    %220 = arith.addf %219, %218 : vector<8x128xf32>
    %221 = arith.divf %219, %220 : vector<8x128xf32>
    %222 = vector.extract_strided_slice %215 {offsets = [0, 128], sizes = [8, 128], strides = [1, 1]} : vector<8x512xf32> to vector<8x128xf32>
    %223 = arith.negf %222 : vector<8x128xf32>
    %224 = math.exp %223 : vector<8x128xf32>
    %cst_72 = arith.constant 1.000000e+00 : f32
    %225 = vector.broadcast %cst_72 : f32 to vector<8x128xf32>
    %226 = arith.addf %225, %224 : vector<8x128xf32>
    %227 = arith.divf %225, %226 : vector<8x128xf32>
    %228 = vector.extract_strided_slice %215 {offsets = [0, 256], sizes = [8, 128], strides = [1, 1]} : vector<8x512xf32> to vector<8x128xf32>
    %229 = math.tanh %228 : vector<8x128xf32>
    %230 = vector.extract_strided_slice %215 {offsets = [0, 384], sizes = [8, 128], strides = [1, 1]} : vector<8x512xf32> to vector<8x128xf32>
    %231 = arith.negf %230 : vector<8x128xf32>
    %232 = math.exp %231 : vector<8x128xf32>
    %cst_73 = arith.constant 1.000000e+00 : f32
    %233 = vector.broadcast %cst_73 : f32 to vector<8x128xf32>
    %234 = arith.addf %233, %232 : vector<8x128xf32>
    %235 = arith.divf %233, %234 : vector<8x128xf32>
    %236 = arith.mulf %227, %205 : vector<8x128xf32>
    %237 = arith.mulf %221, %229 : vector<8x128xf32>
    %238 = arith.addf %236, %237 : vector<8x128xf32>
    %239 = math.tanh %238 : vector<8x128xf32>
    %240 = arith.mulf %235, %239 : vector<8x128xf32>
    %c6_74 = arith.constant 6 : index
    %c0_75 = arith.constant 0 : index
    %c0_76 = arith.constant 0 : index
    %241 = vector.load %arg12[%c6_74, %c0_75, %c0_76] : memref<8x8x128xf32, #tpu.memory_space<vmem>>, vector<1x8x128xf32>
    %242 = vector.shape_cast %241 : vector<1x8x128xf32> to vector<8x128xf32>
    %243 = vector.shape_cast %240 : vector<8x128xf32> to vector<1x8x128xf32>
    tpu.vector_store %arg12[%c6_74, %c0_75, %c0_76], %243 {strides = array<i32>} : memref<8x8x128xf32, #tpu.memory_space<vmem>>, vector<1x8x128xf32>,
    %c7 = arith.constant 7 : index
    %c0_77 = arith.constant 0 : index
    %c0_78 = arith.constant 0 : index
    %244 = vector.load %arg11[%c7, %c0_77, %c0_78] : memref<8x8x512xf32, #tpu.memory_space<vmem>>, vector<1x8x512xf32>
    %245 = vector.shape_cast %244 : vector<1x8x512xf32> to vector<8x512xf32>
    %246 = arith.truncf %240 : vector<8x128xf32> to vector<8x128xbf16>
    %cst_79 = arith.constant dense<0.000000e+00> : vector<8x512xf32>
    %247 = tpu.matmul %246, %10, %cst_79 {dimension_numbers = #tpu.dot_dimension_numbers<[1], [0], [0], [1], [0, 0, 1, 1], [], []>} : vector<8x128xbf16>, vector<128x512xbf16>, vector<8x512xf32> -> vector<8x512xf32>
    %248 = arith.addf %245, %247 : vector<8x512xf32>
    %249 = vector.extract_strided_slice %248 {offsets = [0, 0], sizes = [8, 128], strides = [1, 1]} : vector<8x512xf32> to vector<8x128xf32>
    %250 = arith.negf %249 : vector<8x128xf32>
    %251 = math.exp %250 : vector<8x128xf32>
    %cst_80 = arith.constant 1.000000e+00 : f32
    %252 = vector.broadcast %cst_80 : f32 to vector<8x128xf32>
    %253 = arith.addf %252, %251 : vector<8x128xf32>
    %254 = arith.divf %252, %253 : vector<8x128xf32>
    %255 = vector.extract_strided_slice %248 {offsets = [0, 128], sizes = [8, 128], strides = [1, 1]} : vector<8x512xf32> to vector<8x128xf32>
    %256 = arith.negf %255 : vector<8x128xf32>
    %257 = math.exp %256 : vector<8x128xf32>
    %cst_81 = arith.constant 1.000000e+00 : f32
    %258 = vector.broadcast %cst_81 : f32 to vector<8x128xf32>
    %259 = arith.addf %258, %257 : vector<8x128xf32>
    %260 = arith.divf %258, %259 : vector<8x128xf32>
    %261 = vector.extract_strided_slice %248 {offsets = [0, 256], sizes = [8, 128], strides = [1, 1]} : vector<8x512xf32> to vector<8x128xf32>
    %262 = math.tanh %261 : vector<8x128xf32>
    %263 = vector.extract_strided_slice %248 {offsets = [0, 384], sizes = [8, 128], strides = [1, 1]} : vector<8x512xf32> to vector<8x128xf32>
    %264 = arith.negf %263 : vector<8x128xf32>
    %265 = math.exp %264 : vector<8x128xf32>
    %cst_82 = arith.constant 1.000000e+00 : f32
    %266 = vector.broadcast %cst_82 : f32 to vector<8x128xf32>
    %267 = arith.addf %266, %265 : vector<8x128xf32>
    %268 = arith.divf %266, %267 : vector<8x128xf32>
    %269 = arith.mulf %260, %238 : vector<8x128xf32>
    %270 = arith.mulf %254, %262 : vector<8x128xf32>
    %271 = arith.addf %269, %270 : vector<8x128xf32>
    %272 = math.tanh %271 : vector<8x128xf32>
    %273 = arith.mulf %268, %272 : vector<8x128xf32>
    %c7_83 = arith.constant 7 : index
    %c0_84 = arith.constant 0 : index
    %c0_85 = arith.constant 0 : index
    %274 = vector.load %arg12[%c7_83, %c0_84, %c0_85] : memref<8x8x128xf32, #tpu.memory_space<vmem>>, vector<1x8x128xf32>
    %275 = vector.shape_cast %274 : vector<1x8x128xf32> to vector<8x128xf32>
    %276 = vector.shape_cast %273 : vector<8x128xf32> to vector<1x8x128xf32>
    tpu.vector_store %arg12[%c7_83, %c0_84, %c0_85], %276 {strides = array<i32>} : memref<8x8x128xf32, #tpu.memory_space<vmem>>, vector<1x8x128xf32>,
    %c0_86 = arith.constant 0 : index
    %c0_87 = arith.constant 0 : index
    %c0_88 = arith.constant 0 : index
    %277 = vector.load %arg12[%c0_86, %c0_87, %c0_88] : memref<8x8x128xf32, #tpu.memory_space<vmem>>, vector<8x8x128xf32>
    %278 = vector.shape_cast %277 : vector<8x8x128xf32> to vector<64x128xf32>
    %279 = arith.truncf %278 : vector<64x128xf32> to vector<64x128xbf16>
    %c0_89 = arith.constant 0 : index
    %c0_90 = arith.constant 0 : index
    %280 = vector.load %arg5[%c0_89, %c0_90] : memref<128x512xbf16, #tpu.memory_space<vmem>>, vector<128x512xbf16>
    %cst_91 = arith.constant dense<0.000000e+00> : vector<64x512xf32>
    %281 = tpu.matmul %279, %280, %cst_91 {dimension_numbers = #tpu.dot_dimension_numbers<[1], [0], [0], [1], [0, 0, 1, 1], [], []>} : vector<64x128xbf16>, vector<128x512xbf16>, vector<64x512xf32> -> vector<64x512xf32>
    %c0_92 = arith.constant 0 : index
    %c0_93 = arith.constant 0 : index
    %282 = vector.load %arg7[%c0_92, %c0_93] : memref<1x512xf32, #tpu.memory_space<vmem>>, vector<1x512xf32>
    %283 = vector.broadcast %282 : vector<1x512xf32> to vector<64x512xf32>
    %284 = arith.addf %281, %283 : vector<64x512xf32>
    %285 = vector.shape_cast %284 : vector<64x512xf32> to vector<8x8x512xf32>
    %c0_94 = arith.constant 0 : index
    %c0_95 = arith.constant 0 : index
    %c0_96 = arith.constant 0 : index
    %286 = vector.load %arg11[%c0_94, %c0_95, %c0_96] : memref<8x8x512xf32, #tpu.memory_space<vmem>>, vector<8x8x512xf32>
    tpu.vector_store %arg11[%c0_94, %c0_95, %c0_96], %285 {strides = array<i32>} : memref<8x8x512xf32, #tpu.memory_space<vmem>>, vector<8x8x512xf32>,
    %c0_97 = arith.constant 0 : index
    %c0_98 = arith.constant 0 : index
    %287 = vector.load %arg6[%c0_97, %c0_98] : memref<128x512xbf16, #tpu.memory_space<vmem>>, vector<128x512xbf16>
    %cst_99 = arith.constant 0.000000e+00 : f32
    %288 = vector.broadcast %cst_99 : f32 to vector<8x128xf32>
    %cst_100 = arith.constant 0.000000e+00 : f32
    %289 = vector.broadcast %cst_100 : f32 to vector<8x128xf32>
    %c0_101 = arith.constant 0 : index
    %c0_102 = arith.constant 0 : index
    %c0_103 = arith.constant 0 : index
    %290 = vector.load %arg11[%c0_101, %c0_102, %c0_103] : memref<8x8x512xf32, #tpu.memory_space<vmem>>, vector<1x8x512xf32>
    %291 = vector.shape_cast %290 : vector<1x8x512xf32> to vector<8x512xf32>
    %292 = arith.truncf %288 : vector<8x128xf32> to vector<8x128xbf16>
    %cst_104 = arith.constant dense<0.000000e+00> : vector<8x512xf32>
    %293 = tpu.matmul %292, %287, %cst_104 {dimension_numbers = #tpu.dot_dimension_numbers<[1], [0], [0], [1], [0, 0, 1, 1], [], []>} : vector<8x128xbf16>, vector<128x512xbf16>, vector<8x512xf32> -> vector<8x512xf32>
    %294 = arith.addf %291, %293 : vector<8x512xf32>
    %295 = vector.extract_strided_slice %294 {offsets = [0, 0], sizes = [8, 128], strides = [1, 1]} : vector<8x512xf32> to vector<8x128xf32>
    %296 = arith.negf %295 : vector<8x128xf32>
    %297 = math.exp %296 : vector<8x128xf32>
    %cst_105 = arith.constant 1.000000e+00 : f32
    %298 = vector.broadcast %cst_105 : f32 to vector<8x128xf32>
    %299 = arith.addf %298, %297 : vector<8x128xf32>
    %300 = arith.divf %298, %299 : vector<8x128xf32>
    %301 = vector.extract_strided_slice %294 {offsets = [0, 128], sizes = [8, 128], strides = [1, 1]} : vector<8x512xf32> to vector<8x128xf32>
    %302 = arith.negf %301 : vector<8x128xf32>
    %303 = math.exp %302 : vector<8x128xf32>
    %cst_106 = arith.constant 1.000000e+00 : f32
    %304 = vector.broadcast %cst_106 : f32 to vector<8x128xf32>
    %305 = arith.addf %304, %303 : vector<8x128xf32>
    %306 = arith.divf %304, %305 : vector<8x128xf32>
    %307 = vector.extract_strided_slice %294 {offsets = [0, 256], sizes = [8, 128], strides = [1, 1]} : vector<8x512xf32> to vector<8x128xf32>
    %308 = math.tanh %307 : vector<8x128xf32>
    %309 = vector.extract_strided_slice %294 {offsets = [0, 384], sizes = [8, 128], strides = [1, 1]} : vector<8x512xf32> to vector<8x128xf32>
    %310 = arith.negf %309 : vector<8x128xf32>
    %311 = math.exp %310 : vector<8x128xf32>
    %cst_107 = arith.constant 1.000000e+00 : f32
    %312 = vector.broadcast %cst_107 : f32 to vector<8x128xf32>
    %313 = arith.addf %312, %311 : vector<8x128xf32>
    %314 = arith.divf %312, %313 : vector<8x128xf32>
    %315 = arith.mulf %306, %289 : vector<8x128xf32>
    %316 = arith.mulf %300, %308 : vector<8x128xf32>
    %317 = arith.addf %315, %316 : vector<8x128xf32>
    %318 = math.tanh %317 : vector<8x128xf32>
    %319 = arith.mulf %314, %318 : vector<8x128xf32>
    %c1_108 = arith.constant 1 : index
    %c0_109 = arith.constant 0 : index
    %c0_110 = arith.constant 0 : index
    %320 = vector.load %arg11[%c1_108, %c0_109, %c0_110] : memref<8x8x512xf32, #tpu.memory_space<vmem>>, vector<1x8x512xf32>
    %321 = vector.shape_cast %320 : vector<1x8x512xf32> to vector<8x512xf32>
    %322 = arith.truncf %319 : vector<8x128xf32> to vector<8x128xbf16>
    %cst_111 = arith.constant dense<0.000000e+00> : vector<8x512xf32>
    %323 = tpu.matmul %322, %287, %cst_111 {dimension_numbers = #tpu.dot_dimension_numbers<[1], [0], [0], [1], [0, 0, 1, 1], [], []>} : vector<8x128xbf16>, vector<128x512xbf16>, vector<8x512xf32> -> vector<8x512xf32>
    %324 = arith.addf %321, %323 : vector<8x512xf32>
    %325 = vector.extract_strided_slice %324 {offsets = [0, 0], sizes = [8, 128], strides = [1, 1]} : vector<8x512xf32> to vector<8x128xf32>
    %326 = arith.negf %325 : vector<8x128xf32>
    %327 = math.exp %326 : vector<8x128xf32>
    %cst_112 = arith.constant 1.000000e+00 : f32
    %328 = vector.broadcast %cst_112 : f32 to vector<8x128xf32>
    %329 = arith.addf %328, %327 : vector<8x128xf32>
    %330 = arith.divf %328, %329 : vector<8x128xf32>
    %331 = vector.extract_strided_slice %324 {offsets = [0, 128], sizes = [8, 128], strides = [1, 1]} : vector<8x512xf32> to vector<8x128xf32>
    %332 = arith.negf %331 : vector<8x128xf32>
    %333 = math.exp %332 : vector<8x128xf32>
    %cst_113 = arith.constant 1.000000e+00 : f32
    %334 = vector.broadcast %cst_113 : f32 to vector<8x128xf32>
    %335 = arith.addf %334, %333 : vector<8x128xf32>
    %336 = arith.divf %334, %335 : vector<8x128xf32>
    %337 = vector.extract_strided_slice %324 {offsets = [0, 256], sizes = [8, 128], strides = [1, 1]} : vector<8x512xf32> to vector<8x128xf32>
    %338 = math.tanh %337 : vector<8x128xf32>
    %339 = vector.extract_strided_slice %324 {offsets = [0, 384], sizes = [8, 128], strides = [1, 1]} : vector<8x512xf32> to vector<8x128xf32>
    %340 = arith.negf %339 : vector<8x128xf32>
    %341 = math.exp %340 : vector<8x128xf32>
    %cst_114 = arith.constant 1.000000e+00 : f32
    %342 = vector.broadcast %cst_114 : f32 to vector<8x128xf32>
    %343 = arith.addf %342, %341 : vector<8x128xf32>
    %344 = arith.divf %342, %343 : vector<8x128xf32>
    %345 = arith.mulf %336, %317 : vector<8x128xf32>
    %346 = arith.mulf %330, %338 : vector<8x128xf32>
    %347 = arith.addf %345, %346 : vector<8x128xf32>
    %348 = math.tanh %347 : vector<8x128xf32>
    %349 = arith.mulf %344, %348 : vector<8x128xf32>
    %c2_115 = arith.constant 2 : index
    %c0_116 = arith.constant 0 : index
    %c0_117 = arith.constant 0 : index
    %350 = vector.load %arg11[%c2_115, %c0_116, %c0_117] : memref<8x8x512xf32, #tpu.memory_space<vmem>>, vector<1x8x512xf32>
    %351 = vector.shape_cast %350 : vector<1x8x512xf32> to vector<8x512xf32>
    %352 = arith.truncf %349 : vector<8x128xf32> to vector<8x128xbf16>
    %cst_118 = arith.constant dense<0.000000e+00> : vector<8x512xf32>
    %353 = tpu.matmul %352, %287, %cst_118 {dimension_numbers = #tpu.dot_dimension_numbers<[1], [0], [0], [1], [0, 0, 1, 1], [], []>} : vector<8x128xbf16>, vector<128x512xbf16>, vector<8x512xf32> -> vector<8x512xf32>
    %354 = arith.addf %351, %353 : vector<8x512xf32>
    %355 = vector.extract_strided_slice %354 {offsets = [0, 0], sizes = [8, 128], strides = [1, 1]} : vector<8x512xf32> to vector<8x128xf32>
    %356 = arith.negf %355 : vector<8x128xf32>
    %357 = math.exp %356 : vector<8x128xf32>
    %cst_119 = arith.constant 1.000000e+00 : f32
    %358 = vector.broadcast %cst_119 : f32 to vector<8x128xf32>
    %359 = arith.addf %358, %357 : vector<8x128xf32>
    %360 = arith.divf %358, %359 : vector<8x128xf32>
    %361 = vector.extract_strided_slice %354 {offsets = [0, 128], sizes = [8, 128], strides = [1, 1]} : vector<8x512xf32> to vector<8x128xf32>
    %362 = arith.negf %361 : vector<8x128xf32>
    %363 = math.exp %362 : vector<8x128xf32>
    %cst_120 = arith.constant 1.000000e+00 : f32
    %364 = vector.broadcast %cst_120 : f32 to vector<8x128xf32>
    %365 = arith.addf %364, %363 : vector<8x128xf32>
    %366 = arith.divf %364, %365 : vector<8x128xf32>
    %367 = vector.extract_strided_slice %354 {offsets = [0, 256], sizes = [8, 128], strides = [1, 1]} : vector<8x512xf32> to vector<8x128xf32>
    %368 = math.tanh %367 : vector<8x128xf32>
    %369 = vector.extract_strided_slice %354 {offsets = [0, 384], sizes = [8, 128], strides = [1, 1]} : vector<8x512xf32> to vector<8x128xf32>
    %370 = arith.negf %369 : vector<8x128xf32>
    %371 = math.exp %370 : vector<8x128xf32>
    %cst_121 = arith.constant 1.000000e+00 : f32
    %372 = vector.broadcast %cst_121 : f32 to vector<8x128xf32>
    %373 = arith.addf %372, %371 : vector<8x128xf32>
    %374 = arith.divf %372, %373 : vector<8x128xf32>
    %375 = arith.mulf %366, %347 : vector<8x128xf32>
    %376 = arith.mulf %360, %368 : vector<8x128xf32>
    %377 = arith.addf %375, %376 : vector<8x128xf32>
    %378 = math.tanh %377 : vector<8x128xf32>
    %379 = arith.mulf %374, %378 : vector<8x128xf32>
    %c3_122 = arith.constant 3 : index
    %c0_123 = arith.constant 0 : index
    %c0_124 = arith.constant 0 : index
    %380 = vector.load %arg11[%c3_122, %c0_123, %c0_124] : memref<8x8x512xf32, #tpu.memory_space<vmem>>, vector<1x8x512xf32>
    %381 = vector.shape_cast %380 : vector<1x8x512xf32> to vector<8x512xf32>
    %382 = arith.truncf %379 : vector<8x128xf32> to vector<8x128xbf16>
    %cst_125 = arith.constant dense<0.000000e+00> : vector<8x512xf32>
    %383 = tpu.matmul %382, %287, %cst_125 {dimension_numbers = #tpu.dot_dimension_numbers<[1], [0], [0], [1], [0, 0, 1, 1], [], []>} : vector<8x128xbf16>, vector<128x512xbf16>, vector<8x512xf32> -> vector<8x512xf32>
    %384 = arith.addf %381, %383 : vector<8x512xf32>
    %385 = vector.extract_strided_slice %384 {offsets = [0, 0], sizes = [8, 128], strides = [1, 1]} : vector<8x512xf32> to vector<8x128xf32>
    %386 = arith.negf %385 : vector<8x128xf32>
    %387 = math.exp %386 : vector<8x128xf32>
    %cst_126 = arith.constant 1.000000e+00 : f32
    %388 = vector.broadcast %cst_126 : f32 to vector<8x128xf32>
    %389 = arith.addf %388, %387 : vector<8x128xf32>
    %390 = arith.divf %388, %389 : vector<8x128xf32>
    %391 = vector.extract_strided_slice %384 {offsets = [0, 128], sizes = [8, 128], strides = [1, 1]} : vector<8x512xf32> to vector<8x128xf32>
    %392 = arith.negf %391 : vector<8x128xf32>
    %393 = math.exp %392 : vector<8x128xf32>
    %cst_127 = arith.constant 1.000000e+00 : f32
    %394 = vector.broadcast %cst_127 : f32 to vector<8x128xf32>
    %395 = arith.addf %394, %393 : vector<8x128xf32>
    %396 = arith.divf %394, %395 : vector<8x128xf32>
    %397 = vector.extract_strided_slice %384 {offsets = [0, 256], sizes = [8, 128], strides = [1, 1]} : vector<8x512xf32> to vector<8x128xf32>
    %398 = math.tanh %397 : vector<8x128xf32>
    %399 = vector.extract_strided_slice %384 {offsets = [0, 384], sizes = [8, 128], strides = [1, 1]} : vector<8x512xf32> to vector<8x128xf32>
    %400 = arith.negf %399 : vector<8x128xf32>
    %401 = math.exp %400 : vector<8x128xf32>
    %cst_128 = arith.constant 1.000000e+00 : f32
    %402 = vector.broadcast %cst_128 : f32 to vector<8x128xf32>
    %403 = arith.addf %402, %401 : vector<8x128xf32>
    %404 = arith.divf %402, %403 : vector<8x128xf32>
    %405 = arith.mulf %396, %377 : vector<8x128xf32>
    %406 = arith.mulf %390, %398 : vector<8x128xf32>
    %407 = arith.addf %405, %406 : vector<8x128xf32>
    %408 = math.tanh %407 : vector<8x128xf32>
    %409 = arith.mulf %404, %408 : vector<8x128xf32>
    %c4_129 = arith.constant 4 : index
    %c0_130 = arith.constant 0 : index
    %c0_131 = arith.constant 0 : index
    %410 = vector.load %arg11[%c4_129, %c0_130, %c0_131] : memref<8x8x512xf32, #tpu.memory_space<vmem>>, vector<1x8x512xf32>
    %411 = vector.shape_cast %410 : vector<1x8x512xf32> to vector<8x512xf32>
    %412 = arith.truncf %409 : vector<8x128xf32> to vector<8x128xbf16>
    %cst_132 = arith.constant dense<0.000000e+00> : vector<8x512xf32>
    %413 = tpu.matmul %412, %287, %cst_132 {dimension_numbers = #tpu.dot_dimension_numbers<[1], [0], [0], [1], [0, 0, 1, 1], [], []>} : vector<8x128xbf16>, vector<128x512xbf16>, vector<8x512xf32> -> vector<8x512xf32>
    %414 = arith.addf %411, %413 : vector<8x512xf32>
    %415 = vector.extract_strided_slice %414 {offsets = [0, 0], sizes = [8, 128], strides = [1, 1]} : vector<8x512xf32> to vector<8x128xf32>
    %416 = arith.negf %415 : vector<8x128xf32>
    %417 = math.exp %416 : vector<8x128xf32>
    %cst_133 = arith.constant 1.000000e+00 : f32
    %418 = vector.broadcast %cst_133 : f32 to vector<8x128xf32>
    %419 = arith.addf %418, %417 : vector<8x128xf32>
    %420 = arith.divf %418, %419 : vector<8x128xf32>
    %421 = vector.extract_strided_slice %414 {offsets = [0, 128], sizes = [8, 128], strides = [1, 1]} : vector<8x512xf32> to vector<8x128xf32>
    %422 = arith.negf %421 : vector<8x128xf32>
    %423 = math.exp %422 : vector<8x128xf32>
    %cst_134 = arith.constant 1.000000e+00 : f32
    %424 = vector.broadcast %cst_134 : f32 to vector<8x128xf32>
    %425 = arith.addf %424, %423 : vector<8x128xf32>
    %426 = arith.divf %424, %425 : vector<8x128xf32>
    %427 = vector.extract_strided_slice %414 {offsets = [0, 256], sizes = [8, 128], strides = [1, 1]} : vector<8x512xf32> to vector<8x128xf32>
    %428 = math.tanh %427 : vector<8x128xf32>
    %429 = vector.extract_strided_slice %414 {offsets = [0, 384], sizes = [8, 128], strides = [1, 1]} : vector<8x512xf32> to vector<8x128xf32>
    %430 = arith.negf %429 : vector<8x128xf32>
    %431 = math.exp %430 : vector<8x128xf32>
    %cst_135 = arith.constant 1.000000e+00 : f32
    %432 = vector.broadcast %cst_135 : f32 to vector<8x128xf32>
    %433 = arith.addf %432, %431 : vector<8x128xf32>
    %434 = arith.divf %432, %433 : vector<8x128xf32>
    %435 = arith.mulf %426, %407 : vector<8x128xf32>
    %436 = arith.mulf %420, %428 : vector<8x128xf32>
    %437 = arith.addf %435, %436 : vector<8x128xf32>
    %438 = math.tanh %437 : vector<8x128xf32>
    %439 = arith.mulf %434, %438 : vector<8x128xf32>
    %c5_136 = arith.constant 5 : index
    %c0_137 = arith.constant 0 : index
    %c0_138 = arith.constant 0 : index
    %440 = vector.load %arg11[%c5_136, %c0_137, %c0_138] : memref<8x8x512xf32, #tpu.memory_space<vmem>>, vector<1x8x512xf32>
    %441 = vector.shape_cast %440 : vector<1x8x512xf32> to vector<8x512xf32>
    %442 = arith.truncf %439 : vector<8x128xf32> to vector<8x128xbf16>
    %cst_139 = arith.constant dense<0.000000e+00> : vector<8x512xf32>
    %443 = tpu.matmul %442, %287, %cst_139 {dimension_numbers = #tpu.dot_dimension_numbers<[1], [0], [0], [1], [0, 0, 1, 1], [], []>} : vector<8x128xbf16>, vector<128x512xbf16>, vector<8x512xf32> -> vector<8x512xf32>
    %444 = arith.addf %441, %443 : vector<8x512xf32>
    %445 = vector.extract_strided_slice %444 {offsets = [0, 0], sizes = [8, 128], strides = [1, 1]} : vector<8x512xf32> to vector<8x128xf32>
    %446 = arith.negf %445 : vector<8x128xf32>
    %447 = math.exp %446 : vector<8x128xf32>
    %cst_140 = arith.constant 1.000000e+00 : f32
    %448 = vector.broadcast %cst_140 : f32 to vector<8x128xf32>
    %449 = arith.addf %448, %447 : vector<8x128xf32>
    %450 = arith.divf %448, %449 : vector<8x128xf32>
    %451 = vector.extract_strided_slice %444 {offsets = [0, 128], sizes = [8, 128], strides = [1, 1]} : vector<8x512xf32> to vector<8x128xf32>
    %452 = arith.negf %451 : vector<8x128xf32>
    %453 = math.exp %452 : vector<8x128xf32>
    %cst_141 = arith.constant 1.000000e+00 : f32
    %454 = vector.broadcast %cst_141 : f32 to vector<8x128xf32>
    %455 = arith.addf %454, %453 : vector<8x128xf32>
    %456 = arith.divf %454, %455 : vector<8x128xf32>
    %457 = vector.extract_strided_slice %444 {offsets = [0, 256], sizes = [8, 128], strides = [1, 1]} : vector<8x512xf32> to vector<8x128xf32>
    %458 = math.tanh %457 : vector<8x128xf32>
    %459 = vector.extract_strided_slice %444 {offsets = [0, 384], sizes = [8, 128], strides = [1, 1]} : vector<8x512xf32> to vector<8x128xf32>
    %460 = arith.negf %459 : vector<8x128xf32>
    %461 = math.exp %460 : vector<8x128xf32>
    %cst_142 = arith.constant 1.000000e+00 : f32
    %462 = vector.broadcast %cst_142 : f32 to vector<8x128xf32>
    %463 = arith.addf %462, %461 : vector<8x128xf32>
    %464 = arith.divf %462, %463 : vector<8x128xf32>
    %465 = arith.mulf %456, %437 : vector<8x128xf32>
    %466 = arith.mulf %450, %458 : vector<8x128xf32>
    %467 = arith.addf %465, %466 : vector<8x128xf32>
    %468 = math.tanh %467 : vector<8x128xf32>
    %469 = arith.mulf %464, %468 : vector<8x128xf32>
    %c6_143 = arith.constant 6 : index
    %c0_144 = arith.constant 0 : index
    %c0_145 = arith.constant 0 : index
    %470 = vector.load %arg11[%c6_143, %c0_144, %c0_145] : memref<8x8x512xf32, #tpu.memory_space<vmem>>, vector<1x8x512xf32>
    %471 = vector.shape_cast %470 : vector<1x8x512xf32> to vector<8x512xf32>
    %472 = arith.truncf %469 : vector<8x128xf32> to vector<8x128xbf16>
    %cst_146 = arith.constant dense<0.000000e+00> : vector<8x512xf32>
    %473 = tpu.matmul %472, %287, %cst_146 {dimension_numbers = #tpu.dot_dimension_numbers<[1], [0], [0], [1], [0, 0, 1, 1], [], []>} : vector<8x128xbf16>, vector<128x512xbf16>, vector<8x512xf32> -> vector<8x512xf32>
    %474 = arith.addf %471, %473 : vector<8x512xf32>
    %475 = vector.extract_strided_slice %474 {offsets = [0, 0], sizes = [8, 128], strides = [1, 1]} : vector<8x512xf32> to vector<8x128xf32>
    %476 = arith.negf %475 : vector<8x128xf32>
    %477 = math.exp %476 : vector<8x128xf32>
    %cst_147 = arith.constant 1.000000e+00 : f32
    %478 = vector.broadcast %cst_147 : f32 to vector<8x128xf32>
    %479 = arith.addf %478, %477 : vector<8x128xf32>
    %480 = arith.divf %478, %479 : vector<8x128xf32>
    %481 = vector.extract_strided_slice %474 {offsets = [0, 128], sizes = [8, 128], strides = [1, 1]} : vector<8x512xf32> to vector<8x128xf32>
    %482 = arith.negf %481 : vector<8x128xf32>
    %483 = math.exp %482 : vector<8x128xf32>
    %cst_148 = arith.constant 1.000000e+00 : f32
    %484 = vector.broadcast %cst_148 : f32 to vector<8x128xf32>
    %485 = arith.addf %484, %483 : vector<8x128xf32>
    %486 = arith.divf %484, %485 : vector<8x128xf32>
    %487 = vector.extract_strided_slice %474 {offsets = [0, 256], sizes = [8, 128], strides = [1, 1]} : vector<8x512xf32> to vector<8x128xf32>
    %488 = math.tanh %487 : vector<8x128xf32>
    %489 = vector.extract_strided_slice %474 {offsets = [0, 384], sizes = [8, 128], strides = [1, 1]} : vector<8x512xf32> to vector<8x128xf32>
    %490 = arith.negf %489 : vector<8x128xf32>
    %491 = math.exp %490 : vector<8x128xf32>
    %cst_149 = arith.constant 1.000000e+00 : f32
    %492 = vector.broadcast %cst_149 : f32 to vector<8x128xf32>
    %493 = arith.addf %492, %491 : vector<8x128xf32>
    %494 = arith.divf %492, %493 : vector<8x128xf32>
    %495 = arith.mulf %486, %467 : vector<8x128xf32>
    %496 = arith.mulf %480, %488 : vector<8x128xf32>
    %497 = arith.addf %495, %496 : vector<8x128xf32>
    %498 = math.tanh %497 : vector<8x128xf32>
    %499 = arith.mulf %494, %498 : vector<8x128xf32>
    %c7_150 = arith.constant 7 : index
    %c0_151 = arith.constant 0 : index
    %c0_152 = arith.constant 0 : index
    %500 = vector.load %arg11[%c7_150, %c0_151, %c0_152] : memref<8x8x512xf32, #tpu.memory_space<vmem>>, vector<1x8x512xf32>
    %501 = vector.shape_cast %500 : vector<1x8x512xf32> to vector<8x512xf32>
    %502 = arith.truncf %499 : vector<8x128xf32> to vector<8x128xbf16>
    %cst_153 = arith.constant dense<0.000000e+00> : vector<8x512xf32>
    %503 = tpu.matmul %502, %287, %cst_153 {dimension_numbers = #tpu.dot_dimension_numbers<[1], [0], [0], [1], [0, 0, 1, 1], [], []>} : vector<8x128xbf16>, vector<128x512xbf16>, vector<8x512xf32> -> vector<8x512xf32>
    %504 = arith.addf %501, %503 : vector<8x512xf32>
    %505 = vector.extract_strided_slice %504 {offsets = [0, 0], sizes = [8, 128], strides = [1, 1]} : vector<8x512xf32> to vector<8x128xf32>
    %506 = arith.negf %505 : vector<8x128xf32>
    %507 = math.exp %506 : vector<8x128xf32>
    %cst_154 = arith.constant 1.000000e+00 : f32
    %508 = vector.broadcast %cst_154 : f32 to vector<8x128xf32>
    %509 = arith.addf %508, %507 : vector<8x128xf32>
    %510 = arith.divf %508, %509 : vector<8x128xf32>
    %511 = vector.extract_strided_slice %504 {offsets = [0, 128], sizes = [8, 128], strides = [1, 1]} : vector<8x512xf32> to vector<8x128xf32>
    %512 = arith.negf %511 : vector<8x128xf32>
    %513 = math.exp %512 : vector<8x128xf32>
    %cst_155 = arith.constant 1.000000e+00 : f32
    %514 = vector.broadcast %cst_155 : f32 to vector<8x128xf32>
    %515 = arith.addf %514, %513 : vector<8x128xf32>
    %516 = arith.divf %514, %515 : vector<8x128xf32>
    %517 = vector.extract_strided_slice %504 {offsets = [0, 256], sizes = [8, 128], strides = [1, 1]} : vector<8x512xf32> to vector<8x128xf32>
    %518 = math.tanh %517 : vector<8x128xf32>
    %519 = vector.extract_strided_slice %504 {offsets = [0, 384], sizes = [8, 128], strides = [1, 1]} : vector<8x512xf32> to vector<8x128xf32>
    %520 = arith.negf %519 : vector<8x128xf32>
    %521 = math.exp %520 : vector<8x128xf32>
    %cst_156 = arith.constant 1.000000e+00 : f32
    %522 = vector.broadcast %cst_156 : f32 to vector<8x128xf32>
    %523 = arith.addf %522, %521 : vector<8x128xf32>
    %524 = arith.divf %522, %523 : vector<8x128xf32>
    %525 = arith.mulf %516, %497 : vector<8x128xf32>
    %526 = arith.mulf %510, %518 : vector<8x128xf32>
    %527 = arith.addf %525, %526 : vector<8x128xf32>
    %528 = math.tanh %527 : vector<8x128xf32>
    %529 = arith.mulf %524, %528 : vector<8x128xf32>
    %c0_157 = arith.constant 0 : index
    %c0_158 = arith.constant 0 : index
    %530 = vector.load %arg8[%c0_157, %c0_158] : memref<128x1xf32, #tpu.memory_space<vmem>>, vector<128x1xf32>
    %cst_159 = arith.constant dense<0.000000e+00> : vector<8x1xf32>
    %531 = tpu.matmul %529, %530, %cst_159 {dimension_numbers = #tpu.dot_dimension_numbers<[1], [0], [0], [1], [0, 0, 1, 1], [], []>} : vector<8x128xf32>, vector<128x1xf32>, vector<8x1xf32> -> vector<8x1xf32>
    %c0_160 = arith.constant 0 : index
    %c0_161 = arith.constant 0 : index
    %532 = vector.load %arg9[%c0_160, %c0_161] : memref<1x1xf32, #tpu.memory_space<vmem>>, vector<1x1xf32>
    %533 = vector.broadcast %532 : vector<1x1xf32> to vector<8x1xf32>
    %534 = arith.addf %531, %533 : vector<8x1xf32>
    %c0_162 = arith.constant 0 : index
    %c0_163 = arith.constant 0 : index
    %535 = vector.load %arg10[%c0_162, %c0_163] : memref<8x1xf32, #tpu.memory_space<vmem>>, vector<8x1xf32>
    tpu.vector_store %arg10[%c0_162, %c0_163], %534 {strides = array<i32>} : memref<8x1xf32, #tpu.memory_space<vmem>>, vector<8x1xf32>,
    return
  }
  func.func @transform_0(%arg0: i32) -> (i32, i32, i32) {
    %c0_i32 = arith.constant 0 : i32
    %c0_i32_0 = arith.constant 0 : i32
    %c0_i32_1 = arith.constant 0 : i32
    return %c0_i32, %arg0, %c0_i32_0 : i32, i32, i32
  }
  func.func @transform_1(%arg0: i32) -> (i32, i32) {
    %c0_i32 = arith.constant 0 : i32
    %c0_i32_0 = arith.constant 0 : i32
    %c0_i32_1 = arith.constant 0 : i32
    return %c0_i32, %c0_i32_0 : i32, i32
  }
  func.func @transform_2(%arg0: i32) -> (i32, i32) {
    %c0_i32 = arith.constant 0 : i32
    %c0_i32_0 = arith.constant 0 : i32
    %c0_i32_1 = arith.constant 0 : i32
    return %c0_i32, %c0_i32_0 : i32, i32
  }
  func.func @transform_3(%arg0: i32) -> (i32, i32) {
    %c0_i32 = arith.constant 0 : i32
    %c0_i32_0 = arith.constant 0 : i32
    %c0_i32_1 = arith.constant 0 : i32
    return %c0_i32, %c0_i32_0 : i32, i32
  }
  func.func @transform_4(%arg0: i32) -> (i32, i32) {
    %c0_i32 = arith.constant 0 : i32
    %c0_i32_0 = arith.constant 0 : i32
    %c0_i32_1 = arith.constant 0 : i32
    return %c0_i32, %c0_i32_0 : i32, i32
  }
  func.func @transform_5(%arg0: i32) -> (i32, i32) {
    %c0_i32 = arith.constant 0 : i32
    %c0_i32_0 = arith.constant 0 : i32
    %c0_i32_1 = arith.constant 0 : i32
    return %c0_i32, %c0_i32_0 : i32, i32
  }
  func.func @transform_6(%arg0: i32) -> (i32, i32) {
    %c0_i32 = arith.constant 0 : i32
    %c0_i32_0 = arith.constant 0 : i32
    %c0_i32_1 = arith.constant 0 : i32
    return %c0_i32, %c0_i32_0 : i32, i32
  }
  func.func @transform_7(%arg0: i32) -> (i32, i32) {
    %c0_i32 = arith.constant 0 : i32
    %c0_i32_0 = arith.constant 0 : i32
    %c0_i32_1 = arith.constant 0 : i32
    return %c0_i32, %c0_i32_0 : i32, i32
  }
  func.func @transform_8(%arg0: i32) -> (i32, i32) {
    %c0_i32 = arith.constant 0 : i32
    %c0_i32_0 = arith.constant 0 : i32
    %c0_i32_1 = arith.constant 0 : i32
    return %c0_i32, %c0_i32_0 : i32, i32
  }
  func.func @transform_9(%arg0: i32) -> (i32, i32) {
    %c0_i32 = arith.constant 0 : i32
    %c0_i32_0 = arith.constant 0 : i32
    return %arg0, %c0_i32 : i32, i32
  }
}

</mosaic_0001>

<llo_original>
// kernel: lstm_classifier_forward.1
$region0: #{lstm_classifier_forward.1}
  #allocation0 [shape = 'u32[]', space=smem, size = 0x4, offset = 0x4, fixed_abs, tag = 'smem constant byte address 0x4 - core index']
  #allocation1 [shape = 'u32[144,128]{1,0:T(1,128)}', space=vmem, size = 0x12000, scoped, tag = 'internal scratch']
  #allocation2 [shape = 'f32[8,8,512]{2,1,0:T(8,128)}', space=vmem, size = 0x20000, scoped, tag = 'scratch operand']
  #allocation3 [shape = 'f32[8,8,128]{2,1,0:T(8,128)}', space=vmem, size = 0x8000, scoped, tag = 'scratch operand']
  #allocation4 [shape = 'f32[1,1]{1,0:T(1,128)S(1)}', space=vmem, size = 0x200, scoped, tag = 'scoped memory for lstm_classifier_forward.1']
  %s0 = inlined_call_operand.vmem [shape: f32[8,16,256], index: 0, kind: input, shape index: {}]
  %s1 = inlined_call_operand.vmem [shape: bf16[256,512], index: 1, kind: input, shape index: {}]
  %s2 = inlined_call_operand.vmem [shape: bf16[128,512], index: 2, kind: input, shape index: {}]
  %s3 = inlined_call_operand.vmem [shape: f32[1,512], index: 3, kind: input, shape index: {}]
  %s4 = inlined_call_operand.vmem [shape: bf16[128,512], index: 4, kind: input, shape index: {}]
  %s5 = inlined_call_operand.vmem [shape: bf16[128,512], index: 5, kind: input, shape index: {}]
  %s6 = inlined_call_operand.vmem [shape: f32[1,512], index: 6, kind: input, shape index: {}]
  %s7 = inlined_call_operand.vmem [shape: f32[128,1], index: 7, kind: input, shape index: {}]
  %s8 = inlined_call_operand.<no memory space> [shape: f32[1,1], index: 8, kind: input, shape index: {}]
  %s9 = inlined_call_operand.vmem [shape: f32[16,1], index: 9, kind: output, shape index: {}]
  %s10 = sld [smem:[#allocation0]]
  $region92: #{lstm_classifier_forward.1} parent=0
    _
  %s12 = ssub.s32 1, %s10
  %s13 = scalar_select 0, %s12, %s10
  %v14 = vstv %s8
  %15 = vst [vmem:[#allocation4] sm:$0x1] %v14
  $region1: #{lstm_classifier_forward.1} parent=0
    #allocation5 [shape = 'u8[131072]{0}', space=vmem, size = 0x20000, scoped, tag = 'input window, operand 0']
    loop: start=0, step=1, limit=4
    $region2: #{lstm_classifier_forward.1} parent=1 // loop_pre_header
      _
    $region3: #{lstm_classifier_forward.1} parent=1 // loop_header
      %s17 = sphi 0, %s21
      %p18 = scmp.ge.s32.totalorder %s17, 4
      %s27 = sphi 0, %s29
      %s30 = sphi 0, %s27
      %s31 = sphi 0, %s30
      %s47 = sphi 0, %s31
      %s51 = sphi 0, %s51
      %s53 = sphi 0, %s51
      %s54 = sphi 0, %s53
      %s68 = sphi 0, %s54
      %s72 = sphi 0, %s72
      %s74 = sphi 0, %s72
      %s75 = sphi 0, %s74
      %s89 = sphi 0, %s75
      %s93 = sphi 0, %s93
      %s95 = sphi 0, %s93
      %s96 = sphi 0, %s95
      %s110 = sphi 0, %s96
      %s114 = sphi 0, %s114
      %s116 = sphi 0, %s114
      %s117 = sphi 0, %s116
      %s131 = sphi 0, %s117
      %s135 = sphi 0, %s135
      %s137 = sphi 0, %s135
      %s138 = sphi 0, %s137
      %s152 = sphi 0, %s138
      %s156 = sphi 0, %s156
      %s158 = sphi 0, %s156
      %s159 = sphi 0, %s158
      %s173 = sphi 0, %s159
      %s177 = sphi 0, %s177
      %s179 = sphi 0, %s177
      %s180 = sphi 0, %s179
      %s194 = sphi 0, %s180
      %s198 = sphi 0, %s198
      %s200 = sphi 0, %s198
      %s201 = sphi 0, %s200
      %s215 = sphi 0, %s201
      %s221 = sphi 0, %s223
      %s224 = sphi 0, %s221
      %s225 = sphi 0, %s224
      %s241 = sphi 0, %s225
    $region4: #{lstm_classifier_forward.1} parent=1 // loop_header_branch
      %20 = sbr.rel (%p18) target = $region8
    $region5: #{lstm_classifier_forward.1} parent=1 // loop_body
      %s22 = ssub.s32 %s17, 1
      %s23 = ssub.s32 %s17, 2
      %s24 = sadd.s32 %s17, 1
      %s25 = ssub.s32 %s17, %s24
      %p26 = scmp.eq.s32.totalorder %s25, 0
      %s28 = sadd.s32 %s27, 1
      %s29 = scalar_select %p26, %s27, %s28
      %p32 = pneg %p26
      %p33 = scmp.eq.s32.totalorder %s17, 1
      %p34 = por %p32, %p33
      %p35 = scmp.ne.s32.totalorder %s27, %s30
      %p36 = scmp.eq.s32.totalorder %s17, 0
      %p37 = por %p35, %p36
      %p38 = scmp.ne.s32.totalorder %s27, %s30
      %p39 = scmp.eq.s32.totalorder %s22, 1
      %p40 = por %p38, %p39
      %p41 = scmp.ne.s32.totalorder %s30, %s31
      %p42 = scmp.eq.s32.totalorder %s22, 0
      %p43 = por %p41, %p42
      %p44 = scmp.ne.s32.totalorder %s30, %s31
      %p45 = scmp.eq.s32.totalorder %s23, 1
      %p46 = por %p44, %p45
      %p48 = scmp.ne.s32.totalorder %s31, %s47
      %p49 = scmp.eq.s32.totalorder %s23, 0
      %p50 = por %p48, %p49
      %s52 = sadd.s32 %s51, 1
      %p55 = scmp.eq.s32.totalorder %s17, 1
      %p56 = scmp.ne.s32.totalorder %s51, %s53
      %p57 = scmp.eq.s32.totalorder %s17, 0
      %p58 = por %p56, %p57
      %p59 = scmp.ne.s32.totalorder %s51, %s53
      %p60 = scmp.eq.s32.totalorder %s22, 1
      %p61 = por %p59, %p60
      %p62 = scmp.ne.s32.totalorder %s53, %s54
      %p63 = scmp.eq.s32.totalorder %s22, 0
      %p64 = por %p62, %p63
      %p65 = scmp.ne.s32.totalorder %s53, %s54
      %p66 = scmp.eq.s32.totalorder %s23, 1
      %p67 = por %p65, %p66
      %p69 = scmp.ne.s32.totalorder %s54, %s68
      %p70 = scmp.eq.s32.totalorder %s23, 0
      %p71 = por %p69, %p70
      %s73 = sadd.s32 %s72, 1
      %p76 = scmp.eq.s32.totalorder %s17, 1
      %p77 = scmp.ne.s32.totalorder %s72, %s74
      %p78 = scmp.eq.s32.totalorder %s17, 0
      %p79 = por %p77, %p78
      %p80 = scmp.ne.s32.totalorder %s72, %s74
      %p81 = scmp.eq.s32.totalorder %s22, 1
      %p82 = por %p80, %p81
      %p83 = scmp.ne.s32.totalorder %s74, %s75
      %p84 = scmp.eq.s32.totalorder %s22, 0
      %p85 = por %p83, %p84
      %p86 = scmp.ne.s32.totalorder %s74, %s75
      %p87 = scmp.eq.s32.totalorder %s23, 1
      %p88 = por %p86, %p87
      %p90 = scmp.ne.s32.totalorder %s75, %s89
      %p91 = scmp.eq.s32.totalorder %s23, 0
      %p92 = por %p90, %p91
      %s94 = sadd.s32 %s93, 1
      %p97 = scmp.eq.s32.totalorder %s17, 1
      %p98 = scmp.ne.s32.totalorder %s93, %s95
      %p99 = scmp.eq.s32.totalorder %s17, 0
      %p100 = por %p98, %p99
      %p101 = scmp.ne.s32.totalorder %s93, %s95
      %p102 = scmp.eq.s32.totalorder %s22, 1
      %p103 = por %p101, %p102
      %p104 = scmp.ne.s32.totalorder %s95, %s96
      %p105 = scmp.eq.s32.totalorder %s22, 0
      %p106 = por %p104, %p105
      %p107 = scmp.ne.s32.totalorder %s95, %s96
      %p108 = scmp.eq.s32.totalorder %s23, 1
      %p109 = por %p107, %p108
      %p111 = scmp.ne.s32.totalorder %s96, %s110
      %p112 = scmp.eq.s32.totalorder %s23, 0
      %p113 = por %p111, %p112
      %s115 = sadd.s32 %s114, 1
      %p118 = scmp.eq.s32.totalorder %s17, 1
      %p119 = scmp.ne.s32.totalorder %s114, %s116
      %p120 = scmp.eq.s32.totalorder %s17, 0
      %p121 = por %p119, %p120
      %p122 = scmp.ne.s32.totalorder %s114, %s116
      %p123 = scmp.eq.s32.totalorder %s22, 1
      %p124 = por %p122, %p123
      %p125 = scmp.ne.s32.totalorder %s116, %s117
      %p126 = scmp.eq.s32.totalorder %s22, 0
      %p127 = por %p125, %p126
      %p128 = scmp.ne.s32.totalorder %s116, %s117
      %p129 = scmp.eq.s32.totalorder %s23, 1
      %p130 = por %p128, %p129
      %p132 = scmp.ne.s32.totalorder %s117, %s131
      %p133 = scmp.eq.s32.totalorder %s23, 0
      %p134 = por %p132, %p133
      %s136 = sadd.s32 %s135, 1
      %p139 = scmp.eq.s32.totalorder %s17, 1
      %p140 = scmp.ne.s32.totalorder %s135, %s137
      %p141 = scmp.eq.s32.totalorder %s17, 0
      %p142 = por %p140, %p141
      %p143 = scmp.ne.s32.totalorder %s135, %s137
      %p144 = scmp.eq.s32.totalorder %s22, 1
      %p145 = por %p143, %p144
      %p146 = scmp.ne.s32.totalorder %s137, %s138
      %p147 = scmp.eq.s32.totalorder %s22, 0
      %p148 = por %p146, %p147
      %p149 = scmp.ne.s32.totalorder %s137, %s138
      %p150 = scmp.eq.s32.totalorder %s23, 1
      %p151 = por %p149, %p150
      %p153 = scmp.ne.s32.totalorder %s138, %s152
      %p154 = scmp.eq.s32.totalorder %s23, 0
      %p155 = por %p153, %p154
      %s157 = sadd.s32 %s156, 1
      %p160 = scmp.eq.s32.totalorder %s17, 1
      %p161 = scmp.ne.s32.totalorder %s156, %s158
      %p162 = scmp.eq.s32.totalorder %s17, 0
      %p163 = por %p161, %p162
      %p164 = scmp.ne.s32.totalorder %s156, %s158
      %p165 = scmp.eq.s32.totalorder %s22, 1
      %p166 = por %p164, %p165
      %p167 = scmp.ne.s32.totalorder %s158, %s159
      %p168 = scmp.eq.s32.totalorder %s22, 0
      %p169 = por %p167, %p168
      %p170 = scmp.ne.s32.totalorder %s158, %s159
      %p171 = scmp.eq.s32.totalorder %s23, 1
      %p172 = por %p170, %p171
      %p174 = scmp.ne.s32.totalorder %s159, %s173
      %p175 = scmp.eq.s32.totalorder %s23, 0
      %p176 = por %p174, %p175
      %s178 = sadd.s32 %s177, 1
      %p181 = scmp.eq.s32.totalorder %s17, 1
      %p182 = scmp.ne.s32.totalorder %s177, %s179
      %p183 = scmp.eq.s32.totalorder %s17, 0
      %p184 = por %p182, %p183
      %p185 = scmp.ne.s32.totalorder %s177, %s179
      %p186 = scmp.eq.s32.totalorder %s22, 1
      %p187 = por %p185, %p186
      %p188 = scmp.ne.s32.totalorder %s179, %s180
      %p189 = scmp.eq.s32.totalorder %s22, 0
      %p190 = por %p188, %p189
      %p191 = scmp.ne.s32.totalorder %s179, %s180
      %p192 = scmp.eq.s32.totalorder %s23, 1
      %p193 = por %p191, %p192
      %p195 = scmp.ne.s32.totalorder %s180, %s194
      %p196 = scmp.eq.s32.totalorder %s23, 0
      %p197 = por %p195, %p196
      %s199 = sadd.s32 %s198, 1
      %p202 = scmp.eq.s32.totalorder %s17, 1
      %p203 = scmp.ne.s32.totalorder %s198, %s200
      %p204 = scmp.eq.s32.totalorder %s17, 0
      %p205 = por %p203, %p204
      %p206 = scmp.ne.s32.totalorder %s198, %s200
      %p207 = scmp.eq.s32.totalorder %s22, 1
      %p208 = por %p206, %p207
      %p209 = scmp.ne.s32.totalorder %s200, %s201
      %p210 = scmp.eq.s32.totalorder %s22, 0
      %p211 = por %p209, %p210
      %p212 = scmp.ne.s32.totalorder %s200, %s201
      %p213 = scmp.eq.s32.totalorder %s23, 1
      %p214 = por %p212, %p213
      %p216 = scmp.ne.s32.totalorder %s201, %s215
      %p217 = scmp.eq.s32.totalorder %s23, 0
      %p218 = por %p216, %p217
      %s219 = ssub.s32 %s17, %s24
      %p220 = scmp.eq.s32.totalorder %s219, 0
      %s222 = sadd.s32 %s221, 1
      %s223 = scalar_select %p220, %s221, %s222
      %p226 = pneg %p220
      %p227 = scmp.eq.s32.totalorder %s17, 1
      %p228 = por %p226, %p227
      %p229 = scmp.ne.s32.totalorder %s221, %s224
      %p230 = scmp.eq.s32.totalorder %s17, 0
      %p231 = por %p229, %p230
      %p232 = scmp.ne.s32.totalorder %s221, %s224
      %p233 = scmp.eq.s32.totalorder %s22, 1
      %p234 = por %p232, %p233
      %p235 = scmp.ne.s32.totalorder %s224, %s225
      %p236 = scmp.eq.s32.totalorder %s22, 0
      %p237 = por %p235, %p236
      %p238 = scmp.ne.s32.totalorder %s224, %s225
      %p239 = scmp.eq.s32.totalorder %s23, 1
      %p240 = por %p238, %p239
      %p242 = scmp.ne.s32.totalorder %s225, %s241
      %p243 = scmp.eq.s32.totalorder %s23, 0
      %p244 = por %p242, %p243
      %p245 = scmp.le.s32.totalorder 1, %s17
      %p246 = scmp.lt.s32.totalorder %s17, 3
      %p247 = pnand %p245, %p246
      %p248 = pneg %p247
      // Predicated region
      $region9: #{lstm_classifier_forward.1} parent=5 // pred_check
        _
      $region10: #{lstm_classifier_forward.1} parent=5 // pred_check_branch
        %250 = sbr.rel (%p247) target = $region12
      $region11: #{lstm_classifier_forward.1} parent=5 // pred_region
        %s251 = ssub.s32 %s17, 1
        // Predicated region
        $region13: #{lstm_classifier_forward.1} parent=11 // pred_check
          %p252 = pneg %p64
        $region14: #{lstm_classifier_forward.1} parent=11 // pred_check_branch
          %254 = sbr.rel (%p252) target = $region16
        $region15: #{lstm_classifier_forward.1} parent=11 // pred_region
          _
        $region16: #{lstm_classifier_forward.1} parent=11 // pred_fallthru
          _
        // Predicated region
        $region17: #{lstm_classifier_forward.1} parent=11 // pred_check
          %p255 = pneg %p85
        $region18: #{lstm_classifier_forward.1} parent=11 // pred_check_branch
          %257 = sbr.rel (%p255) target = $region20
        $region19: #{lstm_classifier_forward.1} parent=11 // pred_region
          _
        $region20: #{lstm_classifier_forward.1} parent=11 // pred_fallthru
          _
        // Predicated region
        $region21: #{lstm_classifier_forward.1} parent=11 // pred_check
          %p258 = pneg %p106
        $region22: #{lstm_classifier_forward.1} parent=11 // pred_check_branch
          %260 = sbr.rel (%p258) target = $region24
        $region23: #{lstm_classifier_forward.1} parent=11 // pred_region
          _
        $region24: #{lstm_classifier_forward.1} parent=11 // pred_fallthru
          _
        // Predicated region
        $region25: #{lstm_classifier_forward.1} parent=11 // pred_check
          %p261 = pneg %p127
        $region26: #{lstm_classifier_forward.1} parent=11 // pred_check_branch
          %263 = sbr.rel (%p261) target = $region28
        $region27: #{lstm_classifier_forward.1} parent=11 // pred_region
          _
        $region28: #{lstm_classifier_forward.1} parent=11 // pred_fallthru
          _
        // Predicated region
        $region29: #{lstm_classifier_forward.1} parent=11 // pred_check
          %p264 = pneg %p148
        $region30: #{lstm_classifier_forward.1} parent=11 // pred_check_branch
          %266 = sbr.rel (%p264) target = $region32
        $region31: #{lstm_classifier_forward.1} parent=11 // pred_region
          _
        $region32: #{lstm_classifier_forward.1} parent=11 // pred_fallthru
          _
        // Predicated region
        $region33: #{lstm_classifier_forward.1} parent=11 // pred_check
          %p267 = pneg %p169
        $region34: #{lstm_classifier_forward.1} parent=11 // pred_check_branch
          %269 = sbr.rel (%p267) target = $region36
        $region35: #{lstm_classifier_forward.1} parent=11 // pred_region
          _
        $region36: #{lstm_classifier_forward.1} parent=11 // pred_fallthru
          _
        // Predicated region
        $region37: #{lstm_classifier_forward.1} parent=11 // pred_check
          %p270 = pneg %p190
        $region38: #{lstm_classifier_forward.1} parent=11 // pred_check_branch
          %272 = sbr.rel (%p270) target = $region40
        $region39: #{lstm_classifier_forward.1} parent=11 // pred_region
          _
        $region40: #{lstm_classifier_forward.1} parent=11 // pred_fallthru
          _
        // Predicated region
        $region41: #{lstm_classifier_forward.1} parent=11 // pred_check
          %p273 = pneg %p211
        $region42: #{lstm_classifier_forward.1} parent=11 // pred_check_branch
          %275 = sbr.rel (%p273) target = $region44
        $region43: #{lstm_classifier_forward.1} parent=11 // pred_region
          _
        $region44: #{lstm_classifier_forward.1} parent=11 // pred_fallthru
          _
      $region12: #{lstm_classifier_forward.1} parent=5 // pred_fallthru
        _
      %p276 = scmp.lt.s32.totalorder %s17, 2
      // Predicated region
      $region45: #{lstm_classifier_forward.1} parent=5 // pred_check
        %p277 = pneg %p276
      $region46: #{lstm_classifier_forward.1} parent=5 // pred_check_branch
        %279 = sbr.rel (%p277) target = $region48
      $region47: #{lstm_classifier_forward.1} parent=5 // pred_region
        // Predicated region
        $region49: #{lstm_classifier_forward.1} parent=47 // pred_check
          %p280 = pneg %p37
        $region50: #{lstm_classifier_forward.1} parent=47 // pred_check_branch
          %282 = sbr.rel (%p280) target = $region52
        $region51: #{lstm_classifier_forward.1} parent=47 // pred_region
          %s283 = sand.u32 %s27, 1
          %s284 = sand.u32 %s27, 1
          %s285 = smul.addr %s284, 128
          %s286 = scalar_lea.vmem [#allocation5], %s285
          %s287 = smul.addr %s17, 2
          %s288 = smul.addr %s287, 8
          %s289 = scalar_lea.vmem %s0, %s288
          // Predicated region
          $region53: #{lstm_classifier_forward.1} parent=51 // pred_check
            _
          $region54: #{lstm_classifier_forward.1} parent=51 // pred_check_branch
            %291 = sbr.rel (0) target = $region56
          $region55: #{lstm_classifier_forward.1} parent=51 // pred_region
            // Predicated region
            $region57: #{lstm_classifier_forward.1} parent=55 // pred_check
              _
            $region58: #{lstm_classifier_forward.1} parent=55 // pred_check_branch
              %293 = sbr.rel (0) target = $region60
            $region59: #{lstm_classifier_forward.1} parent=55 // pred_region
              loop: start=0, step=1, limit=1
              $region61: #{lstm_classifier_forward.1} parent=59 // loop_pre_header
                _
              $region62: #{lstm_classifier_forward.1} parent=59 // loop_header
                %s295 = sphi 0, %s299
                %p296 = scmp.ge.s32.totalorder %s295, 1
                %s300 = sphi %s289, %s289
                %s301 = sphi %s286, %s286
              $region63: #{lstm_classifier_forward.1} parent=59 // loop_header_branch
                %298 = sbr.rel (%p296) target = $region67
              $region64: #{lstm_classifier_forward.1} parent=59 // loop_body
                %v302 = vld [vmem:[%s300] sm:$0xff]
                %303 = vst [vmem:[%s301] sm:$0xff] %v302
                %v304 = vld [vmem:[%s300 + $0x8] sm:$0xff]
                %305 = vst [vmem:[%s301 + $0x8] sm:$0xff] %v304
                %v306 = vld [vmem:[%s300 + $0x20] sm:$0xff]
                %307 = vst [vmem:[%s301 + $0x10] sm:$0xff] %v306
                %v308 = vld [vmem:[%s300 + $0x28] sm:$0xff]
                %309 = vst [vmem:[%s301 + $0x18] sm:$0xff] %v308
                %v310 = vld [vmem:[%s300 + $0x40] sm:$0xff]
                %311 = vst [vmem:[%s301 + $0x20] sm:$0xff] %v310
                %v312 = vld [vmem:[%s300 + $0x48] sm:$0xff]
                %313 = vst [vmem:[%s301 + $0x28] sm:$0xff] %v312
                %v314 = vld [vmem:[%s300 + $0x60] sm:$0xff]
                %315 = vst [vmem:[%s301 + $0x30] sm:$0xff] %v314
                %v316 = vld [vmem:[%s300 + $0x68] sm:$0xff]
                %317 = vst [vmem:[%s301 + $0x38] sm:$0xff] %v316
                %v318 = vld [vmem:[%s300 + $0x80] sm:$0xff]
                %319 = vst [vmem:[%s301 + $0x40] sm:$0xff] %v318
                %v320 = vld [vmem:[%s300 + $0x88] sm:$0xff]
                %321 = vst [vmem:[%s301 + $0x48] sm:$0xff] %v320
                %v322 = vld [vmem:[%s300 + $0xa0] sm:$0xff]
                %323 = vst [vmem:[%s301 + $0x50] sm:$0xff] %v322
                %v324 = vld [vmem:[%s300 + $0xa8] sm:$0xff]
                %325 = vst [vmem:[%s301 + $0x58] sm:$0xff] %v324
                %v326 = vld [vmem:[%s300 + $0xc0] sm:$0xff]
                %327 = vst [vmem:[%s301 + $0x60] sm:$0xff] %v326
                %v328 = vld [vmem:[%s300 + $0xc8] sm:$0xff]
                %329 = vst [vmem:[%s301 + $0x68] sm:$0xff] %v328
                %v330 = vld [vmem:[%s300 + $0xe0] sm:$0xff]
                %331 = vst [vmem:[%s301 + $0x70] sm:$0xff] %v330
                %v332 = vld [vmem:[%s300 + $0xe8] sm:$0xff]
                %333 = vst [vmem:[%s301 + $0x78] sm:$0xff] %v332
              $region65: #{lstm_classifier_forward.1} parent=59 // loop_footer
                %s299 = sadd.s32 1, %s295
              $region66: #{lstm_classifier_forward.1} parent=59 // loop_footer_branch
                %294 = sbr.rel target = $region62
              $region67: #{lstm_classifier_forward.1} parent=59 // loop_exit
                _
            $region60: #{lstm_classifier_forward.1} parent=55 // pred_fallthru
              _
            // Predicated region
            $region68: #{lstm_classifier_forward.1} parent=55 // pred_check
              _
            $region69: #{lstm_classifier_forward.1} parent=55 // pred_check_branch
              %335 = sbr.rel target = $region71
            $region70: #{lstm_classifier_forward.1} parent=55 // pred_region
              _
            $region71: #{lstm_classifier_forward.1} parent=55 // pred_fallthru
              _
          $region56: #{lstm_classifier_forward.1} parent=51 // pred_fallthru
            _
          %336 = vnop
        $region52: #{lstm_classifier_forward.1} parent=47 // pred_fallthru
          _
      $region48: #{lstm_classifier_forward.1} parent=5 // pred_fallthru
        _
      %p337 = scmp.le.s32.totalorder 1, %s17
      %p338 = scmp.lt.s32.totalorder %s17, 3
      %p339 = pnand %p337, %p338
      %p340 = pneg %p339
      // Predicated region
      $region72: #{lstm_classifier_forward.1} parent=5 // pred_check
        _
      $region73: #{lstm_classifier_forward.1} parent=5 // pred_check_branch
        %342 = sbr.rel (%p339) target = $region75
      $region74: #{lstm_classifier_forward.1} parent=5 // pred_region
        %s343 = ssub.s32 %s17, 1
        %s344 = sand.u32 %s30, 1
        %s345 = sand.u32 %s30, 1
        %s346 = smul.addr %s345, 128
        %s347 = scalar_lea.vmem [#allocation5], %s346
        // Predicated region
        $region76: #{lstm_classifier_forward.1} parent=74 // pred_check
          %p348 = pneg %p43
        $region77: #{lstm_classifier_forward.1} parent=74 // pred_check_branch
          %350 = sbr.rel (%p348) target = $region79
        $region78: #{lstm_classifier_forward.1} parent=74 // pred_region
          _
        $region79: #{lstm_classifier_forward.1} parent=74 // pred_fallthru
          _
        %s351 = sand.u32 %s30, 1
        %s352 = sand.u32 %s30, 1
        %s353 = smul.addr %s352, 128
        %s354 = scalar_lea.vmem [#allocation5], %s353
        %p355 = pneg %p43
        %p356 = pneg %p40
        %p357 = pneg %p64
        %p358 = pneg %p61
        %p359 = pneg %p85
        %p360 = pneg %p82
        %p361 = pneg %p106
        %p362 = pneg %p103
        %p363 = pneg %p127
        %p364 = pneg %p124
        %p365 = pneg %p148
        %p366 = pneg %p145
        %p367 = pneg %p169
        %p368 = pneg %p166
        %p369 = pneg %p190
        %p370 = pneg %p187
        %p371 = pneg %p211
        %p372 = pneg %p208
        %p373 = pneg %p237
        %p374 = pneg %p234
        %p375 = scmp.lt.s32.totalorder %s22, 1
        %s376 = scalar_select %p375, %s22, 1
        %s377 = smul.addr %s376, 8
        %s378 = scalar_lea.vmem %s9, %s377
        %p379 = scmp.lt.s32.totalorder %s22, 1
        %s380 = scalar_select %p379, %s22, 1
        %s381 = smul.addr %s380, 8
        %s382 = scalar_lea.vmem %s9, %s381
        %v384 = vld [vmem:[%s347] sm:$0xff]
        %v385 = vld [vmem:[%s347 + $0x8] sm:$0xff]
        %v386 = vld [vmem:[%s347 + $0x10] sm:$0xff]
        %v387 = vld [vmem:[%s347 + $0x18] sm:$0xff]
        %v388 = vld [vmem:[%s347 + $0x20] sm:$0xff]
        %v389 = vld [vmem:[%s347 + $0x28] sm:$0xff]
        %v390 = vld [vmem:[%s347 + $0x30] sm:$0xff]
        %v391 = vld [vmem:[%s347 + $0x38] sm:$0xff]
        %v392 = vld [vmem:[%s347 + $0x40] sm:$0xff]
        %v393 = vld [vmem:[%s347 + $0x48] sm:$0xff]
        %v394 = vld [vmem:[%s347 + $0x50] sm:$0xff]
        %v395 = vld [vmem:[%s347 + $0x58] sm:$0xff]
        %v396 = vld [vmem:[%s347 + $0x60] sm:$0xff]
        %v397 = vld [vmem:[%s347 + $0x68] sm:$0xff]
        %v398 = vld [vmem:[%s347 + $0x70] sm:$0xff]
        %v399 = vld [vmem:[%s347 + $0x78] sm:$0xff]
        %v400 = vpack.c.bf16 %v386, %v384
        %v401 = vpack.c.bf16 %v387, %v385
        %v402 = vpack.c.bf16 %v390, %v388
        %v403 = vpack.c.bf16 %v391, %v389
        %v404 = vpack.c.bf16 %v394, %v392
        %v405 = vpack.c.bf16 %v395, %v393
        %v406 = vpack.c.bf16 %v398, %v396
        %v407 = vpack.c.bf16 %v399, %v397
        %v408 = vld [vmem:[%s1] sm:$0xff]
        %v409 = vld [vmem:[%s1 + $0x8] sm:$0xff]
        %v410 = vld [vmem:[%s1 + $0x10] sm:$0xff]
        %v411 = vld [vmem:[%s1 + $0x18] sm:$0xff]
        %v412 = vld [vmem:[%s1 + $0x20] sm:$0xff]
        %v413 = vld [vmem:[%s1 + $0x28] sm:$0xff]
        %v414 = vld [vmem:[%s1 + $0x30] sm:$0xff]
        %v415 = vld [vmem:[%s1 + $0x38] sm:$0xff]
        %v416 = vld [vmem:[%s1 + $0x40] sm:$0xff]
        %v417 = vld [vmem:[%s1 + $0x48] sm:$0xff]
        %v418 = vld [vmem:[%s1 + $0x50] sm:$0xff]
        %v419 = vld [vmem:[%s1 + $0x58] sm:$0xff]
        %v420 = vld [vmem:[%s1 + $0x60] sm:$0xff]
        %v421 = vld [vmem:[%s1 + $0x68] sm:$0xff]
        %v422 = vld [vmem:[%s1 + $0x70] sm:$0xff]
        %v423 = vld [vmem:[%s1 + $0x78] sm:$0xff]
        %v424 = vld [vmem:[%s1 + $0x80] sm:$0xff]
        %v425 = vld [vmem:[%s1 + $0x88] sm:$0xff]
        %v426 = vld [vmem:[%s1 + $0x90] sm:$0xff]
        %v427 = vld [vmem:[%s1 + $0x98] sm:$0xff]
        %v428 = vld [vmem:[%s1 + $0xa0] sm:$0xff]
        %v429 = vld [vmem:[%s1 + $0xa8] sm:$0xff]
        %v430 = vld [vmem:[%s1 + $0xb0] sm:$0xff]
        %v431 = vld [vmem:[%s1 + $0xb8] sm:$0xff]
        %v432 = vld [vmem:[%s1 + $0xc0] sm:$0xff]
        %v433 = vld [vmem:[%s1 + $0xc8] sm:$0xff]
        %v434 = vld [vmem:[%s1 + $0xd0] sm:$0xff]
        %v435 = vld [vmem:[%s1 + $0xd8] sm:$0xff]
        %v436 = vld [vmem:[%s1 + $0xe0] sm:$0xff]
        %v437 = vld [vmem:[%s1 + $0xe8] sm:$0xff]
        %v438 = vld [vmem:[%s1 + $0xf0] sm:$0xff]
        %v439 = vld [vmem:[%s1 + $0xf8] sm:$0xff]
        %v440 = vld [vmem:[%s1 + $0x100] sm:$0xff]
        %v441 = vld [vmem:[%s1 + $0x108] sm:$0xff]
        %v442 = vld [vmem:[%s1 + $0x110] sm:$0xff]
        %v443 = vld [vmem:[%s1 + $0x118] sm:$0xff]
        %v444 = vld [vmem:[%s1 + $0x120] sm:$0xff]
        %v445 = vld [vmem:[%s1 + $0x128] sm:$0xff]
        %v446 = vld [vmem:[%s1 + $0x130] sm:$0xff]
        %v447 = vld [vmem:[%s1 + $0x138] sm:$0xff]
        %v448 = vld [vmem:[%s1 + $0x140] sm:$0xff]
        %v449 = vld [vmem:[%s1 + $0x148] sm:$0xff]
        %v450 = vld [vmem:[%s1 + $0x150] sm:$0xff]
        %v451 = vld [vmem:[%s1 + $0x158] sm:$0xff]
        %v452 = vld [vmem:[%s1 + $0x160] sm:$0xff]
        %v453 = vld [vmem:[%s1 + $0x168] sm:$0xff]
        %v454 = vld [vmem:[%s1 + $0x170] sm:$0xff]
        %v455 = vld [vmem:[%s1 + $0x178] sm:$0xff]
        %v456 = vld [vmem:[%s1 + $0x180] sm:$0xff]
        %v457 = vld [vmem:[%s1 + $0x188] sm:$0xff]
        %v458 = vld [vmem:[%s1 + $0x190] sm:$0xff]
        %v459 = vld [vmem:[%s1 + $0x198] sm:$0xff]
        %v460 = vld [vmem:[%s1 + $0x1a0] sm:$0xff]
        %v461 = vld [vmem:[%s1 + $0x1a8] sm:$0xff]
        %v462 = vld [vmem:[%s1 + $0x1b0] sm:$0xff]
        %v463 = vld [vmem:[%s1 + $0x1b8] sm:$0xff]
        %v464 = vld [vmem:[%s1 + $0x1c0] sm:$0xff]
        %v465 = vld [vmem:[%s1 + $0x1c8] sm:$0xff]
        %v466 = vld [vmem:[%s1 + $0x1d0] sm:$0xff]
        %v467 = vld [vmem:[%s1 + $0x1d8] sm:$0xff]
        %v468 = vld [vmem:[%s1 + $0x1e0] sm:$0xff]
        %v469 = vld [vmem:[%s1 + $0x1e8] sm:$0xff]
        %v470 = vld [vmem:[%s1 + $0x1f0] sm:$0xff]
        %v471 = vld [vmem:[%s1 + $0x1f8] sm:$0xff]
        %v472 = vld [vmem:[%s3] sm:$0xf]
        %v474 = vlaneseq
        %v475 = vshrl.u32 %v474, 7
        %v476 = vsub.s32 0, %v475
        %v477 = vrot.slane %v472, %v476
        %v478 = vlaneseq
        %v479 = vshrl.u32 %v478, 7
        %v480 = vsub.s32 1, %v479
        %v481 = vrot.slane %v472, %v480
        %v482 = vlaneseq
        %v483 = vshrl.u32 %v482, 7
        %v484 = vsub.s32 2, %v483
        %v485 = vrot.slane %v472, %v484
        %v486 = vlaneseq
        %v487 = vshrl.u32 %v486, 7
        %v488 = vsub.s32 3, %v487
        %v489 = vrot.slane %v472, %v488
        %v558 = vunpack.c.l.b16 %v408
        %v559 = vunpack.c.h.b16 %v408
        %v560 = vunpack.c.l.b16 %v409
        %v561 = vunpack.c.h.b16 %v409
        %v562 = vunpack.c.l.b16 %v410
        %v563 = vunpack.c.h.b16 %v410
        %v564 = vunpack.c.l.b16 %v411
        %v565 = vunpack.c.h.b16 %v411
        %v566 = vunpack.c.l.b16 %v412
        %v567 = vunpack.c.h.b16 %v412
        %v568 = vunpack.c.l.b16 %v413
        %v569 = vunpack.c.h.b16 %v413
        %v570 = vunpack.c.l.b16 %v414
        %v571 = vunpack.c.h.b16 %v414
        %v572 = vunpack.c.l.b16 %v415
        %v573 = vunpack.c.h.b16 %v415
        %v574 = vunpack.c.l.b16 %v416
        %v575 = vunpack.c.h.b16 %v416
        %v576 = vunpack.c.l.b16 %v417
        %v577 = vunpack.c.h.b16 %v417
        %v578 = vunpack.c.l.b16 %v418
        %v579 = vunpack.c.h.b16 %v418
        %v580 = vunpack.c.l.b16 %v419
        %v581 = vunpack.c.h.b16 %v419
        %v582 = vunpack.c.l.b16 %v420
        %v583 = vunpack.c.h.b16 %v420
        %v584 = vunpack.c.l.b16 %v421
        %v585 = vunpack.c.h.b16 %v421
        %v586 = vunpack.c.l.b16 %v422
        %v587 = vunpack.c.h.b16 %v422
        %v588 = vunpack.c.l.b16 %v423
        %v589 = vunpack.c.h.b16 %v423
        %v590 = vunpack.c.l.b16 %v424
        %v591 = vunpack.c.h.b16 %v424
        %v592 = vunpack.c.l.b16 %v425
        %v593 = vunpack.c.h.b16 %v425
        %v594 = vunpack.c.l.b16 %v426
        %v595 = vunpack.c.h.b16 %v426
        %v596 = vunpack.c.l.b16 %v427
        %v597 = vunpack.c.h.b16 %v427
        %v598 = vunpack.c.l.b16 %v428
        %v599 = vunpack.c.h.b16 %v428
        %v600 = vunpack.c.l.b16 %v429
        %v601 = vunpack.c.h.b16 %v429
        %v602 = vunpack.c.l.b16 %v430
        %v603 = vunpack.c.h.b16 %v430
        %v604 = vunpack.c.l.b16 %v431
        %v605 = vunpack.c.h.b16 %v431
        %v606 = vunpack.c.l.b16 %v432
        %v607 = vunpack.c.h.b16 %v432
        %v608 = vunpack.c.l.b16 %v433
        %v609 = vunpack.c.h.b16 %v433
        %v610 = vunpack.c.l.b16 %v434
        %v611 = vunpack.c.h.b16 %v434
        %v612 = vunpack.c.l.b16 %v435
        %v613 = vunpack.c.h.b16 %v435
        %v614 = vunpack.c.l.b16 %v436
        %v615 = vunpack.c.h.b16 %v436
        %v616 = vunpack.c.l.b16 %v437
        %v617 = vunpack.c.h.b16 %v437
        %v618 = vunpack.c.l.b16 %v438
        %v619 = vunpack.c.h.b16 %v438
        %v620 = vunpack.c.l.b16 %v439
        %v621 = vunpack.c.h.b16 %v439
        %v622 = vunpack.c.l.b16 %v440
        %v623 = vunpack.c.h.b16 %v440
        %v624 = vunpack.c.l.b16 %v441
        %v625 = vunpack.c.h.b16 %v441
        %v626 = vunpack.c.l.b16 %v442
        %v627 = vunpack.c.h.b16 %v442
        %v628 = vunpack.c.l.b16 %v443
        %v629 = vunpack.c.h.b16 %v443
        %v630 = vunpack.c.l.b16 %v444
        %v631 = vunpack.c.h.b16 %v444
        %v632 = vunpack.c.l.b16 %v445
        %v633 = vunpack.c.h.b16 %v445
        %v634 = vunpack.c.l.b16 %v446
        %v635 = vunpack.c.h.b16 %v446
        %v636 = vunpack.c.l.b16 %v447
        %v637 = vunpack.c.h.b16 %v447
        %v638 = vunpack.c.l.b16 %v448
        %v639 = vunpack.c.h.b16 %v448
        %v640 = vunpack.c.l.b16 %v449
        %v641 = vunpack.c.h.b16 %v449
        %v642 = vunpack.c.l.b16 %v450
        %v643 = vunpack.c.h.b16 %v450
        %v644 = vunpack.c.l.b16 %v451
        %v645 = vunpack.c.h.b16 %v451
        %v646 = vunpack.c.l.b16 %v452
        %v647 = vunpack.c.h.b16 %v452
        %v648 = vunpack.c.l.b16 %v453
        %v649 = vunpack.c.h.b16 %v453
        %v650 = vunpack.c.l.b16 %v454
        %v651 = vunpack.c.h.b16 %v454
        %v652 = vunpack.c.l.b16 %v455
        %v653 = vunpack.c.h.b16 %v455
        %v654 = vunpack.c.l.b16 %v456
        %v655 = vunpack.c.h.b16 %v456
        %v656 = vunpack.c.l.b16 %v457
        %v657 = vunpack.c.h.b16 %v457
        %v658 = vunpack.c.l.b16 %v458
        %v659 = vunpack.c.h.b16 %v458
        %v660 = vunpack.c.l.b16 %v459
        %v661 = vunpack.c.h.b16 %v459
        %v662 = vunpack.c.l.b16 %v460
        %v663 = vunpack.c.h.b16 %v460
        %v664 = vunpack.c.l.b16 %v461
        %v665 = vunpack.c.h.b16 %v461
        %v666 = vunpack.c.l.b16 %v462
        %v667 = vunpack.c.h.b16 %v462
        %v668 = vunpack.c.l.b16 %v463
        %v669 = vunpack.c.h.b16 %v463
        %v670 = vunpack.c.l.b16 %v464
        %v671 = vunpack.c.h.b16 %v464
        %v672 = vunpack.c.l.b16 %v465
        %v673 = vunpack.c.h.b16 %v465
        %v674 = vunpack.c.l.b16 %v466
        %v675 = vunpack.c.h.b16 %v466
        %v676 = vunpack.c.l.b16 %v467
        %v677 = vunpack.c.h.b16 %v467
        %v678 = vunpack.c.l.b16 %v468
        %v679 = vunpack.c.h.b16 %v468
        %v680 = vunpack.c.l.b16 %v469
        %v681 = vunpack.c.h.b16 %v469
        %v682 = vunpack.c.l.b16 %v470
        %v683 = vunpack.c.h.b16 %v470
        %v684 = vunpack.c.l.b16 %v471
        %v685 = vunpack.c.h.b16 %v471
        %v686 = vpack.c.b16 %v562, %v558
        %v687 = vpack.c.b16 %v563, %v559
        %v688 = vpack.c.b16 %v564, %v560
        %v689 = vpack.c.b16 %v565, %v561
        %v690 = vpack.c.b16 %v570, %v566
        %v691 = vpack.c.b16 %v571, %v567
        %v692 = vpack.c.b16 %v572, %v568
        %v693 = vpack.c.b16 %v573, %v569
        %v694 = vpack.c.b16 %v578, %v574
        %v695 = vpack.c.b16 %v579, %v575
        %v696 = vpack.c.b16 %v580, %v576
        %v697 = vpack.c.b16 %v581, %v577
        %v698 = vpack.c.b16 %v586, %v582
        %v699 = vpack.c.b16 %v587, %v583
        %v700 = vpack.c.b16 %v588, %v584
        %v701 = vpack.c.b16 %v589, %v585
        %v702 = vpack.c.b16 %v594, %v590
        %v703 = vpack.c.b16 %v595, %v591
        %v704 = vpack.c.b16 %v596, %v592
        %v705 = vpack.c.b16 %v597, %v593
        %v706 = vpack.c.b16 %v602, %v598
        %v707 = vpack.c.b16 %v603, %v599
        %v708 = vpack.c.b16 %v604, %v600
        %v709 = vpack.c.b16 %v605, %v601
        %v710 = vpack.c.b16 %v610, %v606
        %v711 = vpack.c.b16 %v611, %v607
        %v712 = vpack.c.b16 %v612, %v608
        %v713 = vpack.c.b16 %v613, %v609
        %v714 = vpack.c.b16 %v618, %v614
        %v715 = vpack.c.b16 %v619, %v615
        %v716 = vpack.c.b16 %v620, %v616
        %v717 = vpack.c.b16 %v621, %v617
        %v718 = vpack.c.b16 %v626, %v622
        %v719 = vpack.c.b16 %v627, %v623
        %v720 = vpack.c.b16 %v628, %v624
        %v721 = vpack.c.b16 %v629, %v625
        %v722 = vpack.c.b16 %v634, %v630
        %v723 = vpack.c.b16 %v635, %v631
        %v724 = vpack.c.b16 %v636, %v632
        %v725 = vpack.c.b16 %v637, %v633
        %v726 = vpack.c.b16 %v642, %v638
        %v727 = vpack.c.b16 %v643, %v639
        %v728 = vpack.c.b16 %v644, %v640
        %v729 = vpack.c.b16 %v645, %v641
        %v730 = vpack.c.b16 %v650, %v646
        %v731 = vpack.c.b16 %v651, %v647
        %v732 = vpack.c.b16 %v652, %v648
        %v733 = vpack.c.b16 %v653, %v649
        %v734 = vpack.c.b16 %v658, %v654
        %v735 = vpack.c.b16 %v659, %v655
        %v736 = vpack.c.b16 %v660, %v656
        %v737 = vpack.c.b16 %v661, %v657
        %v738 = vpack.c.b16 %v666, %v662
        %v739 = vpack.c.b16 %v667, %v663
        %v740 = vpack.c.b16 %v668, %v664
        %v741 = vpack.c.b16 %v669, %v665
        %v742 = vpack.c.b16 %v674, %v670
        %v743 = vpack.c.b16 %v675, %v671
        %v744 = vpack.c.b16 %v676, %v672
        %v745 = vpack.c.b16 %v677, %v673
        %v746 = vpack.c.b16 %v682, %v678
        %v747 = vpack.c.b16 %v683, %v679
        %v748 = vpack.c.b16 %v684, %v680
        %v749 = vpack.c.b16 %v685, %v681
        %814 = vmatprep.subr.bf16.mxu0 %v687
        %815 = vmatpush1.bf16.msra.mxu0 %v686
        %816 = vmatprep.subr.bf16.mxu0 %v691
        %817 = vmatpush1.bf16.msra.mxu0 %v690
        %818 = vmatprep.subr.bf16.mxu0 %v695
        %819 = vmatpush1.bf16.msra.mxu0 %v694
        %820 = vmatprep.subr.bf16.mxu0 %v699
        %821 = vmatpush1.bf16.msra.mxu0 %v698
        %822 = vmatprep.subr.bf16.mxu0 %v703
        %823 = vmatpush1.bf16.msra.mxu0 %v702
        %824 = vmatprep.subr.bf16.mxu0 %v707
        %825 = vmatpush1.bf16.msra.mxu0 %v706
        %826 = vmatprep.subr.bf16.mxu0 %v711
        %827 = vmatpush1.bf16.msra.mxu0 %v710
        %828 = vmatprep.subr.bf16.mxu0 %v715
        %829 = vmatpush1.bf16.msra.mxu0 %v714
        %830 = vmatprep.subr.bf16.mxu0 %v719
        %831 = vmatpush1.bf16.msra.mxu0 %v718
        %832 = vmatprep.subr.bf16.mxu0 %v723
        %833 = vmatpush1.bf16.msra.mxu0 %v722
        %834 = vmatprep.subr.bf16.mxu0 %v727
        %835 = vmatpush1.bf16.msra.mxu0 %v726
        %836 = vmatprep.subr.bf16.mxu0 %v731
        %837 = vmatpush1.bf16.msra.mxu0 %v730
        %838 = vmatprep.subr.bf16.mxu0 %v735
        %839 = vmatpush1.bf16.msra.mxu0 %v734
        %840 = vmatprep.subr.bf16.mxu0 %v739
        %841 = vmatpush1.bf16.msra.mxu0 %v738
        %842 = vmatprep.subr.bf16.mxu0 %v743
        %843 = vmatpush1.bf16.msra.mxu0 %v742
        %844 = vmatprep.subr.bf16.mxu0 %v747
        %845 = vmatpush1.bf16.msra.mxu0 %v746
        %846 = vmatprep.mubr.bf16.mxu0 %v401
        %847 = vmatmul.mubr.bf16.gmra.mrb[0].mxu0 %v400
        %v848 = vpop.f32.mrb[0].mxu0
        %v849 = vadd.f32 %v477, %v848
        %v850 = vpop.f32.mrb[0].mxu0
        %v851 = vadd.f32 %v481, %v850
        %v852 = vpop.f32.mrb[0].mxu0
        %v853 = vadd.f32 %v477, %v852
        %v854 = vpop.f32.mrb[0].mxu0
        %v855 = vadd.f32 %v481, %v854
        %856 = vmatprep.mubr.bf16.mxu0 %v403
        %857 = vmatmul.mubr.bf16.gmra.mrb[0].mxu0 %v402
        %v858 = vpop.f32.mrb[0].mxu0
        %v859 = vadd.f32 %v477, %v858
        %v860 = vpop.f32.mrb[0].mxu0
        %v861 = vadd.f32 %v481, %v860
        %v862 = vpop.f32.mrb[0].mxu0
        %v863 = vadd.f32 %v477, %v862
        %v864 = vpop.f32.mrb[0].mxu0
        %v865 = vadd.f32 %v481, %v864
        %866 = vmatprep.mubr.bf16.mxu0 %v405
        %867 = vmatmul.mubr.bf16.gmra.mrb[0].mxu0 %v404
        %v868 = vpop.f32.mrb[0].mxu0
        %v869 = vadd.f32 %v477, %v868
        %v870 = vpop.f32.mrb[0].mxu0
        %v871 = vadd.f32 %v481, %v870
        %v872 = vpop.f32.mrb[0].mxu0
        %v873 = vadd.f32 %v477, %v872
        %v874 = vpop.f32.mrb[0].mxu0
        %v875 = vadd.f32 %v481, %v874
        %876 = vmatprep.mubr.bf16.mxu0 %v407
        %877 = vmatmul.mubr.bf16.gmra.mrb[0].mxu0 %v406
        %v878 = vpop.f32.mrb[0].mxu0
        %v879 = vadd.f32 %v477, %v878
        %v880 = vpop.f32.mrb[0].mxu0
        %v881 = vadd.f32 %v481, %v880
        %v882 = vpop.f32.mrb[0].mxu0
        %v883 = vadd.f32 %v477, %v882
        %v884 = vpop.f32.mrb[0].mxu0
        %v885 = vadd.f32 %v481, %v884
        %886 = vdwg.mxu0
        %887 = vmatprep.subr.bf16.mxu0 %v689
        %888 = vmatpush1.bf16.msra.mxu0 %v688
        %889 = vmatprep.subr.bf16.mxu0 %v693
        %890 = vmatpush1.bf16.msra.mxu0 %v692
        %891 = vmatprep.subr.bf16.mxu0 %v697
        %892 = vmatpush1.bf16.msra.mxu0 %v696
        %893 = vmatprep.subr.bf16.mxu0 %v701
        %894 = vmatpush1.bf16.msra.mxu0 %v700
        %895 = vmatprep.subr.bf16.mxu0 %v705
        %896 = vmatpush1.bf16.msra.mxu0 %v704
        %897 = vmatprep.subr.bf16.mxu0 %v709
        %898 = vmatpush1.bf16.msra.mxu0 %v708
        %899 = vmatprep.subr.bf16.mxu0 %v713
        %900 = vmatpush1.bf16.msra.mxu0 %v712
        %901 = vmatprep.subr.bf16.mxu0 %v717
        %902 = vmatpush1.bf16.msra.mxu0 %v716
        %903 = vmatprep.subr.bf16.mxu0 %v721
        %904 = vmatpush1.bf16.msra.mxu0 %v720
        %905 = vmatprep.subr.bf16.mxu0 %v725
        %906 = vmatpush1.bf16.msra.mxu0 %v724
        %907 = vmatprep.subr.bf16.mxu0 %v729
        %908 = vmatpush1.bf16.msra.mxu0 %v728
        %909 = vmatprep.subr.bf16.mxu0 %v733
        %910 = vmatpush1.bf16.msra.mxu0 %v732
        %911 = vmatprep.subr.bf16.mxu0 %v737
        %912 = vmatpush1.bf16.msra.mxu0 %v736
        %913 = vmatprep.subr.bf16.mxu0 %v741
        %914 = vmatpush1.bf16.msra.mxu0 %v740
        %915 = vmatprep.subr.bf16.mxu0 %v745
        %916 = vmatpush1.bf16.msra.mxu0 %v744
        %917 = vmatprep.subr.bf16.mxu0 %v749
        %918 = vmatpush1.bf16.msra.mxu0 %v748
        %919 = vmatprep.mubr.bf16.mxu0 %v401
        %920 = vmatmul.mubr.bf16.gmra.mrb[0].mxu0 %v400
        %v921 = vpop.f32.mrb[0].mxu0
        %v922 = vadd.f32 %v485, %v921
        %v923 = vpop.f32.mrb[0].mxu0
        %v924 = vadd.f32 %v489, %v923
        %v925 = vpop.f32.mrb[0].mxu0
        %v926 = vadd.f32 %v485, %v925
        %v927 = vpop.f32.mrb[0].mxu0
        %v928 = vadd.f32 %v489, %v927
        %929 = vmatprep.mubr.bf16.mxu0 %v403
        %930 = vmatmul.mubr.bf16.gmra.mrb[0].mxu0 %v402
        %v931 = vpop.f32.mrb[0].mxu0
        %v932 = vadd.f32 %v485, %v931
        %v933 = vpop.f32.mrb[0].mxu0
        %v934 = vadd.f32 %v489, %v933
        %v935 = vpop.f32.mrb[0].mxu0
        %v936 = vadd.f32 %v485, %v935
        %v937 = vpop.f32.mrb[0].mxu0
        %v938 = vadd.f32 %v489, %v937
        %939 = vmatprep.mubr.bf16.mxu0 %v405
        %940 = vmatmul.mubr.bf16.gmra.mrb[0].mxu0 %v404
        %v941 = vpop.f32.mrb[0].mxu0
        %v942 = vadd.f32 %v485, %v941
        %v943 = vpop.f32.mrb[0].mxu0
        %v944 = vadd.f32 %v489, %v943
        %v945 = vpop.f32.mrb[0].mxu0
        %v946 = vadd.f32 %v485, %v945
        %v947 = vpop.f32.mrb[0].mxu0
        %v948 = vadd.f32 %v489, %v947
        %949 = vmatprep.mubr.bf16.mxu0 %v407
        %950 = vmatmul.mubr.bf16.gmra.mrb[0].mxu0 %v406
        %v951 = vpop.f32.mrb[0].mxu0
        %v952 = vadd.f32 %v485, %v951
        %v953 = vpop.f32.mrb[0].mxu0
        %v954 = vadd.f32 %v489, %v953
        %v955 = vpop.f32.mrb[0].mxu0
        %v956 = vadd.f32 %v485, %v955
        %v957 = vpop.f32.mrb[0].mxu0
        %v958 = vadd.f32 %v489, %v957
        %959 = vdwg.mxu0
        %960 = vst [vmem:[#allocation2] sm:$0xff] %v849
        %961 = vst [vmem:[#allocation2 + $0x8] sm:$0xff] %v851
        %962 = vst [vmem:[#allocation2 + $0x10] sm:$0xff] %v922
        %963 = vst [vmem:[#allocation2 + $0x18] sm:$0xff] %v924
        %964 = vst [vmem:[#allocation2 + $0x20] sm:$0xff] %v853
        %965 = vst [vmem:[#allocation2 + $0x28] sm:$0xff] %v855
        %966 = vst [vmem:[#allocation2 + $0x30] sm:$0xff] %v926
        %967 = vst [vmem:[#allocation2 + $0x38] sm:$0xff] %v928
        %968 = vst [vmem:[#allocation2 + $0x40] sm:$0xff] %v859
        %969 = vst [vmem:[#allocation2 + $0x48] sm:$0xff] %v861
        %970 = vst [vmem:[#allocation2 + $0x50] sm:$0xff] %v932
        %971 = vst [vmem:[#allocation2 + $0x58] sm:$0xff] %v934
        %972 = vst [vmem:[#allocation2 + $0x60] sm:$0xff] %v863
        %973 = vst [vmem:[#allocation2 + $0x68] sm:$0xff] %v865
        %974 = vst [vmem:[#allocation2 + $0x70] sm:$0xff] %v936
        %975 = vst [vmem:[#allocation2 + $0x78] sm:$0xff] %v938
        %976 = vst [vmem:[#allocation2 + $0x80] sm:$0xff] %v869
        %977 = vst [vmem:[#allocation2 + $0x88] sm:$0xff] %v871
        %978 = vst [vmem:[#allocation2 + $0x90] sm:$0xff] %v942
        %979 = vst [vmem:[#allocation2 + $0x98] sm:$0xff] %v944
        %980 = vst [vmem:[#allocation2 + $0xa0] sm:$0xff] %v873
        %981 = vst [vmem:[#allocation2 + $0xa8] sm:$0xff] %v875
        %982 = vst [vmem:[#allocation2 + $0xb0] sm:$0xff] %v946
        %983 = vst [vmem:[#allocation2 + $0xb8] sm:$0xff] %v948
        %984 = vst [vmem:[#allocation2 + $0xc0] sm:$0xff] %v879
        %985 = vst [vmem:[#allocation2 + $0xc8] sm:$0xff] %v881
        %986 = vst [vmem:[#allocation2 + $0xd0] sm:$0xff] %v952
        %987 = vst [vmem:[#allocation2 + $0xd8] sm:$0xff] %v954
        %988 = vst [vmem:[#allocation2 + $0xe0] sm:$0xff] %v883
        %989 = vst [vmem:[#allocation2 + $0xe8] sm:$0xff] %v885
        %990 = vst [vmem:[#allocation2 + $0xf0] sm:$0xff] %v956
        %991 = vst [vmem:[#allocation2 + $0xf8] sm:$0xff] %v958
        %v992 = vld [vmem:[%s2] sm:$0xff]
        %v993 = vld [vmem:[%s2 + $0x8] sm:$0xff]
        %v994 = vld [vmem:[%s2 + $0x10] sm:$0xff]
        %v995 = vld [vmem:[%s2 + $0x18] sm:$0xff]
        %v996 = vld [vmem:[%s2 + $0x20] sm:$0xff]
        %v997 = vld [vmem:[%s2 + $0x28] sm:$0xff]
        %v998 = vld [vmem:[%s2 + $0x30] sm:$0xff]
        %v999 = vld [vmem:[%s2 + $0x38] sm:$0xff]
        %v1000 = vld [vmem:[%s2 + $0x40] sm:$0xff]
        %v1001 = vld [vmem:[%s2 + $0x48] sm:$0xff]
        %v1002 = vld [vmem:[%s2 + $0x50] sm:$0xff]
        %v1003 = vld [vmem:[%s2 + $0x58] sm:$0xff]
        %v1004 = vld [vmem:[%s2 + $0x60] sm:$0xff]
        %v1005 = vld [vmem:[%s2 + $0x68] sm:$0xff]
        %v1006 = vld [vmem:[%s2 + $0x70] sm:$0xff]
        %v1007 = vld [vmem:[%s2 + $0x78] sm:$0xff]
        %v1008 = vld [vmem:[%s2 + $0x80] sm:$0xff]
        %v1009 = vld [vmem:[%s2 + $0x88] sm:$0xff]
        %v1010 = vld [vmem:[%s2 + $0x90] sm:$0xff]
        %v1011 = vld [vmem:[%s2 + $0x98] sm:$0xff]
        %v1012 = vld [vmem:[%s2 + $0xa0] sm:$0xff]
        %v1013 = vld [vmem:[%s2 + $0xa8] sm:$0xff]
        %v1014 = vld [vmem:[%s2 + $0xb0] sm:$0xff]
        %v1015 = vld [vmem:[%s2 + $0xb8] sm:$0xff]
        %v1016 = vld [vmem:[%s2 + $0xc0] sm:$0xff]
        %v1017 = vld [vmem:[%s2 + $0xc8] sm:$0xff]
        %v1018 = vld [vmem:[%s2 + $0xd0] sm:$0xff]
        %v1019 = vld [vmem:[%s2 + $0xd8] sm:$0xff]
        %v1020 = vld [vmem:[%s2 + $0xe0] sm:$0xff]
        %v1021 = vld [vmem:[%s2 + $0xe8] sm:$0xff]
        %v1022 = vld [vmem:[%s2 + $0xf0] sm:$0xff]
        %v1023 = vld [vmem:[%s2 + $0xf8] sm:$0xff]
        %v1024 = vld [vmem:[#allocation2] sm:$0xff]
        %v1025 = vld [vmem:[#allocation2 + $0x8] sm:$0xff]
        %v1026 = vld [vmem:[#allocation2 + $0x10] sm:$0xff]
        %v1027 = vld [vmem:[#allocation2 + $0x18] sm:$0xff]
        %v1060 = vunpack.c.l.b16 %v992
        %v1061 = vunpack.c.h.b16 %v992
        %v1062 = vunpack.c.l.b16 %v993
        %v1063 = vunpack.c.h.b16 %v993
        %v1064 = vunpack.c.l.b16 %v994
        %v1065 = vunpack.c.h.b16 %v994
        %v1066 = vunpack.c.l.b16 %v995
        %v1067 = vunpack.c.h.b16 %v995
        %v1068 = vunpack.c.l.b16 %v996
        %v1069 = vunpack.c.h.b16 %v996
        %v1070 = vunpack.c.l.b16 %v997
        %v1071 = vunpack.c.h.b16 %v997
        %v1072 = vunpack.c.l.b16 %v998
        %v1073 = vunpack.c.h.b16 %v998
        %v1074 = vunpack.c.l.b16 %v999
        %v1075 = vunpack.c.h.b16 %v999
        %v1076 = vunpack.c.l.b16 %v1000
        %v1077 = vunpack.c.h.b16 %v1000
        %v1078 = vunpack.c.l.b16 %v1001
        %v1079 = vunpack.c.h.b16 %v1001
        %v1080 = vunpack.c.l.b16 %v1002
        %v1081 = vunpack.c.h.b16 %v1002
        %v1082 = vunpack.c.l.b16 %v1003
        %v1083 = vunpack.c.h.b16 %v1003
        %v1084 = vunpack.c.l.b16 %v1004
        %v1085 = vunpack.c.h.b16 %v1004
        %v1086 = vunpack.c.l.b16 %v1005
        %v1087 = vunpack.c.h.b16 %v1005
        %v1088 = vunpack.c.l.b16 %v1006
        %v1089 = vunpack.c.h.b16 %v1006
        %v1090 = vunpack.c.l.b16 %v1007
        %v1091 = vunpack.c.h.b16 %v1007
        %v1092 = vunpack.c.l.b16 %v1008
        %v1093 = vunpack.c.h.b16 %v1008
        %v1094 = vunpack.c.l.b16 %v1009
        %v1095 = vunpack.c.h.b16 %v1009
        %v1096 = vunpack.c.l.b16 %v1010
        %v1097 = vunpack.c.h.b16 %v1010
        %v1098 = vunpack.c.l.b16 %v1011
        %v1099 = vunpack.c.h.b16 %v1011
        %v1100 = vunpack.c.l.b16 %v1012
        %v1101 = vunpack.c.h.b16 %v1012
        %v1102 = vunpack.c.l.b16 %v1013
        %v1103 = vunpack.c.h.b16 %v1013
        %v1104 = vunpack.c.l.b16 %v1014
        %v1105 = vunpack.c.h.b16 %v1014
        %v1106 = vunpack.c.l.b16 %v1015
        %v1107 = vunpack.c.h.b16 %v1015
        %v1108 = vunpack.c.l.b16 %v1016
        %v1109 = vunpack.c.h.b16 %v1016
        %v1110 = vunpack.c.l.b16 %v1017
        %v1111 = vunpack.c.h.b16 %v1017
        %v1112 = vunpack.c.l.b16 %v1018
        %v1113 = vunpack.c.h.b16 %v1018
        %v1114 = vunpack.c.l.b16 %v1019
        %v1115 = vunpack.c.h.b16 %v1019
        %v1116 = vunpack.c.l.b16 %v1020
        %v1117 = vunpack.c.h.b16 %v1020
        %v1118 = vunpack.c.l.b16 %v1021
        %v1119 = vunpack.c.h.b16 %v1021
        %v1120 = vunpack.c.l.b16 %v1022
        %v1121 = vunpack.c.h.b16 %v1022
        %v1122 = vunpack.c.l.b16 %v1023
        %v1123 = vunpack.c.h.b16 %v1023
        %v1124 = vpack.c.b16 %v1064, %v1060
        %v1125 = vpack.c.b16 %v1065, %v1061
        %v1126 = vpack.c.b16 %v1066, %v1062
        %v1127 = vpack.c.b16 %v1067, %v1063
        %v1128 = vpack.c.b16 %v1072, %v1068
        %v1129 = vpack.c.b16 %v1073, %v1069
        %v1130 = vpack.c.b16 %v1074, %v1070
        %v1131 = vpack.c.b16 %v1075, %v1071
        %v1132 = vpack.c.b16 %v1080, %v1076
        %v1133 = vpack.c.b16 %v1081, %v1077
        %v1134 = vpack.c.b16 %v1082, %v1078
        %v1135 = vpack.c.b16 %v1083, %v1079
        %v1136 = vpack.c.b16 %v1088, %v1084
        %v1137 = vpack.c.b16 %v1089, %v1085
        %v1138 = vpack.c.b16 %v1090, %v1086
        %v1139 = vpack.c.b16 %v1091, %v1087
        %v1140 = vpack.c.b16 %v1096, %v1092
        %v1141 = vpack.c.b16 %v1097, %v1093
        %v1142 = vpack.c.b16 %v1098, %v1094
        %v1143 = vpack.c.b16 %v1099, %v1095
        %v1144 = vpack.c.b16 %v1104, %v1100
        %v1145 = vpack.c.b16 %v1105, %v1101
        %v1146 = vpack.c.b16 %v1106, %v1102
        %v1147 = vpack.c.b16 %v1107, %v1103
        %v1148 = vpack.c.b16 %v1112, %v1108
        %v1149 = vpack.c.b16 %v1113, %v1109
        %v1150 = vpack.c.b16 %v1114, %v1110
        %v1151 = vpack.c.b16 %v1115, %v1111
        %v1152 = vpack.c.b16 %v1120, %v1116
        %v1153 = vpack.c.b16 %v1121, %v1117
        %v1154 = vpack.c.b16 %v1122, %v1118
        %v1155 = vpack.c.b16 %v1123, %v1119
        %1188 = vmatprep.subr.bf16.mxu0 %v1125
        %1189 = vmatpush1.bf16.msra.mxu0 %v1124
        %1190 = vmatprep.subr.bf16.mxu0 %v1129
        %1191 = vmatpush1.bf16.msra.mxu0 %v1128
        %1192 = vmatprep.subr.bf16.mxu0 %v1133
        %1193 = vmatpush1.bf16.msra.mxu0 %v1132
        %1194 = vmatprep.subr.bf16.mxu0 %v1137
        %1195 = vmatpush1.bf16.msra.mxu0 %v1136
        %1196 = vmatprep.subr.bf16.mxu0 %v1141
        %1197 = vmatpush1.bf16.msra.mxu0 %v1140
        %1198 = vmatprep.subr.bf16.mxu0 %v1145
        %1199 = vmatpush1.bf16.msra.mxu0 %v1144
        %1200 = vmatprep.subr.bf16.mxu0 %v1149
        %1201 = vmatpush1.bf16.msra.mxu0 %v1148
        %1202 = vmatprep.subr.bf16.mxu0 %v1153
        %1203 = vmatpush1.bf16.msra.mxu0 %v1152
        %1204 = vmatprep.subr.bf16.mxu0 0
        %1205 = vmatpush1.bf16.msra.mxu0 0
        %1206 = vmatprep.subr.bf16.mxu0 0
        %1207 = vmatpush1.bf16.msra.mxu0 0
        %1208 = vmatprep.subr.bf16.mxu0 0
        %1209 = vmatpush1.bf16.msra.mxu0 0
        %1210 = vmatprep.subr.bf16.mxu0 0
        %1211 = vmatpush1.bf16.msra.mxu0 0
        %1212 = vmatprep.subr.bf16.mxu0 0
        %1213 = vmatpush1.bf16.msra.mxu0 0
        %1214 = vmatprep.subr.bf16.mxu0 0
        %1215 = vmatpush1.bf16.msra.mxu0 0
        %1216 = vmatprep.subr.bf16.mxu0 0
        %1217 = vmatpush1.bf16.msra.mxu0 0
        %1218 = vmatprep.subr.bf16.mxu0 0
        %1219 = vmatpush1.bf16.msra.mxu0 0
        %1220 = vmatprep.mubr.bf16.mxu0 0
        %1221 = vmatmul.mubr.bf16.gmra.mrb[0].mxu0 0
        %v1222 = vpop.f32.mrb[0].mxu0
        %v1223 = vadd.f32 0.0, %v1222
        %v1224 = vpop.f32.mrb[0].mxu0
        %v1225 = vadd.f32 0.0, %v1224
        %v1226 = vpop.f32.mrb[0].mxu0
        %v1227 = vpop.f32.mrb[0].mxu0
        %1228 = vdwg.mxu0
        %1229 = vmatprep.subr.bf16.mxu0 %v1127
        %1230 = vmatpush1.bf16.msra.mxu0 %v1126
        %1231 = vmatprep.subr.bf16.mxu0 %v1131
        %1232 = vmatpush1.bf16.msra.mxu0 %v1130
        %1233 = vmatprep.subr.bf16.mxu0 %v1135
        %1234 = vmatpush1.bf16.msra.mxu0 %v1134
        %1235 = vmatprep.subr.bf16.mxu0 %v1139
        %1236 = vmatpush1.bf16.msra.mxu0 %v1138
        %1237 = vmatprep.subr.bf16.mxu0 %v1143
        %1238 = vmatpush1.bf16.msra.mxu0 %v1142
        %1239 = vmatprep.subr.bf16.mxu0 %v1147
        %1240 = vmatpush1.bf16.msra.mxu0 %v1146
        %1241 = vmatprep.subr.bf16.mxu0 %v1151
        %1242 = vmatpush1.bf16.msra.mxu0 %v1150
        %1243 = vmatprep.subr.bf16.mxu0 %v1155
        %1244 = vmatpush1.bf16.msra.mxu0 %v1154
        %1245 = vmatprep.subr.bf16.mxu0 0
        %1246 = vmatpush1.bf16.msra.mxu0 0
        %1247 = vmatprep.subr.bf16.mxu0 0
        %1248 = vmatpush1.bf16.msra.mxu0 0
        %1249 = vmatprep.subr.bf16.mxu0 0
        %1250 = vmatpush1.bf16.msra.mxu0 0
        %1251 = vmatprep.subr.bf16.mxu0 0
        %1252 = vmatpush1.bf16.msra.mxu0 0
        %1253 = vmatprep.subr.bf16.mxu0 0
        %1254 = vmatpush1.bf16.msra.mxu0 0
        %1255 = vmatprep.subr.bf16.mxu0 0
        %1256 = vmatpush1.bf16.msra.mxu0 0
        %1257 = vmatprep.subr.bf16.mxu0 0
        %1258 = vmatpush1.bf16.msra.mxu0 0
        %1259 = vmatprep.subr.bf16.mxu0 0
        %1260 = vmatpush1.bf16.msra.mxu0 0
        %1261 = vmatprep.mubr.bf16.mxu0 0
        %1262 = vmatmul.mubr.bf16.gmra.mrb[0].mxu0 0
        %v1263 = vpop.f32.mrb[0].mxu0
        %v1264 = vadd.f32 0.0, %v1263
        %v1265 = vpop.f32.mrb[0].mxu0
        %v1266 = vadd.f32 0.0, %v1265
        %v1267 = vpop.f32.mrb[0].mxu0
        %v1268 = vpop.f32.mrb[0].mxu0
        %1269 = vdwg.mxu0
        %v1270 = vadd.f32 %v1024, %v1223
        %v1271 = vadd.f32 %v1025, %v1225
        %v1272 = vadd.f32 %v1026, %v1264
        %v1273 = vadd.f32 %v1027, %v1266
        %v1274 = vxor.u32 %v1270, 2147483648
        %v1275 = vmul.f32 %v1274, 1.442695
        %v1276 = vpow.pop %v1275
        %v1277 = vadd.f32 %v1276, 1.0
        %v1278 = vrcp.pop %v1277
        %v1279 = vmul.f32 1.0, %v1278
        %v1280 = vxor.u32 %v1271, 2147483648
        %v1281 = vmul.f32 %v1280, 1.442695
        %v1282 = vpow.pop %v1281
        %v1283 = vadd.f32 %v1282, 1.0
        %v1284 = vrcp.pop %v1283
        %v1285 = vmul.f32 1.0, %v1284
        %v1286 = vtanh.pop %v1272
        %v1287 = vxor.u32 %v1273, 2147483648
        %v1288 = vmul.f32 %v1287, 1.442695
        %v1289 = vpow.pop %v1288
        %v1290 = vadd.f32 %v1289, 1.0
        %v1291 = vrcp.pop %v1290
        %v1292 = vmul.f32 1.0, %v1291
        %v1293 = vmul.f32 %v1285, 0.0
        %v1294 = vmul.f32 %v1279, %v1286
        %v1295 = vadd.f32 %v1293, %v1294
        %v1296 = vtanh.pop %v1295
        %v1297 = vmul.f32 %v1292, %v1296
        %1298 = vst [vmem:[#allocation3] sm:$0xff] %v1297
        %s1299 = scalar_lea.vmem [#allocation2], 32
        %v1300 = vld [vmem:[%s1299] sm:$0xff]
        %v1301 = vld [vmem:[%s1299 + $0x8] sm:$0xff]
        %v1302 = vld [vmem:[%s1299 + $0x10] sm:$0xff]
        %v1303 = vld [vmem:[%s1299 + $0x18] sm:$0xff]
        %v1304 = vpack.c.bf16 %v1297, %v1297
        %1305 = vmatprep.subr.bf16.mxu0 %v1125
        %1306 = vmatpush1.bf16.msra.mxu0 %v1124
        %1307 = vmatprep.subr.bf16.mxu0 %v1129
        %1308 = vmatpush1.bf16.msra.mxu0 %v1128
        %1309 = vmatprep.subr.bf16.mxu0 %v1133
        %1310 = vmatpush1.bf16.msra.mxu0 %v1132
        %1311 = vmatprep.subr.bf16.mxu0 %v1137
        %1312 = vmatpush1.bf16.msra.mxu0 %v1136
        %1313 = vmatprep.subr.bf16.mxu0 %v1141
        %1314 = vmatpush1.bf16.msra.mxu0 %v1140
        %1315 = vmatprep.subr.bf16.mxu0 %v1145
        %1316 = vmatpush1.bf16.msra.mxu0 %v1144
        %1317 = vmatprep.subr.bf16.mxu0 %v1149
        %1318 = vmatpush1.bf16.msra.mxu0 %v1148
        %1319 = vmatprep.subr.bf16.mxu0 %v1153
        %1320 = vmatpush1.bf16.msra.mxu0 %v1152
        %1321 = vmatprep.subr.bf16.mxu0 0
        %1322 = vmatpush1.bf16.msra.mxu0 0
        %1323 = vmatprep.subr.bf16.mxu0 0
        %1324 = vmatpush1.bf16.msra.mxu0 0
        %1325 = vmatprep.subr.bf16.mxu0 0
        %1326 = vmatpush1.bf16.msra.mxu0 0
        %1327 = vmatprep.subr.bf16.mxu0 0
        %1328 = vmatpush1.bf16.msra.mxu0 0
        %1329 = vmatprep.subr.bf16.mxu0 0
        %1330 = vmatpush1.bf16.msra.mxu0 0
        %1331 = vmatprep.subr.bf16.mxu0 0
        %1332 = vmatpush1.bf16.msra.mxu0 0
        %1333 = vmatprep.subr.bf16.mxu0 0
        %1334 = vmatpush1.bf16.msra.mxu0 0
        %1335 = vmatprep.subr.bf16.mxu0 0
        %1336 = vmatpush1.bf16.msra.mxu0 0
        %1337 = vmatprep.mubr.bf16.mxu0 0
        %1338 = vmatmul.mubr.bf16.gmra.mrb[0].mxu0 %v1304
        %v1339 = vpop.f32.mrb[0].mxu0
        %v1340 = vadd.f32 0.0, %v1339
        %v1341 = vpop.f32.mrb[0].mxu0
        %v1342 = vadd.f32 0.0, %v1341
        %v1343 = vpop.f32.mrb[0].mxu0
        %v1344 = vpop.f32.mrb[0].mxu0
        %1345 = vdwg.mxu0
        %1346 = vmatprep.subr.bf16.mxu0 %v1127
        %1347 = vmatpush1.bf16.msra.mxu0 %v1126
        %1348 = vmatprep.subr.bf16.mxu0 %v1131
        %1349 = vmatpush1.bf16.msra.mxu0 %v1130
        %1350 = vmatprep.subr.bf16.mxu0 %v1135
        %1351 = vmatpush1.bf16.msra.mxu0 %v1134
        %1352 = vmatprep.subr.bf16.mxu0 %v1139
        %1353 = vmatpush1.bf16.msra.mxu0 %v1138
        %1354 = vmatprep.subr.bf16.mxu0 %v1143
        %1355 = vmatpush1.bf16.msra.mxu0 %v1142
        %1356 = vmatprep.subr.bf16.mxu0 %v1147
        %1357 = vmatpush1.bf16.msra.mxu0 %v1146
        %1358 = vmatprep.subr.bf16.mxu0 %v1151
        %1359 = vmatpush1.bf16.msra.mxu0 %v1150
        %1360 = vmatprep.subr.bf16.mxu0 %v1155
        %1361 = vmatpush1.bf16.msra.mxu0 %v1154
        %1362 = vmatprep.subr.bf16.mxu0 0
        %1363 = vmatpush1.bf16.msra.mxu0 0
        %1364 = vmatprep.subr.bf16.mxu0 0
        %1365 = vmatpush1.bf16.msra.mxu0 0
        %1366 = vmatprep.subr.bf16.mxu0 0
        %1367 = vmatpush1.bf16.msra.mxu0 0
        %1368 = vmatprep.subr.bf16.mxu0 0
        %1369 = vmatpush1.bf16.msra.mxu0 0
        %1370 = vmatprep.subr.bf16.mxu0 0
        %1371 = vmatpush1.bf16.msra.mxu0 0
        %1372 = vmatprep.subr.bf16.mxu0 0
        %1373 = vmatpush1.bf16.msra.mxu0 0
        %1374 = vmatprep.subr.bf16.mxu0 0
        %1375 = vmatpush1.bf16.msra.mxu0 0
        %1376 = vmatprep.subr.bf16.mxu0 0
        %1377 = vmatpush1.bf16.msra.mxu0 0
        %1378 = vmatprep.mubr.bf16.mxu0 0
        %1379 = vmatmul.mubr.bf16.gmra.mrb[0].mxu0 %v1304
        %v1380 = vpop.f32.mrb[0].mxu0
        %v1381 = vadd.f32 0.0, %v1380
        %v1382 = vpop.f32.mrb[0].mxu0
        %v1383 = vadd.f32 0.0, %v1382
        %v1384 = vpop.f32.mrb[0].mxu0
        %v1385 = vpop.f32.mrb[0].mxu0
        %1386 = vdwg.mxu0
        %v1387 = vadd.f32 %v1300, %v1340
        %v1388 = vadd.f32 %v1301, %v1342
        %v1389 = vadd.f32 %v1302, %v1381
        %v1390 = vadd.f32 %v1303, %v1383
        %v1391 = vxor.u32 %v1387, 2147483648
        %v1392 = vmul.f32 %v1391, 1.442695
        %v1393 = vpow.pop %v1392
        %v1394 = vadd.f32 %v1393, 1.0
        %v1395 = vrcp.pop %v1394
        %v1396 = vmul.f32 1.0, %v1395
        %v1397 = vxor.u32 %v1388, 2147483648
        %v1398 = vmul.f32 %v1397, 1.442695
        %v1399 = vpow.pop %v1398
        %v1400 = vadd.f32 %v1399, 1.0
        %v1401 = vrcp.pop %v1400
        %v1402 = vmul.f32 1.0, %v1401
        %v1403 = vtanh.pop %v1389
        %v1404 = vxor.u32 %v1390, 2147483648
        %v1405 = vmul.f32 %v1404, 1.442695
        %v1406 = vpow.pop %v1405
        %v1407 = vadd.f32 %v1406, 1.0
        %v1408 = vrcp.pop %v1407
        %v1409 = vmul.f32 1.0, %v1408
        %v1410 = vmul.f32 %v1402, %v1295
        %v1411 = vmul.f32 %v1396, %v1403
        %v1412 = vadd.f32 %v1410, %v1411
        %v1413 = vtanh.pop %v1412
        %v1414 = vmul.f32 %v1409, %v1413
        %s1415 = scalar_lea.vmem [#allocation3], 8
        %1416 = vst [vmem:[%s1415] sm:$0xff] %v1414
        %s1417 = scalar_lea.vmem [#allocation2], 64
        %v1418 = vld [vmem:[%s1417] sm:$0xff]
        %v1419 = vld [vmem:[%s1417 + $0x8] sm:$0xff]
        %v1420 = vld [vmem:[%s1417 + $0x10] sm:$0xff]
        %v1421 = vld [vmem:[%s1417 + $0x18] sm:$0xff]
        %v1422 = vpack.c.bf16 %v1414, %v1414
        %1423 = vmatprep.subr.bf16.mxu0 %v1125
        %1424 = vmatpush1.bf16.msra.mxu0 %v1124
        %1425 = vmatprep.subr.bf16.mxu0 %v1129
        %1426 = vmatpush1.bf16.msra.mxu0 %v1128
        %1427 = vmatprep.subr.bf16.mxu0 %v1133
        %1428 = vmatpush1.bf16.msra.mxu0 %v1132
        %1429 = vmatprep.subr.bf16.mxu0 %v1137
        %1430 = vmatpush1.bf16.msra.mxu0 %v1136
        %1431 = vmatprep.subr.bf16.mxu0 %v1141
        %1432 = vmatpush1.bf16.msra.mxu0 %v1140
        %1433 = vmatprep.subr.bf16.mxu0 %v1145
        %1434 = vmatpush1.bf16.msra.mxu0 %v1144
        %1435 = vmatprep.subr.bf16.mxu0 %v1149
        %1436 = vmatpush1.bf16.msra.mxu0 %v1148
        %1437 = vmatprep.subr.bf16.mxu0 %v1153
        %1438 = vmatpush1.bf16.msra.mxu0 %v1152
        %1439 = vmatprep.subr.bf16.mxu0 0
        %1440 = vmatpush1.bf16.msra.mxu0 0
        %1441 = vmatprep.subr.bf16.mxu0 0
        %1442 = vmatpush1.bf16.msra.mxu0 0
        %1443 = vmatprep.subr.bf16.mxu0 0
        %1444 = vmatpush1.bf16.msra.mxu0 0
        %1445 = vmatprep.subr.bf16.mxu0 0
        %1446 = vmatpush1.bf16.msra.mxu0 0
        %1447 = vmatprep.subr.bf16.mxu0 0
        %1448 = vmatpush1.bf16.msra.mxu0 0
        %1449 = vmatprep.subr.bf16.mxu0 0
        %1450 = vmatpush1.bf16.msra.mxu0 0
        %1451 = vmatprep.subr.bf16.mxu0 0
        %1452 = vmatpush1.bf16.msra.mxu0 0
        %1453 = vmatprep.subr.bf16.mxu0 0
        %1454 = vmatpush1.bf16.msra.mxu0 0
        %1455 = vmatprep.mubr.bf16.mxu0 0
        %1456 = vmatmul.mubr.bf16.gmra.mrb[0].mxu0 %v1422
        %v1457 = vpop.f32.mrb[0].mxu0
        %v1458 = vadd.f32 0.0, %v1457
        %v1459 = vpop.f32.mrb[0].mxu0
        %v1460 = vadd.f32 0.0, %v1459
        %v1461 = vpop.f32.mrb[0].mxu0
        %v1462 = vpop.f32.mrb[0].mxu0
        %1463 = vdwg.mxu0
        %1464 = vmatprep.subr.bf16.mxu0 %v1127
        %1465 = vmatpush1.bf16.msra.mxu0 %v1126
        %1466 = vmatprep.subr.bf16.mxu0 %v1131
        %1467 = vmatpush1.bf16.msra.mxu0 %v1130
        %1468 = vmatprep.subr.bf16.mxu0 %v1135
        %1469 = vmatpush1.bf16.msra.mxu0 %v1134
        %1470 = vmatprep.subr.bf16.mxu0 %v1139
        %1471 = vmatpush1.bf16.msra.mxu0 %v1138
        %1472 = vmatprep.subr.bf16.mxu0 %v1143
        %1473 = vmatpush1.bf16.msra.mxu0 %v1142
        %1474 = vmatprep.subr.bf16.mxu0 %v1147
        %1475 = vmatpush1.bf16.msra.mxu0 %v1146
        %1476 = vmatprep.subr.bf16.mxu0 %v1151
        %1477 = vmatpush1.bf16.msra.mxu0 %v1150
        %1478 = vmatprep.subr.bf16.mxu0 %v1155
        %1479 = vmatpush1.bf16.msra.mxu0 %v1154
        %1480 = vmatprep.subr.bf16.mxu0 0
        %1481 = vmatpush1.bf16.msra.mxu0 0
        %1482 = vmatprep.subr.bf16.mxu0 0
        %1483 = vmatpush1.bf16.msra.mxu0 0
        %1484 = vmatprep.subr.bf16.mxu0 0
        %1485 = vmatpush1.bf16.msra.mxu0 0
        %1486 = vmatprep.subr.bf16.mxu0 0
        %1487 = vmatpush1.bf16.msra.mxu0 0
        %1488 = vmatprep.subr.bf16.mxu0 0
        %1489 = vmatpush1.bf16.msra.mxu0 0
        %1490 = vmatprep.subr.bf16.mxu0 0
        %1491 = vmatpush1.bf16.msra.mxu0 0
        %1492 = vmatprep.subr.bf16.mxu0 0
        %1493 = vmatpush1.bf16.msra.mxu0 0
        %1494 = vmatprep.subr.bf16.mxu0 0
        %1495 = vmatpush1.bf16.msra.mxu0 0
        %1496 = vmatprep.mubr.bf16.mxu0 0
        %1497 = vmatmul.mubr.bf16.gmra.mrb[0].mxu0 %v1422
        %v1498 = vpop.f32.mrb[0].mxu0
        %v1499 = vadd.f32 0.0, %v1498
        %v1500 = vpop.f32.mrb[0].mxu0
        %v1501 = vadd.f32 0.0, %v1500
        %v1502 = vpop.f32.mrb[0].mxu0
        %v1503 = vpop.f32.mrb[0].mxu0
        %1504 = vdwg.mxu0
        %v1505 = vadd.f32 %v1418, %v1458
        %v1506 = vadd.f32 %v1419, %v1460
        %v1507 = vadd.f32 %v1420, %v1499
        %v1508 = vadd.f32 %v1421, %v1501
        %v1509 = vxor.u32 %v1505, 2147483648
        %v1510 = vmul.f32 %v1509, 1.442695
        %v1511 = vpow.pop %v1510
        %v1512 = vadd.f32 %v1511, 1.0
        %v1513 = vrcp.pop %v1512
        %v1514 = vmul.f32 1.0, %v1513
        %v1515 = vxor.u32 %v1506, 2147483648
        %v1516 = vmul.f32 %v1515, 1.442695
        %v1517 = vpow.pop %v1516
        %v1518 = vadd.f32 %v1517, 1.0
        %v1519 = vrcp.pop %v1518
        %v1520 = vmul.f32 1.0, %v1519
        %v1521 = vtanh.pop %v1507
        %v1522 = vxor.u32 %v1508, 2147483648
        %v1523 = vmul.f32 %v1522, 1.442695
        %v1524 = vpow.pop %v1523
        %v1525 = vadd.f32 %v1524, 1.0
        %v1526 = vrcp.pop %v1525
        %v1527 = vmul.f32 1.0, %v1526
        %v1528 = vmul.f32 %v1520, %v1412
        %v1529 = vmul.f32 %v1514, %v1521
        %v1530 = vadd.f32 %v1528, %v1529
        %v1531 = vtanh.pop %v1530
        %v1532 = vmul.f32 %v1527, %v1531
        %s1533 = scalar_lea.vmem [#allocation3], 16
        %1534 = vst [vmem:[%s1533] sm:$0xff] %v1532
        %s1535 = scalar_lea.vmem [#allocation2], 96
        %v1536 = vld [vmem:[%s1535] sm:$0xff]
        %v1537 = vld [vmem:[%s1535 + $0x8] sm:$0xff]
        %v1538 = vld [vmem:[%s1535 + $0x10] sm:$0xff]
        %v1539 = vld [vmem:[%s1535 + $0x18] sm:$0xff]
        %v1540 = vpack.c.bf16 %v1532, %v1532
        %1541 = vmatprep.subr.bf16.mxu0 %v1125
        %1542 = vmatpush1.bf16.msra.mxu0 %v1124
        %1543 = vmatprep.subr.bf16.mxu0 %v1129
        %1544 = vmatpush1.bf16.msra.mxu0 %v1128
        %1545 = vmatprep.subr.bf16.mxu0 %v1133
        %1546 = vmatpush1.bf16.msra.mxu0 %v1132
        %1547 = vmatprep.subr.bf16.mxu0 %v1137
        %1548 = vmatpush1.bf16.msra.mxu0 %v1136
        %1549 = vmatprep.subr.bf16.mxu0 %v1141
        %1550 = vmatpush1.bf16.msra.mxu0 %v1140
        %1551 = vmatprep.subr.bf16.mxu0 %v1145
        %1552 = vmatpush1.bf16.msra.mxu0 %v1144
        %1553 = vmatprep.subr.bf16.mxu0 %v1149
        %1554 = vmatpush1.bf16.msra.mxu0 %v1148
        %1555 = vmatprep.subr.bf16.mxu0 %v1153
        %1556 = vmatpush1.bf16.msra.mxu0 %v1152
        %1557 = vmatprep.subr.bf16.mxu0 0
        %1558 = vmatpush1.bf16.msra.mxu0 0
        %1559 = vmatprep.subr.bf16.mxu0 0
        %1560 = vmatpush1.bf16.msra.mxu0 0
        %1561 = vmatprep.subr.bf16.mxu0 0
        %1562 = vmatpush1.bf16.msra.mxu0 0
        %1563 = vmatprep.subr.bf16.mxu0 0
        %1564 = vmatpush1.bf16.msra.mxu0 0
        %1565 = vmatprep.subr.bf16.mxu0 0
        %1566 = vmatpush1.bf16.msra.mxu0 0
        %1567 = vmatprep.subr.bf16.mxu0 0
        %1568 = vmatpush1.bf16.msra.mxu0 0
        %1569 = vmatprep.subr.bf16.mxu0 0
        %1570 = vmatpush1.bf16.msra.mxu0 0
        %1571 = vmatprep.subr.bf16.mxu0 0
        %1572 = vmatpush1.bf16.msra.mxu0 0
        %1573 = vmatprep.mubr.bf16.mxu0 0
        %1574 = vmatmul.mubr.bf16.gmra.mrb[0].mxu0 %v1540
        %v1575 = vpop.f32.mrb[0].mxu0
        %v1576 = vadd.f32 0.0, %v1575
        %v1577 = vpop.f32.mrb[0].mxu0
        %v1578 = vadd.f32 0.0, %v1577
        %v1579 = vpop.f32.mrb[0].mxu0
        %v1580 = vpop.f32.mrb[0].mxu0
        %1581 = vdwg.mxu0
        %1582 = vmatprep.subr.bf16.mxu0 %v1127
        %1583 = vmatpush1.bf16.msra.mxu0 %v1126
        %1584 = vmatprep.subr.bf16.mxu0 %v1131
        %1585 = vmatpush1.bf16.msra.mxu0 %v1130
        %1586 = vmatprep.subr.bf16.mxu0 %v1135
        %1587 = vmatpush1.bf16.msra.mxu0 %v1134
        %1588 = vmatprep.subr.bf16.mxu0 %v1139
        %1589 = vmatpush1.bf16.msra.mxu0 %v1138
        %1590 = vmatprep.subr.bf16.mxu0 %v1143
        %1591 = vmatpush1.bf16.msra.mxu0 %v1142
        %1592 = vmatprep.subr.bf16.mxu0 %v1147
        %1593 = vmatpush1.bf16.msra.mxu0 %v1146
        %1594 = vmatprep.subr.bf16.mxu0 %v1151
        %1595 = vmatpush1.bf16.msra.mxu0 %v1150
        %1596 = vmatprep.subr.bf16.mxu0 %v1155
        %1597 = vmatpush1.bf16.msra.mxu0 %v1154
        %1598 = vmatprep.subr.bf16.mxu0 0
        %1599 = vmatpush1.bf16.msra.mxu0 0
        %1600 = vmatprep.subr.bf16.mxu0 0
        %1601 = vmatpush1.bf16.msra.mxu0 0
        %1602 = vmatprep.subr.bf16.mxu0 0
        %1603 = vmatpush1.bf16.msra.mxu0 0
        %1604 = vmatprep.subr.bf16.mxu0 0
        %1605 = vmatpush1.bf16.msra.mxu0 0
        %1606 = vmatprep.subr.bf16.mxu0 0
        %1607 = vmatpush1.bf16.msra.mxu0 0
        %1608 = vmatprep.subr.bf16.mxu0 0
        %1609 = vmatpush1.bf16.msra.mxu0 0
        %1610 = vmatprep.subr.bf16.mxu0 0
        %1611 = vmatpush1.bf16.msra.mxu0 0
        %1612 = vmatprep.subr.bf16.mxu0 0
        %1613 = vmatpush1.bf16.msra.mxu0 0
        %1614 = vmatprep.mubr.bf16.mxu0 0
        %1615 = vmatmul.mubr.bf16.gmra.mrb[0].mxu0 %v1540
        %v1616 = vpop.f32.mrb[0].mxu0
        %v1617 = vadd.f32 0.0, %v1616
        %v1618 = vpop.f32.mrb[0].mxu0
        %v1619 = vadd.f32 0.0, %v1618
        %v1620 = vpop.f32.mrb[0].mxu0
        %v1621 = vpop.f32.mrb[0].mxu0
        %1622 = vdwg.mxu0
        %v1623 = vadd.f32 %v1536, %v1576
        %v1624 = vadd.f32 %v1537, %v1578
        %v1625 = vadd.f32 %v1538, %v1617
        %v1626 = vadd.f32 %v1539, %v1619
        %v1627 = vxor.u32 %v1623, 2147483648
        %v1628 = vmul.f32 %v1627, 1.442695
        %v1629 = vpow.pop %v1628
        %v1630 = vadd.f32 %v1629, 1.0
        %v1631 = vrcp.pop %v1630
        %v1632 = vmul.f32 1.0, %v1631
        %v1633 = vxor.u32 %v1624, 2147483648
        %v1634 = vmul.f32 %v1633, 1.442695
        %v1635 = vpow.pop %v1634
        %v1636 = vadd.f32 %v1635, 1.0
        %v1637 = vrcp.pop %v1636
        %v1638 = vmul.f32 1.0, %v1637
        %v1639 = vtanh.pop %v1625
        %v1640 = vxor.u32 %v1626, 2147483648
        %v1641 = vmul.f32 %v1640, 1.442695
        %v1642 = vpow.pop %v1641
        %v1643 = vadd.f32 %v1642, 1.0
        %v1644 = vrcp.pop %v1643
        %v1645 = vmul.f32 1.0, %v1644
        %v1646 = vmul.f32 %v1638, %v1530
        %v1647 = vmul.f32 %v1632, %v1639
        %v1648 = vadd.f32 %v1646, %v1647
        %v1649 = vtanh.pop %v1648
        %v1650 = vmul.f32 %v1645, %v1649
        %s1651 = scalar_lea.vmem [#allocation3], 24
        %1652 = vst [vmem:[%s1651] sm:$0xff] %v1650
        %s1653 = scalar_lea.vmem [#allocation2], 128
        %v1654 = vld [vmem:[%s1653] sm:$0xff]
        %v1655 = vld [vmem:[%s1653 + $0x8] sm:$0xff]
        %v1656 = vld [vmem:[%s1653 + $0x10] sm:$0xff]
        %v1657 = vld [vmem:[%s1653 + $0x18] sm:$0xff]
        %v1658 = vpack.c.bf16 %v1650, %v1650
        %1659 = vmatprep.subr.bf16.mxu0 %v1125
        %1660 = vmatpush1.bf16.msra.mxu0 %v1124
        %1661 = vmatprep.subr.bf16.mxu0 %v1129
        %1662 = vmatpush1.bf16.msra.mxu0 %v1128
        %1663 = vmatprep.subr.bf16.mxu0 %v1133
        %1664 = vmatpush1.bf16.msra.mxu0 %v1132
        %1665 = vmatprep.subr.bf16.mxu0 %v1137
        %1666 = vmatpush1.bf16.msra.mxu0 %v1136
        %1667 = vmatprep.subr.bf16.mxu0 %v1141
        %1668 = vmatpush1.bf16.msra.mxu0 %v1140
        %1669 = vmatprep.subr.bf16.mxu0 %v1145
        %1670 = vmatpush1.bf16.msra.mxu0 %v1144
        %1671 = vmatprep.subr.bf16.mxu0 %v1149
        %1672 = vmatpush1.bf16.msra.mxu0 %v1148
        %1673 = vmatprep.subr.bf16.mxu0 %v1153
        %1674 = vmatpush1.bf16.msra.mxu0 %v1152
        %1675 = vmatprep.subr.bf16.mxu0 0
        %1676 = vmatpush1.bf16.msra.mxu0 0
        %1677 = vmatprep.subr.bf16.mxu0 0
        %1678 = vmatpush1.bf16.msra.mxu0 0
        %1679 = vmatprep.subr.bf16.mxu0 0
        %1680 = vmatpush1.bf16.msra.mxu0 0
        %1681 = vmatprep.subr.bf16.mxu0 0
        %1682 = vmatpush1.bf16.msra.mxu0 0
        %1683 = vmatprep.subr.bf16.mxu0 0
        %1684 = vmatpush1.bf16.msra.mxu0 0
        %1685 = vmatprep.subr.bf16.mxu0 0
        %1686 = vmatpush1.bf16.msra.mxu0 0
        %1687 = vmatprep.subr.bf16.mxu0 0
        %1688 = vmatpush1.bf16.msra.mxu0 0
        %1689 = vmatprep.subr.bf16.mxu0 0
        %1690 = vmatpush1.bf16.msra.mxu0 0
        %1691 = vmatprep.mubr.bf16.mxu0 0
        %1692 = vmatmul.mubr.bf16.gmra.mrb[0].mxu0 %v1658
        %v1693 = vpop.f32.mrb[0].mxu0
        %v1694 = vadd.f32 0.0, %v1693
        %v1695 = vpop.f32.mrb[0].mxu0
        %v1696 = vadd.f32 0.0, %v1695
        %v1697 = vpop.f32.mrb[0].mxu0
        %v1698 = vpop.f32.mrb[0].mxu0
        %1699 = vdwg.mxu0
        %1700 = vmatprep.subr.bf16.mxu0 %v1127
        %1701 = vmatpush1.bf16.msra.mxu0 %v1126
        %1702 = vmatprep.subr.bf16.mxu0 %v1131
        %1703 = vmatpush1.bf16.msra.mxu0 %v1130
        %1704 = vmatprep.subr.bf16.mxu0 %v1135
        %1705 = vmatpush1.bf16.msra.mxu0 %v1134
        %1706 = vmatprep.subr.bf16.mxu0 %v1139
        %1707 = vmatpush1.bf16.msra.mxu0 %v1138
        %1708 = vmatprep.subr.bf16.mxu0 %v1143
        %1709 = vmatpush1.bf16.msra.mxu0 %v1142
        %1710 = vmatprep.subr.bf16.mxu0 %v1147
        %1711 = vmatpush1.bf16.msra.mxu0 %v1146
        %1712 = vmatprep.subr.bf16.mxu0 %v1151
        %1713 = vmatpush1.bf16.msra.mxu0 %v1150
        %1714 = vmatprep.subr.bf16.mxu0 %v1155
        %1715 = vmatpush1.bf16.msra.mxu0 %v1154
        %1716 = vmatprep.subr.bf16.mxu0 0
        %1717 = vmatpush1.bf16.msra.mxu0 0
        %1718 = vmatprep.subr.bf16.mxu0 0
        %1719 = vmatpush1.bf16.msra.mxu0 0
        %1720 = vmatprep.subr.bf16.mxu0 0
        %1721 = vmatpush1.bf16.msra.mxu0 0
        %1722 = vmatprep.subr.bf16.mxu0 0
        %1723 = vmatpush1.bf16.msra.mxu0 0
        %1724 = vmatprep.subr.bf16.mxu0 0
        %1725 = vmatpush1.bf16.msra.mxu0 0
        %1726 = vmatprep.subr.bf16.mxu0 0
        %1727 = vmatpush1.bf16.msra.mxu0 0
        %1728 = vmatprep.subr.bf16.mxu0 0
        %1729 = vmatpush1.bf16.msra.mxu0 0
        %1730 = vmatprep.subr.bf16.mxu0 0
        %1731 = vmatpush1.bf16.msra.mxu0 0
        %1732 = vmatprep.mubr.bf16.mxu0 0
        %1733 = vmatmul.mubr.bf16.gmra.mrb[0].mxu0 %v1658
        %v1734 = vpop.f32.mrb[0].mxu0
        %v1735 = vadd.f32 0.0, %v1734
        %v1736 = vpop.f32.mrb[0].mxu0
        %v1737 = vadd.f32 0.0, %v1736
        %v1738 = vpop.f32.mrb[0].mxu0
        %v1739 = vpop.f32.mrb[0].mxu0
        %1740 = vdwg.mxu0
        %v1741 = vadd.f32 %v1654, %v1694
        %v1742 = vadd.f32 %v1655, %v1696
        %v1743 = vadd.f32 %v1656, %v1735
        %v1744 = vadd.f32 %v1657, %v1737
        %v1745 = vxor.u32 %v1741, 2147483648
        %v1746 = vmul.f32 %v1745, 1.442695
        %v1747 = vpow.pop %v1746
        %v1748 = vadd.f32 %v1747, 1.0
        %v1749 = vrcp.pop %v1748
        %v1750 = vmul.f32 1.0, %v1749
        %v1751 = vxor.u32 %v1742, 2147483648
        %v1752 = vmul.f32 %v1751, 1.442695
        %v1753 = vpow.pop %v1752
        %v1754 = vadd.f32 %v1753, 1.0
        %v1755 = vrcp.pop %v1754
        %v1756 = vmul.f32 1.0, %v1755
        %v1757 = vtanh.pop %v1743
        %v1758 = vxor.u32 %v1744, 2147483648
        %v1759 = vmul.f32 %v1758, 1.442695
        %v1760 = vpow.pop %v1759
        %v1761 = vadd.f32 %v1760, 1.0
        %v1762 = vrcp.pop %v1761
        %v1763 = vmul.f32 1.0, %v1762
        %v1764 = vmul.f32 %v1756, %v1648
        %v1765 = vmul.f32 %v1750, %v1757
        %v1766 = vadd.f32 %v1764, %v1765
        %v1767 = vtanh.pop %v1766
        %v1768 = vmul.f32 %v1763, %v1767
        %s1769 = scalar_lea.vmem [#allocation3], 32
        %1770 = vst [vmem:[%s1769] sm:$0xff] %v1768
        %s1771 = scalar_lea.vmem [#allocation2], 160
        %v1772 = vld [vmem:[%s1771] sm:$0xff]
        %v1773 = vld [vmem:[%s1771 + $0x8] sm:$0xff]
        %v1774 = vld [vmem:[%s1771 + $0x10] sm:$0xff]
        %v1775 = vld [vmem:[%s1771 + $0x18] sm:$0xff]
        %v1776 = vpack.c.bf16 %v1768, %v1768
        %1777 = vmatprep.subr.bf16.mxu0 %v1125
        %1778 = vmatpush1.bf16.msra.mxu0 %v1124
        %1779 = vmatprep.subr.bf16.mxu0 %v1129
        %1780 = vmatpush1.bf16.msra.mxu0 %v1128
        %1781 = vmatprep.subr.bf16.mxu0 %v1133
        %1782 = vmatpush1.bf16.msra.mxu0 %v1132
        %1783 = vmatprep.subr.bf16.mxu0 %v1137
        %1784 = vmatpush1.bf16.msra.mxu0 %v1136
        %1785 = vmatprep.subr.bf16.mxu0 %v1141
        %1786 = vmatpush1.bf16.msra.mxu0 %v1140
        %1787 = vmatprep.subr.bf16.mxu0 %v1145
        %1788 = vmatpush1.bf16.msra.mxu0 %v1144
        %1789 = vmatprep.subr.bf16.mxu0 %v1149
        %1790 = vmatpush1.bf16.msra.mxu0 %v1148
        %1791 = vmatprep.subr.bf16.mxu0 %v1153
        %1792 = vmatpush1.bf16.msra.mxu0 %v1152
        %1793 = vmatprep.subr.bf16.mxu0 0
        %1794 = vmatpush1.bf16.msra.mxu0 0
        %1795 = vmatprep.subr.bf16.mxu0 0
        %1796 = vmatpush1.bf16.msra.mxu0 0
        %1797 = vmatprep.subr.bf16.mxu0 0
        %1798 = vmatpush1.bf16.msra.mxu0 0
        %1799 = vmatprep.subr.bf16.mxu0 0
        %1800 = vmatpush1.bf16.msra.mxu0 0
        %1801 = vmatprep.subr.bf16.mxu0 0
        %1802 = vmatpush1.bf16.msra.mxu0 0
        %1803 = vmatprep.subr.bf16.mxu0 0
        %1804 = vmatpush1.bf16.msra.mxu0 0
        %1805 = vmatprep.subr.bf16.mxu0 0
        %1806 = vmatpush1.bf16.msra.mxu0 0
        %1807 = vmatprep.subr.bf16.mxu0 0
        %1808 = vmatpush1.bf16.msra.mxu0 0
        %1809 = vmatprep.mubr.bf16.mxu0 0
        %1810 = vmatmul.mubr.bf16.gmra.mrb[0].mxu0 %v1776
        %v1811 = vpop.f32.mrb[0].mxu0
        %v1812 = vadd.f32 0.0, %v1811
        %v1813 = vpop.f32.mrb[0].mxu0
        %v1814 = vadd.f32 0.0, %v1813
        %v1815 = vpop.f32.mrb[0].mxu0
        %v1816 = vpop.f32.mrb[0].mxu0
        %1817 = vdwg.mxu0
        %1818 = vmatprep.subr.bf16.mxu0 %v1127
        %1819 = vmatpush1.bf16.msra.mxu0 %v1126
        %1820 = vmatprep.subr.bf16.mxu0 %v1131
        %1821 = vmatpush1.bf16.msra.mxu0 %v1130
        %1822 = vmatprep.subr.bf16.mxu0 %v1135
        %1823 = vmatpush1.bf16.msra.mxu0 %v1134
        %1824 = vmatprep.subr.bf16.mxu0 %v1139
        %1825 = vmatpush1.bf16.msra.mxu0 %v1138
        %1826 = vmatprep.subr.bf16.mxu0 %v1143
        %1827 = vmatpush1.bf16.msra.mxu0 %v1142
        %1828 = vmatprep.subr.bf16.mxu0 %v1147
        %1829 = vmatpush1.bf16.msra.mxu0 %v1146
        %1830 = vmatprep.subr.bf16.mxu0 %v1151
        %1831 = vmatpush1.bf16.msra.mxu0 %v1150
        %1832 = vmatprep.subr.bf16.mxu0 %v1155
        %1833 = vmatpush1.bf16.msra.mxu0 %v1154
        %1834 = vmatprep.subr.bf16.mxu0 0
        %1835 = vmatpush1.bf16.msra.mxu0 0
        %1836 = vmatprep.subr.bf16.mxu0 0
        %1837 = vmatpush1.bf16.msra.mxu0 0
        %1838 = vmatprep.subr.bf16.mxu0 0
        %1839 = vmatpush1.bf16.msra.mxu0 0
        %1840 = vmatprep.subr.bf16.mxu0 0
        %1841 = vmatpush1.bf16.msra.mxu0 0
        %1842 = vmatprep.subr.bf16.mxu0 0
        %1843 = vmatpush1.bf16.msra.mxu0 0
        %1844 = vmatprep.subr.bf16.mxu0 0
        %1845 = vmatpush1.bf16.msra.mxu0 0
        %1846 = vmatprep.subr.bf16.mxu0 0
        %1847 = vmatpush1.bf16.msra.mxu0 0
        %1848 = vmatprep.subr.bf16.mxu0 0
        %1849 = vmatpush1.bf16.msra.mxu0 0
        %1850 = vmatprep.mubr.bf16.mxu0 0
        %1851 = vmatmul.mubr.bf16.gmra.mrb[0].mxu0 %v1776
        %v1852 = vpop.f32.mrb[0].mxu0
        %v1853 = vadd.f32 0.0, %v1852
        %v1854 = vpop.f32.mrb[0].mxu0
        %v1855 = vadd.f32 0.0, %v1854
        %v1856 = vpop.f32.mrb[0].mxu0
        %v1857 = vpop.f32.mrb[0].mxu0
        %1858 = vdwg.mxu0
        %v1859 = vadd.f32 %v1772, %v1812
        %v1860 = vadd.f32 %v1773, %v1814
        %v1861 = vadd.f32 %v1774, %v1853
        %v1862 = vadd.f32 %v1775, %v1855
        %v1863 = vxor.u32 %v1859, 2147483648
        %v1864 = vmul.f32 %v1863, 1.442695
        %v1865 = vpow.pop %v1864
        %v1866 = vadd.f32 %v1865, 1.0
        %v1867 = vrcp.pop %v1866
        %v1868 = vmul.f32 1.0, %v1867
        %v1869 = vxor.u32 %v1860, 2147483648
        %v1870 = vmul.f32 %v1869, 1.442695
        %v1871 = vpow.pop %v1870
        %v1872 = vadd.f32 %v1871, 1.0
        %v1873 = vrcp.pop %v1872
        %v1874 = vmul.f32 1.0, %v1873
        %v1875 = vtanh.pop %v1861
        %v1876 = vxor.u32 %v1862, 2147483648
        %v1877 = vmul.f32 %v1876, 1.442695
        %v1878 = vpow.pop %v1877
        %v1879 = vadd.f32 %v1878, 1.0
        %v1880 = vrcp.pop %v1879
        %v1881 = vmul.f32 1.0, %v1880
        %v1882 = vmul.f32 %v1874, %v1766
        %v1883 = vmul.f32 %v1868, %v1875
        %v1884 = vadd.f32 %v1882, %v1883
        %v1885 = vtanh.pop %v1884
        %v1886 = vmul.f32 %v1881, %v1885
        %s1887 = scalar_lea.vmem [#allocation3], 40
        %1888 = vst [vmem:[%s1887] sm:$0xff] %v1886
        %s1889 = scalar_lea.vmem [#allocation2], 192
        %v1890 = vld [vmem:[%s1889] sm:$0xff]
        %v1891 = vld [vmem:[%s1889 + $0x8] sm:$0xff]
        %v1892 = vld [vmem:[%s1889 + $0x10] sm:$0xff]
        %v1893 = vld [vmem:[%s1889 + $0x18] sm:$0xff]
        %v1894 = vpack.c.bf16 %v1886, %v1886
        %1895 = vmatprep.subr.bf16.mxu0 %v1125
        %1896 = vmatpush1.bf16.msra.mxu0 %v1124
        %1897 = vmatprep.subr.bf16.mxu0 %v1129
        %1898 = vmatpush1.bf16.msra.mxu0 %v1128
        %1899 = vmatprep.subr.bf16.mxu0 %v1133
        %1900 = vmatpush1.bf16.msra.mxu0 %v1132
        %1901 = vmatprep.subr.bf16.mxu0 %v1137
        %1902 = vmatpush1.bf16.msra.mxu0 %v1136
        %1903 = vmatprep.subr.bf16.mxu0 %v1141
        %1904 = vmatpush1.bf16.msra.mxu0 %v1140
        %1905 = vmatprep.subr.bf16.mxu0 %v1145
        %1906 = vmatpush1.bf16.msra.mxu0 %v1144
        %1907 = vmatprep.subr.bf16.mxu0 %v1149
        %1908 = vmatpush1.bf16.msra.mxu0 %v1148
        %1909 = vmatprep.subr.bf16.mxu0 %v1153
        %1910 = vmatpush1.bf16.msra.mxu0 %v1152
        %1911 = vmatprep.subr.bf16.mxu0 0
        %1912 = vmatpush1.bf16.msra.mxu0 0
        %1913 = vmatprep.subr.bf16.mxu0 0
        %1914 = vmatpush1.bf16.msra.mxu0 0
        %1915 = vmatprep.subr.bf16.mxu0 0
        %1916 = vmatpush1.bf16.msra.mxu0 0
        %1917 = vmatprep.subr.bf16.mxu0 0
        %1918 = vmatpush1.bf16.msra.mxu0 0
        %1919 = vmatprep.subr.bf16.mxu0 0
        %1920 = vmatpush1.bf16.msra.mxu0 0
        %1921 = vmatprep.subr.bf16.mxu0 0
        %1922 = vmatpush1.bf16.msra.mxu0 0
        %1923 = vmatprep.subr.bf16.mxu0 0
        %1924 = vmatpush1.bf16.msra.mxu0 0
        %1925 = vmatprep.subr.bf16.mxu0 0
        %1926 = vmatpush1.bf16.msra.mxu0 0
        %1927 = vmatprep.mubr.bf16.mxu0 0
        %1928 = vmatmul.mubr.bf16.gmra.mrb[0].mxu0 %v1894
        %v1929 = vpop.f32.mrb[0].mxu0
        %v1930 = vadd.f32 0.0, %v1929
        %v1931 = vpop.f32.mrb[0].mxu0
        %v1932 = vadd.f32 0.0, %v1931
        %v1933 = vpop.f32.mrb[0].mxu0
        %v1934 = vpop.f32.mrb[0].mxu0
        %1935 = vdwg.mxu0
        %1936 = vmatprep.subr.bf16.mxu0 %v1127
        %1937 = vmatpush1.bf16.msra.mxu0 %v1126
        %1938 = vmatprep.subr.bf16.mxu0 %v1131
        %1939 = vmatpush1.bf16.msra.mxu0 %v1130
        %1940 = vmatprep.subr.bf16.mxu0 %v1135
        %1941 = vmatpush1.bf16.msra.mxu0 %v1134
        %1942 = vmatprep.subr.bf16.mxu0 %v1139
        %1943 = vmatpush1.bf16.msra.mxu0 %v1138
        %1944 = vmatprep.subr.bf16.mxu0 %v1143
        %1945 = vmatpush1.bf16.msra.mxu0 %v1142
        %1946 = vmatprep.subr.bf16.mxu0 %v1147
        %1947 = vmatpush1.bf16.msra.mxu0 %v1146
        %1948 = vmatprep.subr.bf16.mxu0 %v1151
        %1949 = vmatpush1.bf16.msra.mxu0 %v1150
        %1950 = vmatprep.subr.bf16.mxu0 %v1155
        %1951 = vmatpush1.bf16.msra.mxu0 %v1154
        %1952 = vmatprep.subr.bf16.mxu0 0
        %1953 = vmatpush1.bf16.msra.mxu0 0
        %1954 = vmatprep.subr.bf16.mxu0 0
        %1955 = vmatpush1.bf16.msra.mxu0 0
        %1956 = vmatprep.subr.bf16.mxu0 0
        %1957 = vmatpush1.bf16.msra.mxu0 0
        %1958 = vmatprep.subr.bf16.mxu0 0
        %1959 = vmatpush1.bf16.msra.mxu0 0
        %1960 = vmatprep.subr.bf16.mxu0 0
        %1961 = vmatpush1.bf16.msra.mxu0 0
        %1962 = vmatprep.subr.bf16.mxu0 0
        %1963 = vmatpush1.bf16.msra.mxu0 0
        %1964 = vmatprep.subr.bf16.mxu0 0
        %1965 = vmatpush1.bf16.msra.mxu0 0
        %1966 = vmatprep.subr.bf16.mxu0 0
        %1967 = vmatpush1.bf16.msra.mxu0 0
        %1968 = vmatprep.mubr.bf16.mxu0 0
        %1969 = vmatmul.mubr.bf16.gmra.mrb[0].mxu0 %v1894
        %v1970 = vpop.f32.mrb[0].mxu0
        %v1971 = vadd.f32 0.0, %v1970
        %v1972 = vpop.f32.mrb[0].mxu0
        %v1973 = vadd.f32 0.0, %v1972
        %v1974 = vpop.f32.mrb[0].mxu0
        %v1975 = vpop.f32.mrb[0].mxu0
        %1976 = vdwg.mxu0
        %v1977 = vadd.f32 %v1890, %v1930
        %v1978 = vadd.f32 %v1891, %v1932
        %v1979 = vadd.f32 %v1892, %v1971
        %v1980 = vadd.f32 %v1893, %v1973
        %v1981 = vxor.u32 %v1977, 2147483648
        %v1982 = vmul.f32 %v1981, 1.442695
        %v1983 = vpow.pop %v1982
        %v1984 = vadd.f32 %v1983, 1.0
        %v1985 = vrcp.pop %v1984
        %v1986 = vmul.f32 1.0, %v1985
        %v1987 = vxor.u32 %v1978, 2147483648
        %v1988 = vmul.f32 %v1987, 1.442695
        %v1989 = vpow.pop %v1988
        %v1990 = vadd.f32 %v1989, 1.0
        %v1991 = vrcp.pop %v1990
        %v1992 = vmul.f32 1.0, %v1991
        %v1993 = vtanh.pop %v1979
        %v1994 = vxor.u32 %v1980, 2147483648
        %v1995 = vmul.f32 %v1994, 1.442695
        %v1996 = vpow.pop %v1995
        %v1997 = vadd.f32 %v1996, 1.0
        %v1998 = vrcp.pop %v1997
        %v1999 = vmul.f32 1.0, %v1998
        %v2000 = vmul.f32 %v1992, %v1884
        %v2001 = vmul.f32 %v1986, %v1993
        %v2002 = vadd.f32 %v2000, %v2001
        %v2003 = vtanh.pop %v2002
        %v2004 = vmul.f32 %v1999, %v2003
        %s2005 = scalar_lea.vmem [#allocation3], 48
        %2006 = vst [vmem:[%s2005] sm:$0xff] %v2004
        %s2007 = scalar_lea.vmem [#allocation2], 224
        %v2008 = vld [vmem:[%s2007] sm:$0xff]
        %v2009 = vld [vmem:[%s2007 + $0x8] sm:$0xff]
        %v2010 = vld [vmem:[%s2007 + $0x10] sm:$0xff]
        %v2011 = vld [vmem:[%s2007 + $0x18] sm:$0xff]
        %v2012 = vpack.c.bf16 %v2004, %v2004
        %2013 = vmatprep.subr.bf16.mxu0 %v1125
        %2014 = vmatpush1.bf16.msra.mxu0 %v1124
        %2015 = vmatprep.subr.bf16.mxu0 %v1129
        %2016 = vmatpush1.bf16.msra.mxu0 %v1128
        %2017 = vmatprep.subr.bf16.mxu0 %v1133
        %2018 = vmatpush1.bf16.msra.mxu0 %v1132
        %2019 = vmatprep.subr.bf16.mxu0 %v1137
        %2020 = vmatpush1.bf16.msra.mxu0 %v1136
        %2021 = vmatprep.subr.bf16.mxu0 %v1141
        %2022 = vmatpush1.bf16.msra.mxu0 %v1140
        %2023 = vmatprep.subr.bf16.mxu0 %v1145
        %2024 = vmatpush1.bf16.msra.mxu0 %v1144
        %2025 = vmatprep.subr.bf16.mxu0 %v1149
        %2026 = vmatpush1.bf16.msra.mxu0 %v1148
        %2027 = vmatprep.subr.bf16.mxu0 %v1153
        %2028 = vmatpush1.bf16.msra.mxu0 %v1152
        %2029 = vmatprep.subr.bf16.mxu0 0
        %2030 = vmatpush1.bf16.msra.mxu0 0
        %2031 = vmatprep.subr.bf16.mxu0 0
        %2032 = vmatpush1.bf16.msra.mxu0 0
        %2033 = vmatprep.subr.bf16.mxu0 0
        %2034 = vmatpush1.bf16.msra.mxu0 0
        %2035 = vmatprep.subr.bf16.mxu0 0
        %2036 = vmatpush1.bf16.msra.mxu0 0
        %2037 = vmatprep.subr.bf16.mxu0 0
        %2038 = vmatpush1.bf16.msra.mxu0 0
        %2039 = vmatprep.subr.bf16.mxu0 0
        %2040 = vmatpush1.bf16.msra.mxu0 0
        %2041 = vmatprep.subr.bf16.mxu0 0
        %2042 = vmatpush1.bf16.msra.mxu0 0
        %2043 = vmatprep.subr.bf16.mxu0 0
        %2044 = vmatpush1.bf16.msra.mxu0 0
        %2045 = vmatprep.mubr.bf16.mxu0 0
        %2046 = vmatmul.mubr.bf16.gmra.mrb[0].mxu0 %v2012
        %v2047 = vpop.f32.mrb[0].mxu0
        %v2048 = vadd.f32 0.0, %v2047
        %v2049 = vpop.f32.mrb[0].mxu0
        %v2050 = vadd.f32 0.0, %v2049
        %v2051 = vpop.f32.mrb[0].mxu0
        %v2052 = vpop.f32.mrb[0].mxu0
        %2053 = vdwg.mxu0
        %2054 = vmatprep.subr.bf16.mxu0 %v1127
        %2055 = vmatpush1.bf16.msra.mxu0 %v1126
        %2056 = vmatprep.subr.bf16.mxu0 %v1131
        %2057 = vmatpush1.bf16.msra.mxu0 %v1130
        %2058 = vmatprep.subr.bf16.mxu0 %v1135
        %2059 = vmatpush1.bf16.msra.mxu0 %v1134
        %2060 = vmatprep.subr.bf16.mxu0 %v1139
        %2061 = vmatpush1.bf16.msra.mxu0 %v1138
        %2062 = vmatprep.subr.bf16.mxu0 %v1143
        %2063 = vmatpush1.bf16.msra.mxu0 %v1142
        %2064 = vmatprep.subr.bf16.mxu0 %v1147
        %2065 = vmatpush1.bf16.msra.mxu0 %v1146
        %2066 = vmatprep.subr.bf16.mxu0 %v1151
        %2067 = vmatpush1.bf16.msra.mxu0 %v1150
        %2068 = vmatprep.subr.bf16.mxu0 %v1155
        %2069 = vmatpush1.bf16.msra.mxu0 %v1154
        %2070 = vmatprep.subr.bf16.mxu0 0
        %2071 = vmatpush1.bf16.msra.mxu0 0
        %2072 = vmatprep.subr.bf16.mxu0 0
        %2073 = vmatpush1.bf16.msra.mxu0 0
        %2074 = vmatprep.subr.bf16.mxu0 0
        %2075 = vmatpush1.bf16.msra.mxu0 0
        %2076 = vmatprep.subr.bf16.mxu0 0
        %2077 = vmatpush1.bf16.msra.mxu0 0
        %2078 = vmatprep.subr.bf16.mxu0 0
        %2079 = vmatpush1.bf16.msra.mxu0 0
        %2080 = vmatprep.subr.bf16.mxu0 0
        %2081 = vmatpush1.bf16.msra.mxu0 0
        %2082 = vmatprep.subr.bf16.mxu0 0
        %2083 = vmatpush1.bf16.msra.mxu0 0
        %2084 = vmatprep.subr.bf16.mxu0 0
        %2085 = vmatpush1.bf16.msra.mxu0 0
        %2086 = vmatprep.mubr.bf16.mxu0 0
        %2087 = vmatmul.mubr.bf16.gmra.mrb[0].mxu0 %v2012
        %v2088 = vpop.f32.mrb[0].mxu0
        %v2089 = vadd.f32 0.0, %v2088
        %v2090 = vpop.f32.mrb[0].mxu0
        %v2091 = vadd.f32 0.0, %v2090
        %v2092 = vpop.f32.mrb[0].mxu0
        %v2093 = vpop.f32.mrb[0].mxu0
        %2094 = vdwg.mxu0
        %v2095 = vadd.f32 %v2008, %v2048
        %v2096 = vadd.f32 %v2009, %v2050
        %v2097 = vadd.f32 %v2010, %v2089
        %v2098 = vadd.f32 %v2011, %v2091
        %v2099 = vxor.u32 %v2095, 2147483648
        %v2100 = vmul.f32 %v2099, 1.442695
        %v2101 = vpow.pop %v2100
        %v2102 = vadd.f32 %v2101, 1.0
        %v2103 = vrcp.pop %v2102
        %v2104 = vmul.f32 1.0, %v2103
        %v2105 = vxor.u32 %v2096, 2147483648
        %v2106 = vmul.f32 %v2105, 1.442695
        %v2107 = vpow.pop %v2106
        %v2108 = vadd.f32 %v2107, 1.0
        %v2109 = vrcp.pop %v2108
        %v2110 = vmul.f32 1.0, %v2109
        %v2111 = vtanh.pop %v2097
        %v2112 = vxor.u32 %v2098, 2147483648
        %v2113 = vmul.f32 %v2112, 1.442695
        %v2114 = vpow.pop %v2113
        %v2115 = vadd.f32 %v2114, 1.0
        %v2116 = vrcp.pop %v2115
        %v2117 = vmul.f32 1.0, %v2116
        %v2118 = vmul.f32 %v2110, %v2002
        %v2119 = vmul.f32 %v2104, %v2111
        %v2120 = vadd.f32 %v2118, %v2119
        %v2121 = vtanh.pop %v2120
        %v2122 = vmul.f32 %v2117, %v2121
        %s2123 = scalar_lea.vmem [#allocation3], 56
        %2124 = vst [vmem:[%s2123] sm:$0xff] %v2122
        %v2125 = vld [vmem:[#allocation3] sm:$0xff]
        %v2126 = vld [vmem:[#allocation3 + $0x8] sm:$0xff]
        %v2127 = vld [vmem:[#allocation3 + $0x10] sm:$0xff]
        %v2128 = vld [vmem:[#allocation3 + $0x18] sm:$0xff]
        %v2129 = vld [vmem:[#allocation3 + $0x20] sm:$0xff]
        %v2130 = vld [vmem:[#allocation3 + $0x28] sm:$0xff]
        %v2131 = vld [vmem:[#allocation3 + $0x30] sm:$0xff]
        %v2132 = vld [vmem:[#allocation3 + $0x38] sm:$0xff]
        %v2133 = vpack.c.bf16 %v2126, %v2125
        %v2134 = vpack.c.bf16 %v2128, %v2127
        %v2135 = vpack.c.bf16 %v2130, %v2129
        %v2136 = vpack.c.bf16 %v2132, %v2131
        %v2137 = vld [vmem:[%s4] sm:$0xff]
        %v2138 = vld [vmem:[%s4 + $0x8] sm:$0xff]
        %v2139 = vld [vmem:[%s4 + $0x10] sm:$0xff]
        %v2140 = vld [vmem:[%s4 + $0x18] sm:$0xff]
        %v2141 = vld [vmem:[%s4 + $0x20] sm:$0xff]
        %v2142 = vld [vmem:[%s4 + $0x28] sm:$0xff]
        %v2143 = vld [vmem:[%s4 + $0x30] sm:$0xff]
        %v2144 = vld [vmem:[%s4 + $0x38] sm:$0xff]
        %v2145 = vld [vmem:[%s4 + $0x40] sm:$0xff]
        %v2146 = vld [vmem:[%s4 + $0x48] sm:$0xff]
        %v2147 = vld [vmem:[%s4 + $0x50] sm:$0xff]
        %v2148 = vld [vmem:[%s4 + $0x58] sm:$0xff]
        %v2149 = vld [vmem:[%s4 + $0x60] sm:$0xff]
        %v2150 = vld [vmem:[%s4 + $0x68] sm:$0xff]
        %v2151 = vld [vmem:[%s4 + $0x70] sm:$0xff]
        %v2152 = vld [vmem:[%s4 + $0x78] sm:$0xff]
        %v2153 = vld [vmem:[%s4 + $0x80] sm:$0xff]
        %v2154 = vld [vmem:[%s4 + $0x88] sm:$0xff]
        %v2155 = vld [vmem:[%s4 + $0x90] sm:$0xff]
        %v2156 = vld [vmem:[%s4 + $0x98] sm:$0xff]
        %v2157 = vld [vmem:[%s4 + $0xa0] sm:$0xff]
        %v2158 = vld [vmem:[%s4 + $0xa8] sm:$0xff]
        %v2159 = vld [vmem:[%s4 + $0xb0] sm:$0xff]
        %v2160 = vld [vmem:[%s4 + $0xb8] sm:$0xff]
        %v2161 = vld [vmem:[%s4 + $0xc0] sm:$0xff]
        %v2162 = vld [vmem:[%s4 + $0xc8] sm:$0xff]
        %v2163 = vld [vmem:[%s4 + $0xd0] sm:$0xff]
        %v2164 = vld [vmem:[%s4 + $0xd8] sm:$0xff]
        %v2165 = vld [vmem:[%s4 + $0xe0] sm:$0xff]
        %v2166 = vld [vmem:[%s4 + $0xe8] sm:$0xff]
        %v2167 = vld [vmem:[%s4 + $0xf0] sm:$0xff]
        %v2168 = vld [vmem:[%s4 + $0xf8] sm:$0xff]
        %v2169 = vld [vmem:[%s6] sm:$0xf]
        %v2171 = vlaneseq
        %v2172 = vshrl.u32 %v2171, 7
        %v2173 = vsub.s32 0, %v2172
        %v2174 = vrot.slane %v2169, %v2173
        %v2175 = vlaneseq
        %v2176 = vshrl.u32 %v2175, 7
        %v2177 = vsub.s32 1, %v2176
        %v2178 = vrot.slane %v2169, %v2177
        %v2179 = vlaneseq
        %v2180 = vshrl.u32 %v2179, 7
        %v2181 = vsub.s32 2, %v2180
        %v2182 = vrot.slane %v2169, %v2181
        %v2183 = vlaneseq
        %v2184 = vshrl.u32 %v2183, 7
        %v2185 = vsub.s32 3, %v2184
        %v2186 = vrot.slane %v2169, %v2185
        %v2223 = vunpack.c.l.b16 %v2137
        %v2224 = vunpack.c.h.b16 %v2137
        %v2225 = vunpack.c.l.b16 %v2138
        %v2226 = vunpack.c.h.b16 %v2138
        %v2227 = vunpack.c.l.b16 %v2139
        %v2228 = vunpack.c.h.b16 %v2139
        %v2229 = vunpack.c.l.b16 %v2140
        %v2230 = vunpack.c.h.b16 %v2140
        %v2231 = vunpack.c.l.b16 %v2141
        %v2232 = vunpack.c.h.b16 %v2141
        %v2233 = vunpack.c.l.b16 %v2142
        %v2234 = vunpack.c.h.b16 %v2142
        %v2235 = vunpack.c.l.b16 %v2143
        %v2236 = vunpack.c.h.b16 %v2143
        %v2237 = vunpack.c.l.b16 %v2144
        %v2238 = vunpack.c.h.b16 %v2144
        %v2239 = vunpack.c.l.b16 %v2145
        %v2240 = vunpack.c.h.b16 %v2145
        %v2241 = vunpack.c.l.b16 %v2146
        %v2242 = vunpack.c.h.b16 %v2146
        %v2243 = vunpack.c.l.b16 %v2147
        %v2244 = vunpack.c.h.b16 %v2147
        %v2245 = vunpack.c.l.b16 %v2148
        %v2246 = vunpack.c.h.b16 %v2148
        %v2247 = vunpack.c.l.b16 %v2149
        %v2248 = vunpack.c.h.b16 %v2149
        %v2249 = vunpack.c.l.b16 %v2150
        %v2250 = vunpack.c.h.b16 %v2150
        %v2251 = vunpack.c.l.b16 %v2151
        %v2252 = vunpack.c.h.b16 %v2151
        %v2253 = vunpack.c.l.b16 %v2152
        %v2254 = vunpack.c.h.b16 %v2152
        %v2255 = vunpack.c.l.b16 %v2153
        %v2256 = vunpack.c.h.b16 %v2153
        %v2257 = vunpack.c.l.b16 %v2154
        %v2258 = vunpack.c.h.b16 %v2154
        %v2259 = vunpack.c.l.b16 %v2155
        %v2260 = vunpack.c.h.b16 %v2155
        %v2261 = vunpack.c.l.b16 %v2156
        %v2262 = vunpack.c.h.b16 %v2156
        %v2263 = vunpack.c.l.b16 %v2157
        %v2264 = vunpack.c.h.b16 %v2157
        %v2265 = vunpack.c.l.b16 %v2158
        %v2266 = vunpack.c.h.b16 %v2158
        %v2267 = vunpack.c.l.b16 %v2159
        %v2268 = vunpack.c.h.b16 %v2159
        %v2269 = vunpack.c.l.b16 %v2160
        %v2270 = vunpack.c.h.b16 %v2160
        %v2271 = vunpack.c.l.b16 %v2161
        %v2272 = vunpack.c.h.b16 %v2161
        %v2273 = vunpack.c.l.b16 %v2162
        %v2274 = vunpack.c.h.b16 %v2162
        %v2275 = vunpack.c.l.b16 %v2163
        %v2276 = vunpack.c.h.b16 %v2163
        %v2277 = vunpack.c.l.b16 %v2164
        %v2278 = vunpack.c.h.b16 %v2164
        %v2279 = vunpack.c.l.b16 %v2165
        %v2280 = vunpack.c.h.b16 %v2165
        %v2281 = vunpack.c.l.b16 %v2166
        %v2282 = vunpack.c.h.b16 %v2166
        %v2283 = vunpack.c.l.b16 %v2167
        %v2284 = vunpack.c.h.b16 %v2167
        %v2285 = vunpack.c.l.b16 %v2168
        %v2286 = vunpack.c.h.b16 %v2168
        %v2287 = vpack.c.b16 %v2227, %v2223
        %v2288 = vpack.c.b16 %v2228, %v2224
        %v2289 = vpack.c.b16 %v2229, %v2225
        %v2290 = vpack.c.b16 %v2230, %v2226
        %v2291 = vpack.c.b16 %v2235, %v2231
        %v2292 = vpack.c.b16 %v2236, %v2232
        %v2293 = vpack.c.b16 %v2237, %v2233
        %v2294 = vpack.c.b16 %v2238, %v2234
        %v2295 = vpack.c.b16 %v2243, %v2239
        %v2296 = vpack.c.b16 %v2244, %v2240
        %v2297 = vpack.c.b16 %v2245, %v2241
        %v2298 = vpack.c.b16 %v2246, %v2242
        %v2299 = vpack.c.b16 %v2251, %v2247
        %v2300 = vpack.c.b16 %v2252, %v2248
        %v2301 = vpack.c.b16 %v2253, %v2249
        %v2302 = vpack.c.b16 %v2254, %v2250
        %v2303 = vpack.c.b16 %v2259, %v2255
        %v2304 = vpack.c.b16 %v2260, %v2256
        %v2305 = vpack.c.b16 %v2261, %v2257
        %v2306 = vpack.c.b16 %v2262, %v2258
        %v2307 = vpack.c.b16 %v2267, %v2263
        %v2308 = vpack.c.b16 %v2268, %v2264
        %v2309 = vpack.c.b16 %v2269, %v2265
        %v2310 = vpack.c.b16 %v2270, %v2266
        %v2311 = vpack.c.b16 %v2275, %v2271
        %v2312 = vpack.c.b16 %v2276, %v2272
        %v2313 = vpack.c.b16 %v2277, %v2273
        %v2314 = vpack.c.b16 %v2278, %v2274
        %v2315 = vpack.c.b16 %v2283, %v2279
        %v2316 = vpack.c.b16 %v2284, %v2280
        %v2317 = vpack.c.b16 %v2285, %v2281
        %v2318 = vpack.c.b16 %v2286, %v2282
        %2351 = vmatprep.subr.bf16.mxu0 %v2288
        %2352 = vmatpush1.bf16.msra.mxu0 %v2287
        %2353 = vmatprep.subr.bf16.mxu0 %v2292
        %2354 = vmatpush1.bf16.msra.mxu0 %v2291
        %2355 = vmatprep.subr.bf16.mxu0 %v2296
        %2356 = vmatpush1.bf16.msra.mxu0 %v2295
        %2357 = vmatprep.subr.bf16.mxu0 %v2300
        %2358 = vmatpush1.bf16.msra.mxu0 %v2299
        %2359 = vmatprep.subr.bf16.mxu0 %v2304
        %2360 = vmatpush1.bf16.msra.mxu0 %v2303
        %2361 = vmatprep.subr.bf16.mxu0 %v2308
        %2362 = vmatpush1.bf16.msra.mxu0 %v2307
        %2363 = vmatprep.subr.bf16.mxu0 %v2312
        %2364 = vmatpush1.bf16.msra.mxu0 %v2311
        %2365 = vmatprep.subr.bf16.mxu0 %v2316
        %2366 = vmatpush1.bf16.msra.mxu0 %v2315
        %2367 = vmatprep.subr.bf16.mxu0 0
        %2368 = vmatpush1.bf16.msra.mxu0 0
        %2369 = vmatprep.subr.bf16.mxu0 0
        %2370 = vmatpush1.bf16.msra.mxu0 0
        %2371 = vmatprep.subr.bf16.mxu0 0
        %2372 = vmatpush1.bf16.msra.mxu0 0
        %2373 = vmatprep.subr.bf16.mxu0 0
        %2374 = vmatpush1.bf16.msra.mxu0 0
        %2375 = vmatprep.subr.bf16.mxu0 0
        %2376 = vmatpush1.bf16.msra.mxu0 0
        %2377 = vmatprep.subr.bf16.mxu0 0
        %2378 = vmatpush1.bf16.msra.mxu0 0
        %2379 = vmatprep.subr.bf16.mxu0 0
        %2380 = vmatpush1.bf16.msra.mxu0 0
        %2381 = vmatprep.subr.bf16.mxu0 0
        %2382 = vmatpush1.bf16.msra.mxu0 0
        %2383 = vmatprep.mubr.bf16.mxu0 0
        %2384 = vmatmul.mubr.bf16.gmra.mrb[0].mxu0 %v2133
        %v2385 = vpop.f32.mrb[0].mxu0
        %v2386 = vadd.f32 %v2174, %v2385
        %v2387 = vpop.f32.mrb[0].mxu0
        %v2388 = vadd.f32 %v2178, %v2387
        %v2389 = vpop.f32.mrb[0].mxu0
        %v2390 = vadd.f32 %v2174, %v2389
        %v2391 = vpop.f32.mrb[0].mxu0
        %v2392 = vadd.f32 %v2178, %v2391
        %2393 = vmatprep.mubr.bf16.mxu0 0
        %2394 = vmatmul.mubr.bf16.gmra.mrb[0].mxu0 %v2134
        %v2395 = vpop.f32.mrb[0].mxu0
        %v2396 = vadd.f32 %v2174, %v2395
        %v2397 = vpop.f32.mrb[0].mxu0
        %v2398 = vadd.f32 %v2178, %v2397
        %v2399 = vpop.f32.mrb[0].mxu0
        %v2400 = vadd.f32 %v2174, %v2399
        %v2401 = vpop.f32.mrb[0].mxu0
        %v2402 = vadd.f32 %v2178, %v2401
        %2403 = vmatprep.mubr.bf16.mxu0 0
        %2404 = vmatmul.mubr.bf16.gmra.mrb[0].mxu0 %v2135
        %v2405 = vpop.f32.mrb[0].mxu0
        %v2406 = vadd.f32 %v2174, %v2405
        %v2407 = vpop.f32.mrb[0].mxu0
        %v2408 = vadd.f32 %v2178, %v2407
        %v2409 = vpop.f32.mrb[0].mxu0
        %v2410 = vadd.f32 %v2174, %v2409
        %v2411 = vpop.f32.mrb[0].mxu0
        %v2412 = vadd.f32 %v2178, %v2411
        %2413 = vmatprep.mubr.bf16.mxu0 0
        %2414 = vmatmul.mubr.bf16.gmra.mrb[0].mxu0 %v2136
        %v2415 = vpop.f32.mrb[0].mxu0
        %v2416 = vadd.f32 %v2174, %v2415
        %v2417 = vpop.f32.mrb[0].mxu0
        %v2418 = vadd.f32 %v2178, %v2417
        %v2419 = vpop.f32.mrb[0].mxu0
        %v2420 = vadd.f32 %v2174, %v2419
        %v2421 = vpop.f32.mrb[0].mxu0
        %v2422 = vadd.f32 %v2178, %v2421
        %2423 = vdwg.mxu0
        %2424 = vmatprep.subr.bf16.mxu0 %v2290
        %2425 = vmatpush1.bf16.msra.mxu0 %v2289
        %2426 = vmatprep.subr.bf16.mxu0 %v2294
        %2427 = vmatpush1.bf16.msra.mxu0 %v2293
        %2428 = vmatprep.subr.bf16.mxu0 %v2298
        %2429 = vmatpush1.bf16.msra.mxu0 %v2297
        %2430 = vmatprep.subr.bf16.mxu0 %v2302
        %2431 = vmatpush1.bf16.msra.mxu0 %v2301
        %2432 = vmatprep.subr.bf16.mxu0 %v2306
        %2433 = vmatpush1.bf16.msra.mxu0 %v2305
        %2434 = vmatprep.subr.bf16.mxu0 %v2310
        %2435 = vmatpush1.bf16.msra.mxu0 %v2309
        %2436 = vmatprep.subr.bf16.mxu0 %v2314
        %2437 = vmatpush1.bf16.msra.mxu0 %v2313
        %2438 = vmatprep.subr.bf16.mxu0 %v2318
        %2439 = vmatpush1.bf16.msra.mxu0 %v2317
        %2440 = vmatprep.subr.bf16.mxu0 0
        %2441 = vmatpush1.bf16.msra.mxu0 0
        %2442 = vmatprep.subr.bf16.mxu0 0
        %2443 = vmatpush1.bf16.msra.mxu0 0
        %2444 = vmatprep.subr.bf16.mxu0 0
        %2445 = vmatpush1.bf16.msra.mxu0 0
        %2446 = vmatprep.subr.bf16.mxu0 0
        %2447 = vmatpush1.bf16.msra.mxu0 0
        %2448 = vmatprep.subr.bf16.mxu0 0
        %2449 = vmatpush1.bf16.msra.mxu0 0
        %2450 = vmatprep.subr.bf16.mxu0 0
        %2451 = vmatpush1.bf16.msra.mxu0 0
        %2452 = vmatprep.subr.bf16.mxu0 0
        %2453 = vmatpush1.bf16.msra.mxu0 0
        %2454 = vmatprep.subr.bf16.mxu0 0
        %2455 = vmatpush1.bf16.msra.mxu0 0
        %2456 = vmatprep.mubr.bf16.mxu0 0
        %2457 = vmatmul.mubr.bf16.gmra.mrb[0].mxu0 %v2133
        %v2458 = vpop.f32.mrb[0].mxu0
        %v2459 = vadd.f32 %v2182, %v2458
        %v2460 = vpop.f32.mrb[0].mxu0
        %v2461 = vadd.f32 %v2186, %v2460
        %v2462 = vpop.f32.mrb[0].mxu0
        %v2463 = vadd.f32 %v2182, %v2462
        %v2464 = vpop.f32.mrb[0].mxu0
        %v2465 = vadd.f32 %v2186, %v2464
        %2466 = vmatprep.mubr.bf16.mxu0 0
        %2467 = vmatmul.mubr.bf16.gmra.mrb[0].mxu0 %v2134
        %v2468 = vpop.f32.mrb[0].mxu0
        %v2469 = vadd.f32 %v2182, %v2468
        %v2470 = vpop.f32.mrb[0].mxu0
        %v2471 = vadd.f32 %v2186, %v2470
        %v2472 = vpop.f32.mrb[0].mxu0
        %v2473 = vadd.f32 %v2182, %v2472
        %v2474 = vpop.f32.mrb[0].mxu0
        %v2475 = vadd.f32 %v2186, %v2474
        %2476 = vmatprep.mubr.bf16.mxu0 0
        %2477 = vmatmul.mubr.bf16.gmra.mrb[0].mxu0 %v2135
        %v2478 = vpop.f32.mrb[0].mxu0
        %v2479 = vadd.f32 %v2182, %v2478
        %v2480 = vpop.f32.mrb[0].mxu0
        %v2481 = vadd.f32 %v2186, %v2480
        %v2482 = vpop.f32.mrb[0].mxu0
        %v2483 = vadd.f32 %v2182, %v2482
        %v2484 = vpop.f32.mrb[0].mxu0
        %v2485 = vadd.f32 %v2186, %v2484
        %2486 = vmatprep.mubr.bf16.mxu0 0
        %2487 = vmatmul.mubr.bf16.gmra.mrb[0].mxu0 %v2136
        %v2488 = vpop.f32.mrb[0].mxu0
        %v2489 = vadd.f32 %v2182, %v2488
        %v2490 = vpop.f32.mrb[0].mxu0
        %v2491 = vadd.f32 %v2186, %v2490
        %v2492 = vpop.f32.mrb[0].mxu0
        %v2493 = vadd.f32 %v2182, %v2492
        %v2494 = vpop.f32.mrb[0].mxu0
        %v2495 = vadd.f32 %v2186, %v2494
        %2496 = vdwg.mxu0
        %2497 = vst [vmem:[#allocation2] sm:$0xff] %v2386
        %2498 = vst [vmem:[#allocation2 + $0x8] sm:$0xff] %v2388
        %2499 = vst [vmem:[#allocation2 + $0x10] sm:$0xff] %v2459
        %2500 = vst [vmem:[#allocation2 + $0x18] sm:$0xff] %v2461
        %2501 = vst [vmem:[#allocation2 + $0x20] sm:$0xff] %v2390
        %2502 = vst [vmem:[#allocation2 + $0x28] sm:$0xff] %v2392
        %2503 = vst [vmem:[#allocation2 + $0x30] sm:$0xff] %v2463
        %2504 = vst [vmem:[#allocation2 + $0x38] sm:$0xff] %v2465
        %2505 = vst [vmem:[#allocation2 + $0x40] sm:$0xff] %v2396
        %2506 = vst [vmem:[#allocation2 + $0x48] sm:$0xff] %v2398
        %2507 = vst [vmem:[#allocation2 + $0x50] sm:$0xff] %v2469
        %2508 = vst [vmem:[#allocation2 + $0x58] sm:$0xff] %v2471
        %2509 = vst [vmem:[#allocation2 + $0x60] sm:$0xff] %v2400
        %2510 = vst [vmem:[#allocation2 + $0x68] sm:$0xff] %v2402
        %2511 = vst [vmem:[#allocation2 + $0x70] sm:$0xff] %v2473
        %2512 = vst [vmem:[#allocation2 + $0x78] sm:$0xff] %v2475
        %2513 = vst [vmem:[#allocation2 + $0x80] sm:$0xff] %v2406
        %2514 = vst [vmem:[#allocation2 + $0x88] sm:$0xff] %v2408
        %2515 = vst [vmem:[#allocation2 + $0x90] sm:$0xff] %v2479
        %2516 = vst [vmem:[#allocation2 + $0x98] sm:$0xff] %v2481
        %2517 = vst [vmem:[#allocation2 + $0xa0] sm:$0xff] %v2410
        %2518 = vst [vmem:[#allocation2 + $0xa8] sm:$0xff] %v2412
        %2519 = vst [vmem:[#allocation2 + $0xb0] sm:$0xff] %v2483
        %2520 = vst [vmem:[#allocation2 + $0xb8] sm:$0xff] %v2485
        %2521 = vst [vmem:[#allocation2 + $0xc0] sm:$0xff] %v2416
        %2522 = vst [vmem:[#allocation2 + $0xc8] sm:$0xff] %v2418
        %2523 = vst [vmem:[#allocation2 + $0xd0] sm:$0xff] %v2489
        %2524 = vst [vmem:[#allocation2 + $0xd8] sm:$0xff] %v2491
        %2525 = vst [vmem:[#allocation2 + $0xe0] sm:$0xff] %v2420
        %2526 = vst [vmem:[#allocation2 + $0xe8] sm:$0xff] %v2422
        %2527 = vst [vmem:[#allocation2 + $0xf0] sm:$0xff] %v2493
        %2528 = vst [vmem:[#allocation2 + $0xf8] sm:$0xff] %v2495
        %v2529 = vld [vmem:[%s5] sm:$0xff]
        %v2530 = vld [vmem:[%s5 + $0x8] sm:$0xff]
        %v2531 = vld [vmem:[%s5 + $0x10] sm:$0xff]
        %v2532 = vld [vmem:[%s5 + $0x18] sm:$0xff]
        %v2533 = vld [vmem:[%s5 + $0x20] sm:$0xff]
        %v2534 = vld [vmem:[%s5 + $0x28] sm:$0xff]
        %v2535 = vld [vmem:[%s5 + $0x30] sm:$0xff]
        %v2536 = vld [vmem:[%s5 + $0x38] sm:$0xff]
        %v2537 = vld [vmem:[%s5 + $0x40] sm:$0xff]
        %v2538 = vld [vmem:[%s5 + $0x48] sm:$0xff]
        %v2539 = vld [vmem:[%s5 + $0x50] sm:$0xff]
        %v2540 = vld [vmem:[%s5 + $0x58] sm:$0xff]
        %v2541 = vld [vmem:[%s5 + $0x60] sm:$0xff]
        %v2542 = vld [vmem:[%s5 + $0x68] sm:$0xff]
        %v2543 = vld [vmem:[%s5 + $0x70] sm:$0xff]
        %v2544 = vld [vmem:[%s5 + $0x78] sm:$0xff]
        %v2545 = vld [vmem:[%s5 + $0x80] sm:$0xff]
        %v2546 = vld [vmem:[%s5 + $0x88] sm:$0xff]
        %v2547 = vld [vmem:[%s5 + $0x90] sm:$0xff]
        %v2548 = vld [vmem:[%s5 + $0x98] sm:$0xff]
        %v2549 = vld [vmem:[%s5 + $0xa0] sm:$0xff]
        %v2550 = vld [vmem:[%s5 + $0xa8] sm:$0xff]
        %v2551 = vld [vmem:[%s5 + $0xb0] sm:$0xff]
        %v2552 = vld [vmem:[%s5 + $0xb8] sm:$0xff]
        %v2553 = vld [vmem:[%s5 + $0xc0] sm:$0xff]
        %v2554 = vld [vmem:[%s5 + $0xc8] sm:$0xff]
        %v2555 = vld [vmem:[%s5 + $0xd0] sm:$0xff]
        %v2556 = vld [vmem:[%s5 + $0xd8] sm:$0xff]
        %v2557 = vld [vmem:[%s5 + $0xe0] sm:$0xff]
        %v2558 = vld [vmem:[%s5 + $0xe8] sm:$0xff]
        %v2559 = vld [vmem:[%s5 + $0xf0] sm:$0xff]
        %v2560 = vld [vmem:[%s5 + $0xf8] sm:$0xff]
        %v2561 = vld [vmem:[#allocation2] sm:$0xff]
        %v2562 = vld [vmem:[#allocation2 + $0x8] sm:$0xff]
        %v2563 = vld [vmem:[#allocation2 + $0x10] sm:$0xff]
        %v2564 = vld [vmem:[#allocation2 + $0x18] sm:$0xff]
        %v2597 = vunpack.c.l.b16 %v2529
        %v2598 = vunpack.c.h.b16 %v2529
        %v2599 = vunpack.c.l.b16 %v2530
        %v2600 = vunpack.c.h.b16 %v2530
        %v2601 = vunpack.c.l.b16 %v2531
        %v2602 = vunpack.c.h.b16 %v2531
        %v2603 = vunpack.c.l.b16 %v2532
        %v2604 = vunpack.c.h.b16 %v2532
        %v2605 = vunpack.c.l.b16 %v2533
        %v2606 = vunpack.c.h.b16 %v2533
        %v2607 = vunpack.c.l.b16 %v2534
        %v2608 = vunpack.c.h.b16 %v2534
        %v2609 = vunpack.c.l.b16 %v2535
        %v2610 = vunpack.c.h.b16 %v2535
        %v2611 = vunpack.c.l.b16 %v2536
        %v2612 = vunpack.c.h.b16 %v2536
        %v2613 = vunpack.c.l.b16 %v2537
        %v2614 = vunpack.c.h.b16 %v2537
        %v2615 = vunpack.c.l.b16 %v2538
        %v2616 = vunpack.c.h.b16 %v2538
        %v2617 = vunpack.c.l.b16 %v2539
        %v2618 = vunpack.c.h.b16 %v2539
        %v2619 = vunpack.c.l.b16 %v2540
        %v2620 = vunpack.c.h.b16 %v2540
        %v2621 = vunpack.c.l.b16 %v2541
        %v2622 = vunpack.c.h.b16 %v2541
        %v2623 = vunpack.c.l.b16 %v2542
        %v2624 = vunpack.c.h.b16 %v2542
        %v2625 = vunpack.c.l.b16 %v2543
        %v2626 = vunpack.c.h.b16 %v2543
        %v2627 = vunpack.c.l.b16 %v2544
        %v2628 = vunpack.c.h.b16 %v2544
        %v2629 = vunpack.c.l.b16 %v2545
        %v2630 = vunpack.c.h.b16 %v2545
        %v2631 = vunpack.c.l.b16 %v2546
        %v2632 = vunpack.c.h.b16 %v2546
        %v2633 = vunpack.c.l.b16 %v2547
        %v2634 = vunpack.c.h.b16 %v2547
        %v2635 = vunpack.c.l.b16 %v2548
        %v2636 = vunpack.c.h.b16 %v2548
        %v2637 = vunpack.c.l.b16 %v2549
        %v2638 = vunpack.c.h.b16 %v2549
        %v2639 = vunpack.c.l.b16 %v2550
        %v2640 = vunpack.c.h.b16 %v2550
        %v2641 = vunpack.c.l.b16 %v2551
        %v2642 = vunpack.c.h.b16 %v2551
        %v2643 = vunpack.c.l.b16 %v2552
        %v2644 = vunpack.c.h.b16 %v2552
        %v2645 = vunpack.c.l.b16 %v2553
        %v2646 = vunpack.c.h.b16 %v2553
        %v2647 = vunpack.c.l.b16 %v2554
        %v2648 = vunpack.c.h.b16 %v2554
        %v2649 = vunpack.c.l.b16 %v2555
        %v2650 = vunpack.c.h.b16 %v2555
        %v2651 = vunpack.c.l.b16 %v2556
        %v2652 = vunpack.c.h.b16 %v2556
        %v2653 = vunpack.c.l.b16 %v2557
        %v2654 = vunpack.c.h.b16 %v2557
        %v2655 = vunpack.c.l.b16 %v2558
        %v2656 = vunpack.c.h.b16 %v2558
        %v2657 = vunpack.c.l.b16 %v2559
        %v2658 = vunpack.c.h.b16 %v2559
        %v2659 = vunpack.c.l.b16 %v2560
        %v2660 = vunpack.c.h.b16 %v2560
        %v2661 = vpack.c.b16 %v2601, %v2597
        %v2662 = vpack.c.b16 %v2602, %v2598
        %v2663 = vpack.c.b16 %v2603, %v2599
        %v2664 = vpack.c.b16 %v2604, %v2600
        %v2665 = vpack.c.b16 %v2609, %v2605
        %v2666 = vpack.c.b16 %v2610, %v2606
        %v2667 = vpack.c.b16 %v2611, %v2607
        %v2668 = vpack.c.b16 %v2612, %v2608
        %v2669 = vpack.c.b16 %v2617, %v2613
        %v2670 = vpack.c.b16 %v2618, %v2614
        %v2671 = vpack.c.b16 %v2619, %v2615
        %v2672 = vpack.c.b16 %v2620, %v2616
        %v2673 = vpack.c.b16 %v2625, %v2621
        %v2674 = vpack.c.b16 %v2626, %v2622
        %v2675 = vpack.c.b16 %v2627, %v2623
        %v2676 = vpack.c.b16 %v2628, %v2624
        %v2677 = vpack.c.b16 %v2633, %v2629
        %v2678 = vpack.c.b16 %v2634, %v2630
        %v2679 = vpack.c.b16 %v2635, %v2631
        %v2680 = vpack.c.b16 %v2636, %v2632
        %v2681 = vpack.c.b16 %v2641, %v2637
        %v2682 = vpack.c.b16 %v2642, %v2638
        %v2683 = vpack.c.b16 %v2643, %v2639
        %v2684 = vpack.c.b16 %v2644, %v2640
        %v2685 = vpack.c.b16 %v2649, %v2645
        %v2686 = vpack.c.b16 %v2650, %v2646
        %v2687 = vpack.c.b16 %v2651, %v2647
        %v2688 = vpack.c.b16 %v2652, %v2648
        %v2689 = vpack.c.b16 %v2657, %v2653
        %v2690 = vpack.c.b16 %v2658, %v2654
        %v2691 = vpack.c.b16 %v2659, %v2655
        %v2692 = vpack.c.b16 %v2660, %v2656
        %2725 = vmatprep.subr.bf16.mxu0 %v2662
        %2726 = vmatpush1.bf16.msra.mxu0 %v2661
        %2727 = vmatprep.subr.bf16.mxu0 %v2666
        %2728 = vmatpush1.bf16.msra.mxu0 %v2665
        %2729 = vmatprep.subr.bf16.mxu0 %v2670
        %2730 = vmatpush1.bf16.msra.mxu0 %v2669
        %2731 = vmatprep.subr.bf16.mxu0 %v2674
        %2732 = vmatpush1.bf16.msra.mxu0 %v2673
        %2733 = vmatprep.subr.bf16.mxu0 %v2678
        %2734 = vmatpush1.bf16.msra.mxu0 %v2677
        %2735 = vmatprep.subr.bf16.mxu0 %v2682
        %2736 = vmatpush1.bf16.msra.mxu0 %v2681
        %2737 = vmatprep.subr.bf16.mxu0 %v2686
        %2738 = vmatpush1.bf16.msra.mxu0 %v2685
        %2739 = vmatprep.subr.bf16.mxu0 %v2690
        %2740 = vmatpush1.bf16.msra.mxu0 %v2689
        %2741 = vmatprep.subr.bf16.mxu0 0
        %2742 = vmatpush1.bf16.msra.mxu0 0
        %2743 = vmatprep.subr.bf16.mxu0 0
        %2744 = vmatpush1.bf16.msra.mxu0 0
        %2745 = vmatprep.subr.bf16.mxu0 0
        %2746 = vmatpush1.bf16.msra.mxu0 0
        %2747 = vmatprep.subr.bf16.mxu0 0
        %2748 = vmatpush1.bf16.msra.mxu0 0
        %2749 = vmatprep.subr.bf16.mxu0 0
        %2750 = vmatpush1.bf16.msra.mxu0 0
        %2751 = vmatprep.subr.bf16.mxu0 0
        %2752 = vmatpush1.bf16.msra.mxu0 0
        %2753 = vmatprep.subr.bf16.mxu0 0
        %2754 = vmatpush1.bf16.msra.mxu0 0
        %2755 = vmatprep.subr.bf16.mxu0 0
        %2756 = vmatpush1.bf16.msra.mxu0 0
        %2757 = vmatprep.mubr.bf16.mxu0 0
        %2758 = vmatmul.mubr.bf16.gmra.mrb[0].mxu0 0
        %v2759 = vpop.f32.mrb[0].mxu0
        %v2760 = vadd.f32 0.0, %v2759
        %v2761 = vpop.f32.mrb[0].mxu0
        %v2762 = vadd.f32 0.0, %v2761
        %v2763 = vpop.f32.mrb[0].mxu0
        %v2764 = vpop.f32.mrb[0].mxu0
        %2765 = vdwg.mxu0
        %2766 = vmatprep.subr.bf16.mxu0 %v2664
        %2767 = vmatpush1.bf16.msra.mxu0 %v2663
        %2768 = vmatprep.subr.bf16.mxu0 %v2668
        %2769 = vmatpush1.bf16.msra.mxu0 %v2667
        %2770 = vmatprep.subr.bf16.mxu0 %v2672
        %2771 = vmatpush1.bf16.msra.mxu0 %v2671
        %2772 = vmatprep.subr.bf16.mxu0 %v2676
        %2773 = vmatpush1.bf16.msra.mxu0 %v2675
        %2774 = vmatprep.subr.bf16.mxu0 %v2680
        %2775 = vmatpush1.bf16.msra.mxu0 %v2679
        %2776 = vmatprep.subr.bf16.mxu0 %v2684
        %2777 = vmatpush1.bf16.msra.mxu0 %v2683
        %2778 = vmatprep.subr.bf16.mxu0 %v2688
        %2779 = vmatpush1.bf16.msra.mxu0 %v2687
        %2780 = vmatprep.subr.bf16.mxu0 %v2692
        %2781 = vmatpush1.bf16.msra.mxu0 %v2691
        %2782 = vmatprep.subr.bf16.mxu0 0
        %2783 = vmatpush1.bf16.msra.mxu0 0
        %2784 = vmatprep.subr.bf16.mxu0 0
        %2785 = vmatpush1.bf16.msra.mxu0 0
        %2786 = vmatprep.subr.bf16.mxu0 0
        %2787 = vmatpush1.bf16.msra.mxu0 0
        %2788 = vmatprep.subr.bf16.mxu0 0
        %2789 = vmatpush1.bf16.msra.mxu0 0
        %2790 = vmatprep.subr.bf16.mxu0 0
        %2791 = vmatpush1.bf16.msra.mxu0 0
        %2792 = vmatprep.subr.bf16.mxu0 0
        %2793 = vmatpush1.bf16.msra.mxu0 0
        %2794 = vmatprep.subr.bf16.mxu0 0
        %2795 = vmatpush1.bf16.msra.mxu0 0
        %2796 = vmatprep.subr.bf16.mxu0 0
        %2797 = vmatpush1.bf16.msra.mxu0 0
        %2798 = vmatprep.mubr.bf16.mxu0 0
        %2799 = vmatmul.mubr.bf16.gmra.mrb[0].mxu0 0
        %v2800 = vpop.f32.mrb[0].mxu0
        %v2801 = vadd.f32 0.0, %v2800
        %v2802 = vpop.f32.mrb[0].mxu0
        %v2803 = vadd.f32 0.0, %v2802
        %v2804 = vpop.f32.mrb[0].mxu0
        %v2805 = vpop.f32.mrb[0].mxu0
        %2806 = vdwg.mxu0
        %v2807 = vadd.f32 %v2561, %v2760
        %v2808 = vadd.f32 %v2562, %v2762
        %v2809 = vadd.f32 %v2563, %v2801
        %v2810 = vadd.f32 %v2564, %v2803
        %v2811 = vxor.u32 %v2807, 2147483648
        %v2812 = vmul.f32 %v2811, 1.442695
        %v2813 = vpow.pop %v2812
        %v2814 = vadd.f32 %v2813, 1.0
        %v2815 = vrcp.pop %v2814
        %v2816 = vmul.f32 1.0, %v2815
        %v2817 = vxor.u32 %v2808, 2147483648
        %v2818 = vmul.f32 %v2817, 1.442695
        %v2819 = vpow.pop %v2818
        %v2820 = vadd.f32 %v2819, 1.0
        %v2821 = vrcp.pop %v2820
        %v2822 = vmul.f32 1.0, %v2821
        %v2823 = vtanh.pop %v2809
        %v2824 = vxor.u32 %v2810, 2147483648
        %v2825 = vmul.f32 %v2824, 1.442695
        %v2826 = vpow.pop %v2825
        %v2827 = vadd.f32 %v2826, 1.0
        %v2828 = vrcp.pop %v2827
        %v2829 = vmul.f32 1.0, %v2828
        %v2830 = vmul.f32 %v2822, 0.0
        %v2831 = vmul.f32 %v2816, %v2823
        %v2832 = vadd.f32 %v2830, %v2831
        %v2833 = vtanh.pop %v2832
        %v2834 = vmul.f32 %v2829, %v2833
        %v2835 = vld [vmem:[%s1299] sm:$0xff]
        %v2836 = vld [vmem:[%s1299 + $0x8] sm:$0xff]
        %v2837 = vld [vmem:[%s1299 + $0x10] sm:$0xff]
        %v2838 = vld [vmem:[%s1299 + $0x18] sm:$0xff]
        %v2839 = vpack.c.bf16 %v2834, %v2834
        %2840 = vmatprep.subr.bf16.mxu0 %v2662
        %2841 = vmatpush1.bf16.msra.mxu0 %v2661
        %2842 = vmatprep.subr.bf16.mxu0 %v2666
        %2843 = vmatpush1.bf16.msra.mxu0 %v2665
        %2844 = vmatprep.subr.bf16.mxu0 %v2670
        %2845 = vmatpush1.bf16.msra.mxu0 %v2669
        %2846 = vmatprep.subr.bf16.mxu0 %v2674
        %2847 = vmatpush1.bf16.msra.mxu0 %v2673
        %2848 = vmatprep.subr.bf16.mxu0 %v2678
        %2849 = vmatpush1.bf16.msra.mxu0 %v2677
        %2850 = vmatprep.subr.bf16.mxu0 %v2682
        %2851 = vmatpush1.bf16.msra.mxu0 %v2681
        %2852 = vmatprep.subr.bf16.mxu0 %v2686
        %2853 = vmatpush1.bf16.msra.mxu0 %v2685
        %2854 = vmatprep.subr.bf16.mxu0 %v2690
        %2855 = vmatpush1.bf16.msra.mxu0 %v2689
        %2856 = vmatprep.subr.bf16.mxu0 0
        %2857 = vmatpush1.bf16.msra.mxu0 0
        %2858 = vmatprep.subr.bf16.mxu0 0
        %2859 = vmatpush1.bf16.msra.mxu0 0
        %2860 = vmatprep.subr.bf16.mxu0 0
        %2861 = vmatpush1.bf16.msra.mxu0 0
        %2862 = vmatprep.subr.bf16.mxu0 0
        %2863 = vmatpush1.bf16.msra.mxu0 0
        %2864 = vmatprep.subr.bf16.mxu0 0
        %2865 = vmatpush1.bf16.msra.mxu0 0
        %2866 = vmatprep.subr.bf16.mxu0 0
        %2867 = vmatpush1.bf16.msra.mxu0 0
        %2868 = vmatprep.subr.bf16.mxu0 0
        %2869 = vmatpush1.bf16.msra.mxu0 0
        %2870 = vmatprep.subr.bf16.mxu0 0
        %2871 = vmatpush1.bf16.msra.mxu0 0
        %2872 = vmatprep.mubr.bf16.mxu0 0
        %2873 = vmatmul.mubr.bf16.gmra.mrb[0].mxu0 %v2839
        %v2874 = vpop.f32.mrb[0].mxu0
        %v2875 = vadd.f32 0.0, %v2874
        %v2876 = vpop.f32.mrb[0].mxu0
        %v2877 = vadd.f32 0.0, %v2876
        %v2878 = vpop.f32.mrb[0].mxu0
        %v2879 = vpop.f32.mrb[0].mxu0
        %2880 = vdwg.mxu0
        %2881 = vmatprep.subr.bf16.mxu0 %v2664
        %2882 = vmatpush1.bf16.msra.mxu0 %v2663
        %2883 = vmatprep.subr.bf16.mxu0 %v2668
        %2884 = vmatpush1.bf16.msra.mxu0 %v2667
        %2885 = vmatprep.subr.bf16.mxu0 %v2672
        %2886 = vmatpush1.bf16.msra.mxu0 %v2671
        %2887 = vmatprep.subr.bf16.mxu0 %v2676
        %2888 = vmatpush1.bf16.msra.mxu0 %v2675
        %2889 = vmatprep.subr.bf16.mxu0 %v2680
        %2890 = vmatpush1.bf16.msra.mxu0 %v2679
        %2891 = vmatprep.subr.bf16.mxu0 %v2684
        %2892 = vmatpush1.bf16.msra.mxu0 %v2683
        %2893 = vmatprep.subr.bf16.mxu0 %v2688
        %2894 = vmatpush1.bf16.msra.mxu0 %v2687
        %2895 = vmatprep.subr.bf16.mxu0 %v2692
        %2896 = vmatpush1.bf16.msra.mxu0 %v2691
        %2897 = vmatprep.subr.bf16.mxu0 0
        %2898 = vmatpush1.bf16.msra.mxu0 0
        %2899 = vmatprep.subr.bf16.mxu0 0
        %2900 = vmatpush1.bf16.msra.mxu0 0
        %2901 = vmatprep.subr.bf16.mxu0 0
        %2902 = vmatpush1.bf16.msra.mxu0 0
        %2903 = vmatprep.subr.bf16.mxu0 0
        %2904 = vmatpush1.bf16.msra.mxu0 0
        %2905 = vmatprep.subr.bf16.mxu0 0
        %2906 = vmatpush1.bf16.msra.mxu0 0
        %2907 = vmatprep.subr.bf16.mxu0 0
        %2908 = vmatpush1.bf16.msra.mxu0 0
        %2909 = vmatprep.subr.bf16.mxu0 0
        %2910 = vmatpush1.bf16.msra.mxu0 0
        %2911 = vmatprep.subr.bf16.mxu0 0
        %2912 = vmatpush1.bf16.msra.mxu0 0
        %2913 = vmatprep.mubr.bf16.mxu0 0
        %2914 = vmatmul.mubr.bf16.gmra.mrb[0].mxu0 %v2839
        %v2915 = vpop.f32.mrb[0].mxu0
        %v2916 = vadd.f32 0.0, %v2915
        %v2917 = vpop.f32.mrb[0].mxu0
        %v2918 = vadd.f32 0.0, %v2917
        %v2919 = vpop.f32.mrb[0].mxu0
        %v2920 = vpop.f32.mrb[0].mxu0
        %2921 = vdwg.mxu0
        %v2922 = vadd.f32 %v2835, %v2875
        %v2923 = vadd.f32 %v2836, %v2877
        %v2924 = vadd.f32 %v2837, %v2916
        %v2925 = vadd.f32 %v2838, %v2918
        %v2926 = vxor.u32 %v2922, 2147483648
        %v2927 = vmul.f32 %v2926, 1.442695
        %v2928 = vpow.pop %v2927
        %v2929 = vadd.f32 %v2928, 1.0
        %v2930 = vrcp.pop %v2929
        %v2931 = vmul.f32 1.0, %v2930
        %v2932 = vxor.u32 %v2923, 2147483648
        %v2933 = vmul.f32 %v2932, 1.442695
        %v2934 = vpow.pop %v2933
        %v2935 = vadd.f32 %v2934, 1.0
        %v2936 = vrcp.pop %v2935
        %v2937 = vmul.f32 1.0, %v2936
        %v2938 = vtanh.pop %v2924
        %v2939 = vxor.u32 %v2925, 2147483648
        %v2940 = vmul.f32 %v2939, 1.442695
        %v2941 = vpow.pop %v2940
        %v2942 = vadd.f32 %v2941, 1.0
        %v2943 = vrcp.pop %v2942
        %v2944 = vmul.f32 1.0, %v2943
        %v2945 = vmul.f32 %v2937, %v2832
        %v2946 = vmul.f32 %v2931, %v2938
        %v2947 = vadd.f32 %v2945, %v2946
        %v2948 = vtanh.pop %v2947
        %v2949 = vmul.f32 %v2944, %v2948
        %v2950 = vld [vmem:[%s1417] sm:$0xff]
        %v2951 = vld [vmem:[%s1417 + $0x8] sm:$0xff]
        %v2952 = vld [vmem:[%s1417 + $0x10] sm:$0xff]
        %v2953 = vld [vmem:[%s1417 + $0x18] sm:$0xff]
        %v2954 = vpack.c.bf16 %v2949, %v2949
        %2955 = vmatprep.subr.bf16.mxu0 %v2662
        %2956 = vmatpush1.bf16.msra.mxu0 %v2661
        %2957 = vmatprep.subr.bf16.mxu0 %v2666
        %2958 = vmatpush1.bf16.msra.mxu0 %v2665
        %2959 = vmatprep.subr.bf16.mxu0 %v2670
        %2960 = vmatpush1.bf16.msra.mxu0 %v2669
        %2961 = vmatprep.subr.bf16.mxu0 %v2674
        %2962 = vmatpush1.bf16.msra.mxu0 %v2673
        %2963 = vmatprep.subr.bf16.mxu0 %v2678
        %2964 = vmatpush1.bf16.msra.mxu0 %v2677
        %2965 = vmatprep.subr.bf16.mxu0 %v2682
        %2966 = vmatpush1.bf16.msra.mxu0 %v2681
        %2967 = vmatprep.subr.bf16.mxu0 %v2686
        %2968 = vmatpush1.bf16.msra.mxu0 %v2685
        %2969 = vmatprep.subr.bf16.mxu0 %v2690
        %2970 = vmatpush1.bf16.msra.mxu0 %v2689
        %2971 = vmatprep.subr.bf16.mxu0 0
        %2972 = vmatpush1.bf16.msra.mxu0 0
        %2973 = vmatprep.subr.bf16.mxu0 0
        %2974 = vmatpush1.bf16.msra.mxu0 0
        %2975 = vmatprep.subr.bf16.mxu0 0
        %2976 = vmatpush1.bf16.msra.mxu0 0
        %2977 = vmatprep.subr.bf16.mxu0 0
        %2978 = vmatpush1.bf16.msra.mxu0 0
        %2979 = vmatprep.subr.bf16.mxu0 0
        %2980 = vmatpush1.bf16.msra.mxu0 0
        %2981 = vmatprep.subr.bf16.mxu0 0
        %2982 = vmatpush1.bf16.msra.mxu0 0
        %2983 = vmatprep.subr.bf16.mxu0 0
        %2984 = vmatpush1.bf16.msra.mxu0 0
        %2985 = vmatprep.subr.bf16.mxu0 0
        %2986 = vmatpush1.bf16.msra.mxu0 0
        %2987 = vmatprep.mubr.bf16.mxu0 0
        %2988 = vmatmul.mubr.bf16.gmra.mrb[0].mxu0 %v2954
        %v2989 = vpop.f32.mrb[0].mxu0
        %v2990 = vadd.f32 0.0, %v2989
        %v2991 = vpop.f32.mrb[0].mxu0
        %v2992 = vadd.f32 0.0, %v2991
        %v2993 = vpop.f32.mrb[0].mxu0
        %v2994 = vpop.f32.mrb[0].mxu0
        %2995 = vdwg.mxu0
        %2996 = vmatprep.subr.bf16.mxu0 %v2664
        %2997 = vmatpush1.bf16.msra.mxu0 %v2663
        %2998 = vmatprep.subr.bf16.mxu0 %v2668
        %2999 = vmatpush1.bf16.msra.mxu0 %v2667
        %3000 = vmatprep.subr.bf16.mxu0 %v2672
        %3001 = vmatpush1.bf16.msra.mxu0 %v2671
        %3002 = vmatprep.subr.bf16.mxu0 %v2676
        %3003 = vmatpush1.bf16.msra.mxu0 %v2675
        %3004 = vmatprep.subr.bf16.mxu0 %v2680
        %3005 = vmatpush1.bf16.msra.mxu0 %v2679
        %3006 = vmatprep.subr.bf16.mxu0 %v2684
        %3007 = vmatpush1.bf16.msra.mxu0 %v2683
        %3008 = vmatprep.subr.bf16.mxu0 %v2688
        %3009 = vmatpush1.bf16.msra.mxu0 %v2687
        %3010 = vmatprep.subr.bf16.mxu0 %v2692
        %3011 = vmatpush1.bf16.msra.mxu0 %v2691
        %3012 = vmatprep.subr.bf16.mxu0 0
        %3013 = vmatpush1.bf16.msra.mxu0 0
        %3014 = vmatprep.subr.bf16.mxu0 0
        %3015 = vmatpush1.bf16.msra.mxu0 0
        %3016 = vmatprep.subr.bf16.mxu0 0
        %3017 = vmatpush1.bf16.msra.mxu0 0
        %3018 = vmatprep.subr.bf16.mxu0 0
        %3019 = vmatpush1.bf16.msra.mxu0 0
        %3020 = vmatprep.subr.bf16.mxu0 0
        %3021 = vmatpush1.bf16.msra.mxu0 0
        %3022 = vmatprep.subr.bf16.mxu0 0
        %3023 = vmatpush1.bf16.msra.mxu0 0
        %3024 = vmatprep.subr.bf16.mxu0 0
        %3025 = vmatpush1.bf16.msra.mxu0 0
        %3026 = vmatprep.subr.bf16.mxu0 0
        %3027 = vmatpush1.bf16.msra.mxu0 0
        %3028 = vmatprep.mubr.bf16.mxu0 0
        %3029 = vmatmul.mubr.bf16.gmra.mrb[0].mxu0 %v2954
        %v3030 = vpop.f32.mrb[0].mxu0
        %v3031 = vadd.f32 0.0, %v3030
        %v3032 = vpop.f32.mrb[0].mxu0
        %v3033 = vadd.f32 0.0, %v3032
        %v3034 = vpop.f32.mrb[0].mxu0
        %v3035 = vpop.f32.mrb[0].mxu0
        %3036 = vdwg.mxu0
        %v3037 = vadd.f32 %v2950, %v2990
        %v3038 = vadd.f32 %v2951, %v2992
        %v3039 = vadd.f32 %v2952, %v3031
        %v3040 = vadd.f32 %v2953, %v3033
        %v3041 = vxor.u32 %v3037, 2147483648
        %v3042 = vmul.f32 %v3041, 1.442695
        %v3043 = vpow.pop %v3042
        %v3044 = vadd.f32 %v3043, 1.0
        %v3045 = vrcp.pop %v3044
        %v3046 = vmul.f32 1.0, %v3045
        %v3047 = vxor.u32 %v3038, 2147483648
        %v3048 = vmul.f32 %v3047, 1.442695
        %v3049 = vpow.pop %v3048
        %v3050 = vadd.f32 %v3049, 1.0
        %v3051 = vrcp.pop %v3050
        %v3052 = vmul.f32 1.0, %v3051
        %v3053 = vtanh.pop %v3039
        %v3054 = vxor.u32 %v3040, 2147483648
        %v3055 = vmul.f32 %v3054, 1.442695
        %v3056 = vpow.pop %v3055
        %v3057 = vadd.f32 %v3056, 1.0
        %v3058 = vrcp.pop %v3057
        %v3059 = vmul.f32 1.0, %v3058
        %v3060 = vmul.f32 %v3052, %v2947
        %v3061 = vmul.f32 %v3046, %v3053
        %v3062 = vadd.f32 %v3060, %v3061
        %v3063 = vtanh.pop %v3062
        %v3064 = vmul.f32 %v3059, %v3063
        %v3065 = vld [vmem:[%s1535] sm:$0xff]
        %v3066 = vld [vmem:[%s1535 + $0x8] sm:$0xff]
        %v3067 = vld [vmem:[%s1535 + $0x10] sm:$0xff]
        %v3068 = vld [vmem:[%s1535 + $0x18] sm:$0xff]
        %v3069 = vpack.c.bf16 %v3064, %v3064
        %3070 = vmatprep.subr.bf16.mxu0 %v2662
        %3071 = vmatpush1.bf16.msra.mxu0 %v2661
        %3072 = vmatprep.subr.bf16.mxu0 %v2666
        %3073 = vmatpush1.bf16.msra.mxu0 %v2665
        %3074 = vmatprep.subr.bf16.mxu0 %v2670
        %3075 = vmatpush1.bf16.msra.mxu0 %v2669
        %3076 = vmatprep.subr.bf16.mxu0 %v2674
        %3077 = vmatpush1.bf16.msra.mxu0 %v2673
        %3078 = vmatprep.subr.bf16.mxu0 %v2678
        %3079 = vmatpush1.bf16.msra.mxu0 %v2677
        %3080 = vmatprep.subr.bf16.mxu0 %v2682
        %3081 = vmatpush1.bf16.msra.mxu0 %v2681
        %3082 = vmatprep.subr.bf16.mxu0 %v2686
        %3083 = vmatpush1.bf16.msra.mxu0 %v2685
        %3084 = vmatprep.subr.bf16.mxu0 %v2690
        %3085 = vmatpush1.bf16.msra.mxu0 %v2689
        %3086 = vmatprep.subr.bf16.mxu0 0
        %3087 = vmatpush1.bf16.msra.mxu0 0
        %3088 = vmatprep.subr.bf16.mxu0 0
        %3089 = vmatpush1.bf16.msra.mxu0 0
        %3090 = vmatprep.subr.bf16.mxu0 0
        %3091 = vmatpush1.bf16.msra.mxu0 0
        %3092 = vmatprep.subr.bf16.mxu0 0
        %3093 = vmatpush1.bf16.msra.mxu0 0
        %3094 = vmatprep.subr.bf16.mxu0 0
        %3095 = vmatpush1.bf16.msra.mxu0 0
        %3096 = vmatprep.subr.bf16.mxu0 0
        %3097 = vmatpush1.bf16.msra.mxu0 0
        %3098 = vmatprep.subr.bf16.mxu0 0
        %3099 = vmatpush1.bf16.msra.mxu0 0
        %3100 = vmatprep.subr.bf16.mxu0 0
        %3101 = vmatpush1.bf16.msra.mxu0 0
        %3102 = vmatprep.mubr.bf16.mxu0 0
        %3103 = vmatmul.mubr.bf16.gmra.mrb[0].mxu0 %v3069
        %v3104 = vpop.f32.mrb[0].mxu0
        %v3105 = vadd.f32 0.0, %v3104
        %v3106 = vpop.f32.mrb[0].mxu0
        %v3107 = vadd.f32 0.0, %v3106
        %v3108 = vpop.f32.mrb[0].mxu0
        %v3109 = vpop.f32.mrb[0].mxu0
        %3110 = vdwg.mxu0
        %3111 = vmatprep.subr.bf16.mxu0 %v2664
        %3112 = vmatpush1.bf16.msra.mxu0 %v2663
        %3113 = vmatprep.subr.bf16.mxu0 %v2668
        %3114 = vmatpush1.bf16.msra.mxu0 %v2667
        %3115 = vmatprep.subr.bf16.mxu0 %v2672
        %3116 = vmatpush1.bf16.msra.mxu0 %v2671
        %3117 = vmatprep.subr.bf16.mxu0 %v2676
        %3118 = vmatpush1.bf16.msra.mxu0 %v2675
        %3119 = vmatprep.subr.bf16.mxu0 %v2680
        %3120 = vmatpush1.bf16.msra.mxu0 %v2679
        %3121 = vmatprep.subr.bf16.mxu0 %v2684
        %3122 = vmatpush1.bf16.msra.mxu0 %v2683
        %3123 = vmatprep.subr.bf16.mxu0 %v2688
        %3124 = vmatpush1.bf16.msra.mxu0 %v2687
        %3125 = vmatprep.subr.bf16.mxu0 %v2692
        %3126 = vmatpush1.bf16.msra.mxu0 %v2691
        %3127 = vmatprep.subr.bf16.mxu0 0
        %3128 = vmatpush1.bf16.msra.mxu0 0
        %3129 = vmatprep.subr.bf16.mxu0 0
        %3130 = vmatpush1.bf16.msra.mxu0 0
        %3131 = vmatprep.subr.bf16.mxu0 0
        %3132 = vmatpush1.bf16.msra.mxu0 0
        %3133 = vmatprep.subr.bf16.mxu0 0
        %3134 = vmatpush1.bf16.msra.mxu0 0
        %3135 = vmatprep.subr.bf16.mxu0 0
        %3136 = vmatpush1.bf16.msra.mxu0 0
        %3137 = vmatprep.subr.bf16.mxu0 0
        %3138 = vmatpush1.bf16.msra.mxu0 0
        %3139 = vmatprep.subr.bf16.mxu0 0
        %3140 = vmatpush1.bf16.msra.mxu0 0
        %3141 = vmatprep.subr.bf16.mxu0 0
        %3142 = vmatpush1.bf16.msra.mxu0 0
        %3143 = vmatprep.mubr.bf16.mxu0 0
        %3144 = vmatmul.mubr.bf16.gmra.mrb[0].mxu0 %v3069
        %v3145 = vpop.f32.mrb[0].mxu0
        %v3146 = vadd.f32 0.0, %v3145
        %v3147 = vpop.f32.mrb[0].mxu0
        %v3148 = vadd.f32 0.0, %v3147
        %v3149 = vpop.f32.mrb[0].mxu0
        %v3150 = vpop.f32.mrb[0].mxu0
        %3151 = vdwg.mxu0
        %v3152 = vadd.f32 %v3065, %v3105
        %v3153 = vadd.f32 %v3066, %v3107
        %v3154 = vadd.f32 %v3067, %v3146
        %v3155 = vadd.f32 %v3068, %v3148
        %v3156 = vxor.u32 %v3152, 2147483648
        %v3157 = vmul.f32 %v3156, 1.442695
        %v3158 = vpow.pop %v3157
        %v3159 = vadd.f32 %v3158, 1.0
        %v3160 = vrcp.pop %v3159
        %v3161 = vmul.f32 1.0, %v3160
        %v3162 = vxor.u32 %v3153, 2147483648
        %v3163 = vmul.f32 %v3162, 1.442695
        %v3164 = vpow.pop %v3163
        %v3165 = vadd.f32 %v3164, 1.0
        %v3166 = vrcp.pop %v3165
        %v3167 = vmul.f32 1.0, %v3166
        %v3168 = vtanh.pop %v3154
        %v3169 = vxor.u32 %v3155, 2147483648
        %v3170 = vmul.f32 %v3169, 1.442695
        %v3171 = vpow.pop %v3170
        %v3172 = vadd.f32 %v3171, 1.0
        %v3173 = vrcp.pop %v3172
        %v3174 = vmul.f32 1.0, %v3173
        %v3175 = vmul.f32 %v3167, %v3062
        %v3176 = vmul.f32 %v3161, %v3168
        %v3177 = vadd.f32 %v3175, %v3176
        %v3178 = vtanh.pop %v3177
        %v3179 = vmul.f32 %v3174, %v3178
        %v3180 = vld [vmem:[%s1653] sm:$0xff]
        %v3181 = vld [vmem:[%s1653 + $0x8] sm:$0xff]
        %v3182 = vld [vmem:[%s1653 + $0x10] sm:$0xff]
        %v3183 = vld [vmem:[%s1653 + $0x18] sm:$0xff]
        %v3184 = vpack.c.bf16 %v3179, %v3179
        %3185 = vmatprep.subr.bf16.mxu0 %v2662
        %3186 = vmatpush1.bf16.msra.mxu0 %v2661
        %3187 = vmatprep.subr.bf16.mxu0 %v2666
        %3188 = vmatpush1.bf16.msra.mxu0 %v2665
        %3189 = vmatprep.subr.bf16.mxu0 %v2670
        %3190 = vmatpush1.bf16.msra.mxu0 %v2669
        %3191 = vmatprep.subr.bf16.mxu0 %v2674
        %3192 = vmatpush1.bf16.msra.mxu0 %v2673
        %3193 = vmatprep.subr.bf16.mxu0 %v2678
        %3194 = vmatpush1.bf16.msra.mxu0 %v2677
        %3195 = vmatprep.subr.bf16.mxu0 %v2682
        %3196 = vmatpush1.bf16.msra.mxu0 %v2681
        %3197 = vmatprep.subr.bf16.mxu0 %v2686
        %3198 = vmatpush1.bf16.msra.mxu0 %v2685
        %3199 = vmatprep.subr.bf16.mxu0 %v2690
        %3200 = vmatpush1.bf16.msra.mxu0 %v2689
        %3201 = vmatprep.subr.bf16.mxu0 0
        %3202 = vmatpush1.bf16.msra.mxu0 0
        %3203 = vmatprep.subr.bf16.mxu0 0
        %3204 = vmatpush1.bf16.msra.mxu0 0
        %3205 = vmatprep.subr.bf16.mxu0 0
        %3206 = vmatpush1.bf16.msra.mxu0 0
        %3207 = vmatprep.subr.bf16.mxu0 0
        %3208 = vmatpush1.bf16.msra.mxu0 0
        %3209 = vmatprep.subr.bf16.mxu0 0
        %3210 = vmatpush1.bf16.msra.mxu0 0
        %3211 = vmatprep.subr.bf16.mxu0 0
        %3212 = vmatpush1.bf16.msra.mxu0 0
        %3213 = vmatprep.subr.bf16.mxu0 0
        %3214 = vmatpush1.bf16.msra.mxu0 0
        %3215 = vmatprep.subr.bf16.mxu0 0
        %3216 = vmatpush1.bf16.msra.mxu0 0
        %3217 = vmatprep.mubr.bf16.mxu0 0
        %3218 = vmatmul.mubr.bf16.gmra.mrb[0].mxu0 %v3184
        %v3219 = vpop.f32.mrb[0].mxu0
        %v3220 = vadd.f32 0.0, %v3219
        %v3221 = vpop.f32.mrb[0].mxu0
        %v3222 = vadd.f32 0.0, %v3221
        %v3223 = vpop.f32.mrb[0].mxu0
        %v3224 = vpop.f32.mrb[0].mxu0
        %3225 = vdwg.mxu0
        %3226 = vmatprep.subr.bf16.mxu0 %v2664
        %3227 = vmatpush1.bf16.msra.mxu0 %v2663
        %3228 = vmatprep.subr.bf16.mxu0 %v2668
        %3229 = vmatpush1.bf16.msra.mxu0 %v2667
        %3230 = vmatprep.subr.bf16.mxu0 %v2672
        %3231 = vmatpush1.bf16.msra.mxu0 %v2671
        %3232 = vmatprep.subr.bf16.mxu0 %v2676
        %3233 = vmatpush1.bf16.msra.mxu0 %v2675
        %3234 = vmatprep.subr.bf16.mxu0 %v2680
        %3235 = vmatpush1.bf16.msra.mxu0 %v2679
        %3236 = vmatprep.subr.bf16.mxu0 %v2684
        %3237 = vmatpush1.bf16.msra.mxu0 %v2683
        %3238 = vmatprep.subr.bf16.mxu0 %v2688
        %3239 = vmatpush1.bf16.msra.mxu0 %v2687
        %3240 = vmatprep.subr.bf16.mxu0 %v2692
        %3241 = vmatpush1.bf16.msra.mxu0 %v2691
        %3242 = vmatprep.subr.bf16.mxu0 0
        %3243 = vmatpush1.bf16.msra.mxu0 0
        %3244 = vmatprep.subr.bf16.mxu0 0
        %3245 = vmatpush1.bf16.msra.mxu0 0
        %3246 = vmatprep.subr.bf16.mxu0 0
        %3247 = vmatpush1.bf16.msra.mxu0 0
        %3248 = vmatprep.subr.bf16.mxu0 0
        %3249 = vmatpush1.bf16.msra.mxu0 0
        %3250 = vmatprep.subr.bf16.mxu0 0
        %3251 = vmatpush1.bf16.msra.mxu0 0
        %3252 = vmatprep.subr.bf16.mxu0 0
        %3253 = vmatpush1.bf16.msra.mxu0 0
        %3254 = vmatprep.subr.bf16.mxu0 0
        %3255 = vmatpush1.bf16.msra.mxu0 0
        %3256 = vmatprep.subr.bf16.mxu0 0
        %3257 = vmatpush1.bf16.msra.mxu0 0
        %3258 = vmatprep.mubr.bf16.mxu0 0
        %3259 = vmatmul.mubr.bf16.gmra.mrb[0].mxu0 %v3184
        %v3260 = vpop.f32.mrb[0].mxu0
        %v3261 = vadd.f32 0.0, %v3260
        %v3262 = vpop.f32.mrb[0].mxu0
        %v3263 = vadd.f32 0.0, %v3262
        %v3264 = vpop.f32.mrb[0].mxu0
        %v3265 = vpop.f32.mrb[0].mxu0
        %3266 = vdwg.mxu0
        %v3267 = vadd.f32 %v3180, %v3220
        %v3268 = vadd.f32 %v3181, %v3222
        %v3269 = vadd.f32 %v3182, %v3261
        %v3270 = vadd.f32 %v3183, %v3263
        %v3271 = vxor.u32 %v3267, 2147483648
        %v3272 = vmul.f32 %v3271, 1.442695
        %v3273 = vpow.pop %v3272
        %v3274 = vadd.f32 %v3273, 1.0
        %v3275 = vrcp.pop %v3274
        %v3276 = vmul.f32 1.0, %v3275
        %v3277 = vxor.u32 %v3268, 2147483648
        %v3278 = vmul.f32 %v3277, 1.442695
        %v3279 = vpow.pop %v3278
        %v3280 = vadd.f32 %v3279, 1.0
        %v3281 = vrcp.pop %v3280
        %v3282 = vmul.f32 1.0, %v3281
        %v3283 = vtanh.pop %v3269
        %v3284 = vxor.u32 %v3270, 2147483648
        %v3285 = vmul.f32 %v3284, 1.442695
        %v3286 = vpow.pop %v3285
        %v3287 = vadd.f32 %v3286, 1.0
        %v3288 = vrcp.pop %v3287
        %v3289 = vmul.f32 1.0, %v3288
        %v3290 = vmul.f32 %v3282, %v3177
        %v3291 = vmul.f32 %v3276, %v3283
        %v3292 = vadd.f32 %v3290, %v3291
        %v3293 = vtanh.pop %v3292
        %v3294 = vmul.f32 %v3289, %v3293
        %v3295 = vld [vmem:[%s1771] sm:$0xff]
        %v3296 = vld [vmem:[%s1771 + $0x8] sm:$0xff]
        %v3297 = vld [vmem:[%s1771 + $0x10] sm:$0xff]
        %v3298 = vld [vmem:[%s1771 + $0x18] sm:$0xff]
        %v3299 = vpack.c.bf16 %v3294, %v3294
        %3300 = vmatprep.subr.bf16.mxu0 %v2662
        %3301 = vmatpush1.bf16.msra.mxu0 %v2661
        %3302 = vmatprep.subr.bf16.mxu0 %v2666
        %3303 = vmatpush1.bf16.msra.mxu0 %v2665
        %3304 = vmatprep.subr.bf16.mxu0 %v2670
        %3305 = vmatpush1.bf16.msra.mxu0 %v2669
        %3306 = vmatprep.subr.bf16.mxu0 %v2674
        %3307 = vmatpush1.bf16.msra.mxu0 %v2673
        %3308 = vmatprep.subr.bf16.mxu0 %v2678
        %3309 = vmatpush1.bf16.msra.mxu0 %v2677
        %3310 = vmatprep.subr.bf16.mxu0 %v2682
        %3311 = vmatpush1.bf16.msra.mxu0 %v2681
        %3312 = vmatprep.subr.bf16.mxu0 %v2686
        %3313 = vmatpush1.bf16.msra.mxu0 %v2685
        %3314 = vmatprep.subr.bf16.mxu0 %v2690
        %3315 = vmatpush1.bf16.msra.mxu0 %v2689
        %3316 = vmatprep.subr.bf16.mxu0 0
        %3317 = vmatpush1.bf16.msra.mxu0 0
        %3318 = vmatprep.subr.bf16.mxu0 0
        %3319 = vmatpush1.bf16.msra.mxu0 0
        %3320 = vmatprep.subr.bf16.mxu0 0
        %3321 = vmatpush1.bf16.msra.mxu0 0
        %3322 = vmatprep.subr.bf16.mxu0 0
        %3323 = vmatpush1.bf16.msra.mxu0 0
        %3324 = vmatprep.subr.bf16.mxu0 0
        %3325 = vmatpush1.bf16.msra.mxu0 0
        %3326 = vmatprep.subr.bf16.mxu0 0
        %3327 = vmatpush1.bf16.msra.mxu0 0
        %3328 = vmatprep.subr.bf16.mxu0 0
        %3329 = vmatpush1.bf16.msra.mxu0 0
        %3330 = vmatprep.subr.bf16.mxu0 0
        %3331 = vmatpush1.bf16.msra.mxu0 0
        %3332 = vmatprep.mubr.bf16.mxu0 0
        %3333 = vmatmul.mubr.bf16.gmra.mrb[0].mxu0 %v3299
        %v3334 = vpop.f32.mrb[0].mxu0
        %v3335 = vadd.f32 0.0, %v3334
        %v3336 = vpop.f32.mrb[0].mxu0
        %v3337 = vadd.f32 0.0, %v3336
        %v3338 = vpop.f32.mrb[0].mxu0
        %v3339 = vpop.f32.mrb[0].mxu0
        %3340 = vdwg.mxu0
        %3341 = vmatprep.subr.bf16.mxu0 %v2664
        %3342 = vmatpush1.bf16.msra.mxu0 %v2663
        %3343 = vmatprep.subr.bf16.mxu0 %v2668
        %3344 = vmatpush1.bf16.msra.mxu0 %v2667
        %3345 = vmatprep.subr.bf16.mxu0 %v2672
        %3346 = vmatpush1.bf16.msra.mxu0 %v2671
        %3347 = vmatprep.subr.bf16.mxu0 %v2676
        %3348 = vmatpush1.bf16.msra.mxu0 %v2675
        %3349 = vmatprep.subr.bf16.mxu0 %v2680
        %3350 = vmatpush1.bf16.msra.mxu0 %v2679
        %3351 = vmatprep.subr.bf16.mxu0 %v2684
        %3352 = vmatpush1.bf16.msra.mxu0 %v2683
        %3353 = vmatprep.subr.bf16.mxu0 %v2688
        %3354 = vmatpush1.bf16.msra.mxu0 %v2687
        %3355 = vmatprep.subr.bf16.mxu0 %v2692
        %3356 = vmatpush1.bf16.msra.mxu0 %v2691
        %3357 = vmatprep.subr.bf16.mxu0 0
        %3358 = vmatpush1.bf16.msra.mxu0 0
        %3359 = vmatprep.subr.bf16.mxu0 0
        %3360 = vmatpush1.bf16.msra.mxu0 0
        %3361 = vmatprep.subr.bf16.mxu0 0
        %3362 = vmatpush1.bf16.msra.mxu0 0
        %3363 = vmatprep.subr.bf16.mxu0 0
        %3364 = vmatpush1.bf16.msra.mxu0 0
        %3365 = vmatprep.subr.bf16.mxu0 0
        %3366 = vmatpush1.bf16.msra.mxu0 0
        %3367 = vmatprep.subr.bf16.mxu0 0
        %3368 = vmatpush1.bf16.msra.mxu0 0
        %3369 = vmatprep.subr.bf16.mxu0 0
        %3370 = vmatpush1.bf16.msra.mxu0 0
        %3371 = vmatprep.subr.bf16.mxu0 0
        %3372 = vmatpush1.bf16.msra.mxu0 0
        %3373 = vmatprep.mubr.bf16.mxu0 0
        %3374 = vmatmul.mubr.bf16.gmra.mrb[0].mxu0 %v3299
        %v3375 = vpop.f32.mrb[0].mxu0
        %v3376 = vadd.f32 0.0, %v3375
        %v3377 = vpop.f32.mrb[0].mxu0
        %v3378 = vadd.f32 0.0, %v3377
        %v3379 = vpop.f32.mrb[0].mxu0
        %v3380 = vpop.f32.mrb[0].mxu0
        %3381 = vdwg.mxu0
        %v3382 = vadd.f32 %v3295, %v3335
        %v3383 = vadd.f32 %v3296, %v3337
        %v3384 = vadd.f32 %v3297, %v3376
        %v3385 = vadd.f32 %v3298, %v3378
        %v3386 = vxor.u32 %v3382, 2147483648
        %v3387 = vmul.f32 %v3386, 1.442695
        %v3388 = vpow.pop %v3387
        %v3389 = vadd.f32 %v3388, 1.0
        %v3390 = vrcp.pop %v3389
        %v3391 = vmul.f32 1.0, %v3390
        %v3392 = vxor.u32 %v3383, 2147483648
        %v3393 = vmul.f32 %v3392, 1.442695
        %v3394 = vpow.pop %v3393
        %v3395 = vadd.f32 %v3394, 1.0
        %v3396 = vrcp.pop %v3395
        %v3397 = vmul.f32 1.0, %v3396
        %v3398 = vtanh.pop %v3384
        %v3399 = vxor.u32 %v3385, 2147483648
        %v3400 = vmul.f32 %v3399, 1.442695
        %v3401 = vpow.pop %v3400
        %v3402 = vadd.f32 %v3401, 1.0
        %v3403 = vrcp.pop %v3402
        %v3404 = vmul.f32 1.0, %v3403
        %v3405 = vmul.f32 %v3397, %v3292
        %v3406 = vmul.f32 %v3391, %v3398
        %v3407 = vadd.f32 %v3405, %v3406
        %v3408 = vtanh.pop %v3407
        %v3409 = vmul.f32 %v3404, %v3408
        %v3410 = vld [vmem:[%s1889] sm:$0xff]
        %v3411 = vld [vmem:[%s1889 + $0x8] sm:$0xff]
        %v3412 = vld [vmem:[%s1889 + $0x10] sm:$0xff]
        %v3413 = vld [vmem:[%s1889 + $0x18] sm:$0xff]
        %v3414 = vpack.c.bf16 %v3409, %v3409
        %3415 = vmatprep.subr.bf16.mxu0 %v2662
        %3416 = vmatpush1.bf16.msra.mxu0 %v2661
        %3417 = vmatprep.subr.bf16.mxu0 %v2666
        %3418 = vmatpush1.bf16.msra.mxu0 %v2665
        %3419 = vmatprep.subr.bf16.mxu0 %v2670
        %3420 = vmatpush1.bf16.msra.mxu0 %v2669
        %3421 = vmatprep.subr.bf16.mxu0 %v2674
        %3422 = vmatpush1.bf16.msra.mxu0 %v2673
        %3423 = vmatprep.subr.bf16.mxu0 %v2678
        %3424 = vmatpush1.bf16.msra.mxu0 %v2677
        %3425 = vmatprep.subr.bf16.mxu0 %v2682
        %3426 = vmatpush1.bf16.msra.mxu0 %v2681
        %3427 = vmatprep.subr.bf16.mxu0 %v2686
        %3428 = vmatpush1.bf16.msra.mxu0 %v2685
        %3429 = vmatprep.subr.bf16.mxu0 %v2690
        %3430 = vmatpush1.bf16.msra.mxu0 %v2689
        %3431 = vmatprep.subr.bf16.mxu0 0
        %3432 = vmatpush1.bf16.msra.mxu0 0
        %3433 = vmatprep.subr.bf16.mxu0 0
        %3434 = vmatpush1.bf16.msra.mxu0 0
        %3435 = vmatprep.subr.bf16.mxu0 0
        %3436 = vmatpush1.bf16.msra.mxu0 0
        %3437 = vmatprep.subr.bf16.mxu0 0
        %3438 = vmatpush1.bf16.msra.mxu0 0
        %3439 = vmatprep.subr.bf16.mxu0 0
        %3440 = vmatpush1.bf16.msra.mxu0 0
        %3441 = vmatprep.subr.bf16.mxu0 0
        %3442 = vmatpush1.bf16.msra.mxu0 0
        %3443 = vmatprep.subr.bf16.mxu0 0
        %3444 = vmatpush1.bf16.msra.mxu0 0
        %3445 = vmatprep.subr.bf16.mxu0 0
        %3446 = vmatpush1.bf16.msra.mxu0 0
        %3447 = vmatprep.mubr.bf16.mxu0 0
        %3448 = vmatmul.mubr.bf16.gmra.mrb[0].mxu0 %v3414
        %v3449 = vpop.f32.mrb[0].mxu0
        %v3450 = vadd.f32 0.0, %v3449
        %v3451 = vpop.f32.mrb[0].mxu0
        %v3452 = vadd.f32 0.0, %v3451
        %v3453 = vpop.f32.mrb[0].mxu0
        %v3454 = vpop.f32.mrb[0].mxu0
        %3455 = vdwg.mxu0
        %3456 = vmatprep.subr.bf16.mxu0 %v2664
        %3457 = vmatpush1.bf16.msra.mxu0 %v2663
        %3458 = vmatprep.subr.bf16.mxu0 %v2668
        %3459 = vmatpush1.bf16.msra.mxu0 %v2667
        %3460 = vmatprep.subr.bf16.mxu0 %v2672
        %3461 = vmatpush1.bf16.msra.mxu0 %v2671
        %3462 = vmatprep.subr.bf16.mxu0 %v2676
        %3463 = vmatpush1.bf16.msra.mxu0 %v2675
        %3464 = vmatprep.subr.bf16.mxu0 %v2680
        %3465 = vmatpush1.bf16.msra.mxu0 %v2679
        %3466 = vmatprep.subr.bf16.mxu0 %v2684
        %3467 = vmatpush1.bf16.msra.mxu0 %v2683
        %3468 = vmatprep.subr.bf16.mxu0 %v2688
        %3469 = vmatpush1.bf16.msra.mxu0 %v2687
        %3470 = vmatprep.subr.bf16.mxu0 %v2692
        %3471 = vmatpush1.bf16.msra.mxu0 %v2691
        %3472 = vmatprep.subr.bf16.mxu0 0
        %3473 = vmatpush1.bf16.msra.mxu0 0
        %3474 = vmatprep.subr.bf16.mxu0 0
        %3475 = vmatpush1.bf16.msra.mxu0 0
        %3476 = vmatprep.subr.bf16.mxu0 0
        %3477 = vmatpush1.bf16.msra.mxu0 0
        %3478 = vmatprep.subr.bf16.mxu0 0
        %3479 = vmatpush1.bf16.msra.mxu0 0
        %3480 = vmatprep.subr.bf16.mxu0 0
        %3481 = vmatpush1.bf16.msra.mxu0 0
        %3482 = vmatprep.subr.bf16.mxu0 0
        %3483 = vmatpush1.bf16.msra.mxu0 0
        %3484 = vmatprep.subr.bf16.mxu0 0
        %3485 = vmatpush1.bf16.msra.mxu0 0
        %3486 = vmatprep.subr.bf16.mxu0 0
        %3487 = vmatpush1.bf16.msra.mxu0 0
        %3488 = vmatprep.mubr.bf16.mxu0 0
        %3489 = vmatmul.mubr.bf16.gmra.mrb[0].mxu0 %v3414
        %v3490 = vpop.f32.mrb[0].mxu0
        %v3491 = vadd.f32 0.0, %v3490
        %v3492 = vpop.f32.mrb[0].mxu0
        %v3493 = vadd.f32 0.0, %v3492
        %v3494 = vpop.f32.mrb[0].mxu0
        %v3495 = vpop.f32.mrb[0].mxu0
        %3496 = vdwg.mxu0
        %v3497 = vadd.f32 %v3410, %v3450
        %v3498 = vadd.f32 %v3411, %v3452
        %v3499 = vadd.f32 %v3412, %v3491
        %v3500 = vadd.f32 %v3413, %v3493
        %v3501 = vxor.u32 %v3497, 2147483648
        %v3502 = vmul.f32 %v3501, 1.442695
        %v3503 = vpow.pop %v3502
        %v3504 = vadd.f32 %v3503, 1.0
        %v3505 = vrcp.pop %v3504
        %v3506 = vmul.f32 1.0, %v3505
        %v3507 = vxor.u32 %v3498, 2147483648
        %v3508 = vmul.f32 %v3507, 1.442695
        %v3509 = vpow.pop %v3508
        %v3510 = vadd.f32 %v3509, 1.0
        %v3511 = vrcp.pop %v3510
        %v3512 = vmul.f32 1.0, %v3511
        %v3513 = vtanh.pop %v3499
        %v3514 = vxor.u32 %v3500, 2147483648
        %v3515 = vmul.f32 %v3514, 1.442695
        %v3516 = vpow.pop %v3515
        %v3517 = vadd.f32 %v3516, 1.0
        %v3518 = vrcp.pop %v3517
        %v3519 = vmul.f32 1.0, %v3518
        %v3520 = vmul.f32 %v3512, %v3407
        %v3521 = vmul.f32 %v3506, %v3513
        %v3522 = vadd.f32 %v3520, %v3521
        %v3523 = vtanh.pop %v3522
        %v3524 = vmul.f32 %v3519, %v3523
        %v3525 = vld [vmem:[%s2007] sm:$0xff]
        %v3526 = vld [vmem:[%s2007 + $0x8] sm:$0xff]
        %v3527 = vld [vmem:[%s2007 + $0x10] sm:$0xff]
        %v3528 = vld [vmem:[%s2007 + $0x18] sm:$0xff]
        %v3529 = vpack.c.bf16 %v3524, %v3524
        %3530 = vmatprep.subr.bf16.mxu0 %v2662
        %3531 = vmatpush1.bf16.msra.mxu0 %v2661
        %3532 = vmatprep.subr.bf16.mxu0 %v2666
        %3533 = vmatpush1.bf16.msra.mxu0 %v2665
        %3534 = vmatprep.subr.bf16.mxu0 %v2670
        %3535 = vmatpush1.bf16.msra.mxu0 %v2669
        %3536 = vmatprep.subr.bf16.mxu0 %v2674
        %3537 = vmatpush1.bf16.msra.mxu0 %v2673
        %3538 = vmatprep.subr.bf16.mxu0 %v2678
        %3539 = vmatpush1.bf16.msra.mxu0 %v2677
        %3540 = vmatprep.subr.bf16.mxu0 %v2682
        %3541 = vmatpush1.bf16.msra.mxu0 %v2681
        %3542 = vmatprep.subr.bf16.mxu0 %v2686
        %3543 = vmatpush1.bf16.msra.mxu0 %v2685
        %3544 = vmatprep.subr.bf16.mxu0 %v2690
        %3545 = vmatpush1.bf16.msra.mxu0 %v2689
        %3546 = vmatprep.subr.bf16.mxu0 0
        %3547 = vmatpush1.bf16.msra.mxu0 0
        %3548 = vmatprep.subr.bf16.mxu0 0
        %3549 = vmatpush1.bf16.msra.mxu0 0
        %3550 = vmatprep.subr.bf16.mxu0 0
        %3551 = vmatpush1.bf16.msra.mxu0 0
        %3552 = vmatprep.subr.bf16.mxu0 0
        %3553 = vmatpush1.bf16.msra.mxu0 0
        %3554 = vmatprep.subr.bf16.mxu0 0
        %3555 = vmatpush1.bf16.msra.mxu0 0
        %3556 = vmatprep.subr.bf16.mxu0 0
        %3557 = vmatpush1.bf16.msra.mxu0 0
        %3558 = vmatprep.subr.bf16.mxu0 0
        %3559 = vmatpush1.bf16.msra.mxu0 0
        %3560 = vmatprep.subr.bf16.mxu0 0
        %3561 = vmatpush1.bf16.msra.mxu0 0
        %3562 = vmatprep.mubr.bf16.mxu0 0
        %3563 = vmatmul.mubr.bf16.gmra.mrb[0].mxu0 %v3529
        %v3564 = vpop.f32.mrb[0].mxu0
        %v3565 = vadd.f32 0.0, %v3564
        %v3566 = vpop.f32.mrb[0].mxu0
        %v3567 = vadd.f32 0.0, %v3566
        %v3568 = vpop.f32.mrb[0].mxu0
        %v3569 = vpop.f32.mrb[0].mxu0
        %3570 = vdwg.mxu0
        %3571 = vmatprep.subr.bf16.mxu0 %v2664
        %3572 = vmatpush1.bf16.msra.mxu0 %v2663
        %3573 = vmatprep.subr.bf16.mxu0 %v2668
        %3574 = vmatpush1.bf16.msra.mxu0 %v2667
        %3575 = vmatprep.subr.bf16.mxu0 %v2672
        %3576 = vmatpush1.bf16.msra.mxu0 %v2671
        %3577 = vmatprep.subr.bf16.mxu0 %v2676
        %3578 = vmatpush1.bf16.msra.mxu0 %v2675
        %3579 = vmatprep.subr.bf16.mxu0 %v2680
        %3580 = vmatpush1.bf16.msra.mxu0 %v2679
        %3581 = vmatprep.subr.bf16.mxu0 %v2684
        %3582 = vmatpush1.bf16.msra.mxu0 %v2683
        %3583 = vmatprep.subr.bf16.mxu0 %v2688
        %3584 = vmatpush1.bf16.msra.mxu0 %v2687
        %3585 = vmatprep.subr.bf16.mxu0 %v2692
        %3586 = vmatpush1.bf16.msra.mxu0 %v2691
        %3587 = vmatprep.subr.bf16.mxu0 0
        %3588 = vmatpush1.bf16.msra.mxu0 0
        %3589 = vmatprep.subr.bf16.mxu0 0
        %3590 = vmatpush1.bf16.msra.mxu0 0
        %3591 = vmatprep.subr.bf16.mxu0 0
        %3592 = vmatpush1.bf16.msra.mxu0 0
        %3593 = vmatprep.subr.bf16.mxu0 0
        %3594 = vmatpush1.bf16.msra.mxu0 0
        %3595 = vmatprep.subr.bf16.mxu0 0
        %3596 = vmatpush1.bf16.msra.mxu0 0
        %3597 = vmatprep.subr.bf16.mxu0 0
        %3598 = vmatpush1.bf16.msra.mxu0 0
        %3599 = vmatprep.subr.bf16.mxu0 0
        %3600 = vmatpush1.bf16.msra.mxu0 0
        %3601 = vmatprep.subr.bf16.mxu0 0
        %3602 = vmatpush1.bf16.msra.mxu0 0
        %3603 = vmatprep.mubr.bf16.mxu0 0
        %3604 = vmatmul.mubr.bf16.gmra.mrb[0].mxu0 %v3529
        %v3605 = vpop.f32.mrb[0].mxu0
        %v3606 = vadd.f32 0.0, %v3605
        %v3607 = vpop.f32.mrb[0].mxu0
        %v3608 = vadd.f32 0.0, %v3607
        %v3609 = vpop.f32.mrb[0].mxu0
        %v3610 = vpop.f32.mrb[0].mxu0
        %3611 = vdwg.mxu0
        %v3612 = vadd.f32 %v3525, %v3565
        %v3613 = vadd.f32 %v3526, %v3567
        %v3614 = vadd.f32 %v3527, %v3606
        %v3615 = vadd.f32 %v3528, %v3608
        %v3616 = vxor.u32 %v3612, 2147483648
        %v3617 = vmul.f32 %v3616, 1.442695
        %v3618 = vpow.pop %v3617
        %v3619 = vadd.f32 %v3618, 1.0
        %v3620 = vrcp.pop %v3619
        %v3621 = vmul.f32 1.0, %v3620
        %v3622 = vxor.u32 %v3613, 2147483648
        %v3623 = vmul.f32 %v3622, 1.442695
        %v3624 = vpow.pop %v3623
        %v3625 = vadd.f32 %v3624, 1.0
        %v3626 = vrcp.pop %v3625
        %v3627 = vmul.f32 1.0, %v3626
        %v3628 = vtanh.pop %v3614
        %v3629 = vxor.u32 %v3615, 2147483648
        %v3630 = vmul.f32 %v3629, 1.442695
        %v3631 = vpow.pop %v3630
        %v3632 = vadd.f32 %v3631, 1.0
        %v3633 = vrcp.pop %v3632
        %v3634 = vmul.f32 1.0, %v3633
        %v3635 = vmul.f32 %v3627, %v3522
        %v3636 = vmul.f32 %v3621, %v3628
        %v3637 = vadd.f32 %v3635, %v3636
        %v3638 = vtanh.pop %v3637
        %v3639 = vmul.f32 %v3634, %v3638
        %v3640 = vld [vmem:[%s7] sm:$0xff]
        %v3641 = vld [vmem:[%s7 + $0x8] sm:$0xff]
        %v3642 = vld [vmem:[%s7 + $0x10] sm:$0xff]
        %v3643 = vld [vmem:[%s7 + $0x18] sm:$0xff]
        %v3644 = vld [vmem:[%s7 + $0x20] sm:$0xff]
        %v3645 = vld [vmem:[%s7 + $0x28] sm:$0xff]
        %v3646 = vld [vmem:[%s7 + $0x30] sm:$0xff]
        %v3647 = vld [vmem:[%s7 + $0x38] sm:$0xff]
        %v3648 = vld [vmem:[%s7 + $0x40] sm:$0xff]
        %v3649 = vld [vmem:[%s7 + $0x48] sm:$0xff]
        %v3650 = vld [vmem:[%s7 + $0x50] sm:$0xff]
        %v3651 = vld [vmem:[%s7 + $0x58] sm:$0xff]
        %v3652 = vld [vmem:[%s7 + $0x60] sm:$0xff]
        %v3653 = vld [vmem:[%s7 + $0x68] sm:$0xff]
        %v3654 = vld [vmem:[%s7 + $0x70] sm:$0xff]
        %v3655 = vld [vmem:[%s7 + $0x78] sm:$0xff]
        %v3656 = vld [vmem:[#allocation4] sm:$0x1]
        %v3658 = vlaneseq
        %v3659 = vshrl.u32 %v3658, 7
        %v3660 = vsub.s32 0, %v3659
        %v3661 = vrot.slane %v3656, %v3660
        %3663 = vmatprep.subr.mxu0 0.0
        %3664 = vmatpush1.msra.mxu0 %v3640
        %3665 = vmatprep.subr.mxu0 0.0
        %3666 = vmatpush1.msra.mxu0 %v3641
        %3667 = vmatprep.subr.mxu0 0.0
        %3668 = vmatpush1.msra.mxu0 %v3642
        %3669 = vmatprep.subr.mxu0 0.0
        %3670 = vmatpush1.msra.mxu0 %v3643
        %3671 = vmatprep.subr.mxu0 0.0
        %3672 = vmatpush1.msra.mxu0 %v3644
        %3673 = vmatprep.subr.mxu0 0.0
        %3674 = vmatpush1.msra.mxu0 %v3645
        %3675 = vmatprep.subr.mxu0 0.0
        %3676 = vmatpush1.msra.mxu0 %v3646
        %3677 = vmatprep.subr.mxu0 0.0
        %3678 = vmatpush1.msra.mxu0 %v3647
        %3679 = vmatprep.subr.mxu0 0.0
        %3680 = vmatpush1.msra.mxu0 %v3648
        %3681 = vmatprep.subr.mxu0 0.0
        %3682 = vmatpush1.msra.mxu0 %v3649
        %3683 = vmatprep.subr.mxu0 0.0
        %3684 = vmatpush1.msra.mxu0 %v3650
        %3685 = vmatprep.subr.mxu0 0.0
        %3686 = vmatpush1.msra.mxu0 %v3651
        %3687 = vmatprep.subr.mxu0 0.0
        %3688 = vmatpush1.msra.mxu0 %v3652
        %3689 = vmatprep.subr.mxu0 0.0
        %3690 = vmatpush1.msra.mxu0 %v3653
        %3691 = vmatprep.subr.mxu0 0.0
        %3692 = vmatpush1.msra.mxu0 %v3654
        %3693 = vmatprep.subr.mxu0 0.0
        %3694 = vmatpush1.msra.mxu0 %v3655
        %3695 = vmatprep.subr.mxu0 0.0
        %3696 = vmatpush1.msra.mxu0 0.0
        %3697 = vmatprep.subr.mxu0 0.0
        %3698 = vmatpush1.msra.mxu0 0.0
        %3699 = vmatprep.subr.mxu0 0.0
        %3700 = vmatpush1.msra.mxu0 0.0
        %3701 = vmatprep.subr.mxu0 0.0
        %3702 = vmatpush1.msra.mxu0 0.0
        %3703 = vmatprep.subr.mxu0 0.0
        %3704 = vmatpush1.msra.mxu0 0.0
        %3705 = vmatprep.subr.mxu0 0.0
        %3706 = vmatpush1.msra.mxu0 0.0
        %3707 = vmatprep.subr.mxu0 0.0
        %3708 = vmatpush1.msra.mxu0 0.0
        %3709 = vmatprep.subr.mxu0 0.0
        %3710 = vmatpush1.msra.mxu0 0.0
        %3711 = vmatprep.subr.mxu0 0.0
        %3712 = vmatpush1.msra.mxu0 0.0
        %3713 = vmatprep.subr.mxu0 0.0
        %3714 = vmatpush1.msra.mxu0 0.0
        %3715 = vmatprep.subr.mxu0 0.0
        %3716 = vmatpush1.msra.mxu0 0.0
        %3717 = vmatprep.subr.mxu0 0.0
        %3718 = vmatpush1.msra.mxu0 0.0
        %3719 = vmatprep.subr.mxu0 0.0
        %3720 = vmatpush1.msra.mxu0 0.0
        %3721 = vmatprep.subr.mxu0 0.0
        %3722 = vmatpush1.msra.mxu0 0.0
        %3723 = vmatprep.subr.mxu0 0.0
        %3724 = vmatpush1.msra.mxu0 0.0
        %3725 = vmatprep.subr.mxu0 0.0
        %3726 = vmatpush1.msra.mxu0 0.0
        %3727 = vmatprep.mubr.f32.mxu0 0.0
        %3728 = vmatmul.mubr.f32.gmra.mrb[0].mxu0 %v3639
        %v3729 = vpop.f32.mrb[0].mxu0
        %v3730 = vadd.f32 %v3661, %v3729
        %v3731 = vpop.f32.mrb[0].mxu0
        %3732 = vdwg.mxu0
        %vm3733 = vcmask 7168
        %3734 = vst.msk [vmem:[%s382] sm:$0xff] %vm3733, %v3730
        %p3735 = scmp.lt.s32.totalorder %s22, 1
        %s3736 = scalar_select %p3735, %s22, 1
        %s3737 = smul.addr %s3736, 8
        %s3738 = scalar_lea.vmem %s9, %s3737
        // Predicated region
        $region80: #{lstm_classifier_forward.1} parent=74 // pred_check
          %p3739 = pneg %p234
        $region81: #{lstm_classifier_forward.1} parent=74 // pred_check_branch
          %3741 = sbr.rel (%p3739) target = $region83
        $region82: #{lstm_classifier_forward.1} parent=74 // pred_region
          _
        $region83: #{lstm_classifier_forward.1} parent=74 // pred_fallthru
          _
      $region75: #{lstm_classifier_forward.1} parent=5 // pred_fallthru
        _
      %p3742 = scmp.le.s32.totalorder 2, %s17
      // Predicated region
      $region84: #{lstm_classifier_forward.1} parent=5 // pred_check
        %p3743 = pneg %p3742
      $region85: #{lstm_classifier_forward.1} parent=5 // pred_check_branch
        %3745 = sbr.rel (%p3743) target = $region87
      $region86: #{lstm_classifier_forward.1} parent=5 // pred_region
        %s3746 = ssub.s32 %s17, 2
        // Predicated region
        $region88: #{lstm_classifier_forward.1} parent=86 // pred_check
          %p3747 = pneg %p240
        $region89: #{lstm_classifier_forward.1} parent=86 // pred_check_branch
          %3749 = sbr.rel (%p3747) target = $region91
        $region90: #{lstm_classifier_forward.1} parent=86 // pred_region
          %p3750 = scmp.lt.s32.totalorder %s23, 1
          %s3751 = scalar_select %p3750, %s23, 1
          %s3752 = smul.addr %s3751, 8
          %s3753 = scalar_lea.vmem %s9, %s3752
        $region91: #{lstm_classifier_forward.1} parent=86 // pred_fallthru
          _
      $region87: #{lstm_classifier_forward.1} parent=5 // pred_fallthru
        _
    $region6: #{lstm_classifier_forward.1} parent=1 // loop_footer
      %s21 = sadd.s32 1, %s17
    $region7: #{lstm_classifier_forward.1} parent=1 // loop_footer_branch
      %16 = sbr.rel target = $region3
    $region8: #{lstm_classifier_forward.1} parent=1 // loop_exit
      _

</llo_original>
